<compile_context>
chip_gen: v6e
topology: v6e:2x2x1
jax: 0.10.0
libtpu: 0.0.40
codegen_flags: <defaults>
</compile_context>

<pallas_src>
import jax
import jax.numpy as jnp
import numpy as np
from jax.experimental import pallas as pl
from jax.experimental.pallas import tpu as pltpu

BN_EPS = 1e-5


def _round_up(x, m):
    return (x + m - 1) // m * m


# --------------------------------------------------------------------------
# Kernel: one batch tile; all weights resident (block (0,0) every grid step).
# --------------------------------------------------------------------------
def fusion_kernel(x_ref,                 # (TB, Kp)        bf16  pooled features (K padded)
                  wbb_ref, bbb_ref,      # (Kp, D) bf16 /  (1, D) f32   merged backbone head
                  w1_ref, b1_ref,        # (D, HID) bf16 / (1, HID) f32 Linear1 with BN folded
                  w2_ref, b2_ref,        # (HID, NCp) bf16 / (1, NCp) f32 Linear2 (padded to 128)
                  logits_ref,            # out: (TB, NCp) f32
                  fused_ref):            # out: (TB, D)   bf16  fused_features embedding
    # ---- backbone surrogates + torch.cat, as a single MXU pass -----------
    fused = jnp.dot(x_ref[...], wbb_ref[...],
                    preferred_element_type=jnp.float32) + bbb_ref[...]
    fused_ref[...] = fused.astype(fused_ref.dtype)

    # ---- fusion classifier (eval): Linear(+BN folded) -> ReLU -> Linear ---
    # Dropout(p=0.5) is identity in eval mode.
    h = jnp.dot(fused.astype(w1_ref.dtype), w1_ref[...],
                preferred_element_type=jnp.float32) + b1_ref[...]
    h = jnp.maximum(h, 0.0)
    logits = jnp.dot(h.astype(w2_ref.dtype), w2_ref[...],
                     preferred_element_type=jnp.float32) + b2_ref[...]
    logits_ref[...] = logits.astype(logits_ref.dtype)


# --------------------------------------------------------------------------
# One-time constant folding (call once per parameter set, NOT per forward)
# --------------------------------------------------------------------------
def fold_params(params, compute_dtype=jnp.bfloat16):
    # eval-mode BatchNorm folded into Linear1 (fold in f32, then cast)
    scale = params["gamma"] * jax.lax.rsqrt(params["var"] + BN_EPS)        # (1, HID)
    w1f = (params["w1"].astype(jnp.float32) * scale).astype(compute_dtype)  # (D, HID)
    b1f = ((params["b1"] - params["mean"]) * scale
           + params["beta"]).astype(jnp.float32)                            # (1, HID)

    # merge the two surrogate backbone heads into one weight, pad K to 128
    w_cat = jnp.concatenate([params["w_cn"], params["w_sw"]], axis=1)       # (C, D)
    b_cat = jnp.concatenate([params["b_cn"], params["b_sw"]],
                            axis=1).astype(jnp.float32)                     # (1, D)
    C, D = w_cat.shape
    K_pad = _round_up(C, 128)
    w_bb = jnp.pad(w_cat, ((0, K_pad - C), (0, 0))).astype(compute_dtype)   # (Kp, D)

    # lane-dense logits head (pad NC -> multiple of 128)
    NC = params["w2"].shape[1]
    NC_pad = _round_up(NC, 128)
    w2p = jnp.pad(params["w2"], ((0, 0), (0, NC_pad - NC))).astype(compute_dtype)
    b2p = jnp.pad(params["b2"], ((0, 0), (0, NC_pad - NC))).astype(jnp.float32)

    return {
        "w_bb": w_bb, "b_bb": b_cat, "w1": w1f, "b1": b1f, "w2": w2p, "b2": b2p,
        "C": C, "K_pad": K_pad, "D": D, "HID": w1f.shape[1],
        "NC": NC, "NC_pad": NC_pad, "compute_dtype": compute_dtype,
    }


# --------------------------------------------------------------------------
# Forward wrapper
# --------------------------------------------------------------------------
def parallel_fusion_forward(x, folded, return_embeddings=False):
    """x: (B, C, H, W) float32 (NCHW, like the PyTorch module)."""
    B = x.shape[0]
    compute_dtype = folded["compute_dtype"]
    cbytes = jnp.dtype(compute_dtype).itemsize
    C, K_pad = folded["C"], folded["K_pad"]
    D, HID = folded["D"], folded["HID"]
    NC, NC_pad = folded["NC"], folded["NC_pad"]

    # ---- GAP in the wrapper (rank-C op; never inflate K by HW) -------------
    gap = jnp.mean(x.astype(jnp.float32), axis=(2, 3))                      # (B, C)
    x2d = jnp.pad(gap, ((0, 0), (0, K_pad - C))).astype(compute_dtype)      # (B, Kp)

    # ---- generation-aware VMEM budget --------------------------------------
    try:
        info = pltpu.get_tpu_info()
        vmem_cap = getattr(info, "vmem_capacity_bytes", 64 * 1024 * 1024)
    except Exception:
        vmem_cap = 64 * 1024 * 1024
    if vmem_cap >= 100 * 1024 * 1024:            # 128 MiB parts (v5e / v6e)
        vmem_budget = 80 * 1024 * 1024
        vmem_limit = 100 * 1024 * 1024
    else:                                        # 64 MiB parts (v7x)
        vmem_budget = 24 * 1024 * 1024
        vmem_limit = 48 * 1024 * 1024

    weight_bytes = (
        (folded["w_bb"].size + folded["w1"].size + folded["w2"].size) * cbytes
        + (folded["b_bb"].size + folded["b1"].size + folded["b2"].size) * 4)

    def vmem_use(tb):
        return (weight_bytes                          # single-buffered weights
                + 2 * tb * K_pad * cbytes             # double-buffered x tile
                + 2 * tb * NC_pad * 4                 # double-buffered logits (f32)
                + 2 * tb * D * cbytes                 # double-buffered fused (bf16)
                + tb * (D + HID + NC_pad) * 4)        # f32 intermediates (scratch)

    # ---- batch tiling: multiples of 16 (bf16 packing), VMEM-budgeted -------
    B16 = _round_up(B, 16)
    tile_b = 16
    for cand in (512, 256, 128, 64, 32, 16):
        if cand <= B16 and vmem_use(cand) <= vmem_budget:
            tile_b = cand
            break
    # keep >= 2 grid steps when the batch allows it (v7x megacore; no-op on
    # single-TC v5e/v6e)
    if B16 >= 32:
        tile_b = min(tile_b, max(16, (B16 // 2) // 16 * 16))

    B_pad = _round_up(B, tile_b)
    if B_pad != B:
        x2d = jnp.pad(x2d, ((0, B_pad - B), (0, 0)))
    grid = (B_pad // tile_b,)

    batch_map = lambda i: (i, 0)
    weight_map = lambda i: (0, 0)

    def build_in_specs(single_buffer_weights):
        if single_buffer_weights:
            wspec = lambda a: pl.BlockSpec(a.shape, weight_map,
                                           pipeline_mode=pl.Buffered(1))
        else:
            wspec = lambda a: pl.BlockSpec(a.shape, weight_map)
        return [
            pl.BlockSpec((tile_b, K_pad), batch_map),
            wspec(folded["w_bb"]), wspec(folded["b_bb"]),
            wspec(folded["w1"]), wspec(folded["b1"]),
            wspec(folded["w2"]), wspec(folded["b2"]),
        ]

    out_specs = (
        pl.BlockSpec((tile_b, NC_pad), batch_map),
        pl.BlockSpec((tile_b, D), batch_map),
    )

    flops = 2 * B_pad * (K_pad * D + D * HID + HID * NC_pad)
    bytes_accessed = (x2d.size * cbytes + weight_bytes
                      + B_pad * NC_pad * 4 + B_pad * D * cbytes)
    cost = pl.CostEstimate(flops=flops, transcendentals=0,
                           bytes_accessed=bytes_accessed)

    def run(single_buffer_weights):
        return pl.pallas_call(
            fusion_kernel,
            out_shape=(
                jax.ShapeDtypeStruct((B_pad, NC_pad), jnp.float32),
                jax.ShapeDtypeStruct((B_pad, D), compute_dtype),
            ),
            grid=grid,
            in_specs=build_in_specs(single_buffer_weights),
            out_specs=out_specs,
            compiler_params=pltpu.CompilerParams(
                dimension_semantics=("parallel",),
                vmem_limit_bytes=vmem_limit,
            ),
            cost_estimate=cost,
        )(x2d, folded["w_bb"], folded["b_bb"], folded["w1"], folded["b1"],
          folded["w2"], folded["b2"])

    try:
        logits_p, fused_p = run(True)      # single-buffer grid-invariant weights
    except Exception:
        logits_p, fused_p = run(False)     # fallback: default double-buffering

    logits = logits_p[:B, :NC]
    fused = fused_p[:B, :].astype(jnp.float32)
    if return_embeddings:
        return logits, fused
    return logits


# --------------------------------------------------------------------------
# Parameters / reference
# --------------------------------------------------------------------------
def init_params(key, in_channels, d_cn, d_sw, hidden, num_classes):
    ks = jax.random.split(key, 8)
    fusion_dim = d_cn + d_sw

    def lin(k, fan_in, shape):
        return (jax.random.normal(k, shape, jnp.float32) / jnp.sqrt(fan_in)).astype(jnp.float32)

    return {
        # surrogate backbone projections
        "w_cn": lin(ks[0], in_channels, (in_channels, d_cn)),
        "b_cn": jnp.zeros((1, d_cn), jnp.float32),
        "w_sw": lin(ks[1], in_channels, (in_channels, d_sw)),
        "b_sw": jnp.zeros((1, d_sw), jnp.float32),
        # fusion_classifier[0]: Linear(fusion_dim, hidden)
        "w1": lin(ks[2], fusion_dim, (fusion_dim, hidden)),
        "b1": 0.01 * jax.random.normal(ks[3], (1, hidden), jnp.float32),
        # fusion_classifier[1]: BatchNorm1d(hidden), eval-mode running stats
        "gamma": jnp.ones((1, hidden), jnp.float32),
        "beta": jnp.zeros((1, hidden), jnp.float32),
        "mean": 0.1 * jax.random.normal(ks[4], (1, hidden), jnp.float32),
        "var": 1.0 + 0.1 * jax.random.uniform(ks[5], (1, hidden), jnp.float32),
        # fusion_classifier[4]: Linear(hidden, num_classes)
        "w2": lin(ks[6], hidden, (hidden, num_classes)),
        "b2": 0.01 * jax.random.normal(ks[7], (1, num_classes), jnp.float32),
    }


def reference_forward(x, params):
    """Pure-JAX f32 reference of the same (surrogate-backbone) forward."""
    gap = jnp.mean(x, axis=(2, 3))
    f_cn = gap @ params["w_cn"] + params["b_cn"]
    f_sw = gap @ params["w_sw"] + params["b_sw"]
    fused = jnp.concatenate([f_cn, f_sw], axis=1)
    h = fused @ params["w1"] + params["b1"]
    h = (params["gamma"] * (h - params["mean"])
         * jax.lax.rsqrt(params["var"] + BN_EPS) + params["beta"])
    h = jnp.maximum(h, 0.0)
    return h @ params["w2"] + params["b2"], fused


if __name__ == "__main__":
    key = jax.random.PRNGKey(0)
    k_x, k_p = jax.random.split(key)

    B, C, H, W = 2, 4, 16, 16          # NCHW image batch
    D_CN, D_SW = 128, 128              # surrogate backbone feature dims
    HIDDEN = 1024                      # nn.Linear(fusion_dim, 1024)
    NUM_CLASSES = 10

    x = jax.random.normal(k_x, (B, C, H, W), jnp.float32)
    params = init_params(k_p, C, D_CN, D_SW, HIDDEN, NUM_CLASSES)

    folded = fold_params(params)       # one-time constant folding
    jax.block_until_ready(folded["w1"])

    logits, fused = parallel_fusion_forward(x, folded, return_embeddings=True)
    jax.block_until_ready((logits, fused))

    assert logits.shape == (B, NUM_CLASSES)
    assert fused.shape == (B, D_CN + D_SW)

    ref_logits, ref_fused = reference_forward(x, params)
    assert np.allclose(np.asarray(logits), np.asarray(ref_logits), atol=5e-2, rtol=5e-2)
    assert np.allclose(np.asarray(fused), np.asarray(ref_fused), atol=5e-2, rtol=5e-2)

    print("KERNEL_OK")
</pallas_src>

<mosaic_0001>
module attributes {stable_mosaic.version = 11 : i64} {
  func.func @fusion_kernel(%arg0: i32, %arg1: memref<16x128xbf16, #tpu.memory_space<vmem>>, %arg2: memref<128x256xbf16, #tpu.memory_space<vmem>>, %arg3: memref<1x256xf32, #tpu.memory_space<vmem>>, %arg4: memref<256x1024xbf16, #tpu.memory_space<vmem>>, %arg5: memref<1x1024xf32, #tpu.memory_space<vmem>>, %arg6: memref<1024x128xbf16, #tpu.memory_space<vmem>>, %arg7: memref<1x128xf32, #tpu.memory_space<vmem>>, %arg8: memref<16x128xf32, #tpu.memory_space<vmem>>, %arg9: memref<16x256xbf16, #tpu.memory_space<vmem>>) attributes {dimension_semantics = [#tpu.dimension_semantics<parallel>], iteration_bounds = array<i64: 1>, scalar_prefetch = 0 : i64, scratch_operands = 0 : i64, tpu.core_type = #tpu.core_type<tc>, window_params = [{transform_indices = @transform_0, window_bounds = array<i64: 16, 128>}, {pipeline_mode = #tpu.pipeline_mode<synchronous>, transform_indices = @transform_1, window_bounds = array<i64: 128, 256>}, {pipeline_mode = #tpu.pipeline_mode<synchronous>, transform_indices = @transform_2, window_bounds = array<i64: 1, 256>}, {pipeline_mode = #tpu.pipeline_mode<synchronous>, transform_indices = @transform_3, window_bounds = array<i64: 256, 1024>}, {pipeline_mode = #tpu.pipeline_mode<synchronous>, transform_indices = @transform_4, window_bounds = array<i64: 1, 1024>}, {pipeline_mode = #tpu.pipeline_mode<synchronous>, transform_indices = @transform_5, window_bounds = array<i64: 1024, 128>}, {pipeline_mode = #tpu.pipeline_mode<synchronous>, transform_indices = @transform_6, window_bounds = array<i64: 1, 128>}, {transform_indices = @transform_7, window_bounds = array<i64: 16, 128>}, {transform_indices = @transform_8, window_bounds = array<i64: 16, 256>}]} {
    %c0 = arith.constant 0 : index
    %c0_0 = arith.constant 0 : index
    %0 = vector.load %arg1[%c0, %c0_0] : memref<16x128xbf16, #tpu.memory_space<vmem>>, vector<16x128xbf16>
    %c0_1 = arith.constant 0 : index
    %c0_2 = arith.constant 0 : index
    %1 = vector.load %arg2[%c0_1, %c0_2] : memref<128x256xbf16, #tpu.memory_space<vmem>>, vector<128x256xbf16>
    %cst = arith.constant dense<0.000000e+00> : vector<16x256xf32>
    %2 = tpu.matmul %0, %1, %cst {dimension_numbers = #tpu.dot_dimension_numbers<[1], [0], [0], [1], [0, 0, 1, 1], [], []>} : vector<16x128xbf16>, vector<128x256xbf16>, vector<16x256xf32> -> vector<16x256xf32>
    %c0_3 = arith.constant 0 : index
    %c0_4 = arith.constant 0 : index
    %3 = vector.load %arg3[%c0_3, %c0_4] : memref<1x256xf32, #tpu.memory_space<vmem>>, vector<1x256xf32>
    %4 = vector.broadcast %3 : vector<1x256xf32> to vector<16x256xf32>
    %5 = arith.addf %2, %4 : vector<16x256xf32>
    %6 = arith.truncf %5 : vector<16x256xf32> to vector<16x256xbf16>
    %c0_5 = arith.constant 0 : index
    %c0_6 = arith.constant 0 : index
    %7 = vector.load %arg9[%c0_5, %c0_6] : memref<16x256xbf16, #tpu.memory_space<vmem>>, vector<16x256xbf16>
    tpu.vector_store %arg9[%c0_5, %c0_6], %6 {strides = array<i32>} : memref<16x256xbf16, #tpu.memory_space<vmem>>, vector<16x256xbf16>,
    %8 = arith.truncf %5 : vector<16x256xf32> to vector<16x256xbf16>
    %c0_7 = arith.constant 0 : index
    %c0_8 = arith.constant 0 : index
    %9 = vector.load %arg4[%c0_7, %c0_8] : memref<256x1024xbf16, #tpu.memory_space<vmem>>, vector<256x1024xbf16>
    %cst_9 = arith.constant dense<0.000000e+00> : vector<16x1024xf32>
    %10 = tpu.matmul %8, %9, %cst_9 {dimension_numbers = #tpu.dot_dimension_numbers<[1], [0], [0], [1], [0, 0, 1, 1], [], []>} : vector<16x256xbf16>, vector<256x1024xbf16>, vector<16x1024xf32> -> vector<16x1024xf32>
    %c0_10 = arith.constant 0 : index
    %c0_11 = arith.constant 0 : index
    %11 = vector.load %arg5[%c0_10, %c0_11] : memref<1x1024xf32, #tpu.memory_space<vmem>>, vector<1x1024xf32>
    %12 = vector.broadcast %11 : vector<1x1024xf32> to vector<16x1024xf32>
    %13 = arith.addf %10, %12 : vector<16x1024xf32>
    %cst_12 = arith.constant 0.000000e+00 : f32
    %14 = vector.broadcast %cst_12 : f32 to vector<16x1024xf32>
    %15 = arith.maximumf %13, %14 : vector<16x1024xf32>
    %16 = arith.truncf %15 : vector<16x1024xf32> to vector<16x1024xbf16>
    %c0_13 = arith.constant 0 : index
    %c0_14 = arith.constant 0 : index
    %17 = vector.load %arg6[%c0_13, %c0_14] : memref<1024x128xbf16, #tpu.memory_space<vmem>>, vector<1024x128xbf16>
    %cst_15 = arith.constant dense<0.000000e+00> : vector<16x128xf32>
    %18 = tpu.matmul %16, %17, %cst_15 {dimension_numbers = #tpu.dot_dimension_numbers<[1], [0], [0], [1], [0, 0, 1, 1], [], []>} : vector<16x1024xbf16>, vector<1024x128xbf16>, vector<16x128xf32> -> vector<16x128xf32>
    %c0_16 = arith.constant 0 : index
    %c0_17 = arith.constant 0 : index
    %19 = vector.load %arg7[%c0_16, %c0_17] : memref<1x128xf32, #tpu.memory_space<vmem>>, vector<1x128xf32>
    %20 = vector.broadcast %19 : vector<1x128xf32> to vector<16x128xf32>
    %21 = arith.addf %18, %20 : vector<16x128xf32>
    %c0_18 = arith.constant 0 : index
    %c0_19 = arith.constant 0 : index
    %22 = vector.load %arg8[%c0_18, %c0_19] : memref<16x128xf32, #tpu.memory_space<vmem>>, vector<16x128xf32>
    tpu.vector_store %arg8[%c0_18, %c0_19], %21 {strides = array<i32>} : memref<16x128xf32, #tpu.memory_space<vmem>>, vector<16x128xf32>,
    return
  }
  func.func @transform_0(%arg0: i32) -> (i32, i32) {
    %c0_i32 = arith.constant 0 : i32
    %c0_i32_0 = arith.constant 0 : i32
    return %arg0, %c0_i32 : i32, i32
  }
  func.func @transform_1(%arg0: i32) -> (i32, i32) {
    %c0_i32 = arith.constant 0 : i32
    %c0_i32_0 = arith.constant 0 : i32
    %c0_i32_1 = arith.constant 0 : i32
    return %c0_i32, %c0_i32_0 : i32, i32
  }
  func.func @transform_2(%arg0: i32) -> (i32, i32) {
    %c0_i32 = arith.constant 0 : i32
    %c0_i32_0 = arith.constant 0 : i32
    %c0_i32_1 = arith.constant 0 : i32
    return %c0_i32, %c0_i32_0 : i32, i32
  }
  func.func @transform_3(%arg0: i32) -> (i32, i32) {
    %c0_i32 = arith.constant 0 : i32
    %c0_i32_0 = arith.constant 0 : i32
    %c0_i32_1 = arith.constant 0 : i32
    return %c0_i32, %c0_i32_0 : i32, i32
  }
  func.func @transform_4(%arg0: i32) -> (i32, i32) {
    %c0_i32 = arith.constant 0 : i32
    %c0_i32_0 = arith.constant 0 : i32
    %c0_i32_1 = arith.constant 0 : i32
    return %c0_i32, %c0_i32_0 : i32, i32
  }
  func.func @transform_5(%arg0: i32) -> (i32, i32) {
    %c0_i32 = arith.constant 0 : i32
    %c0_i32_0 = arith.constant 0 : i32
    %c0_i32_1 = arith.constant 0 : i32
    return %c0_i32, %c0_i32_0 : i32, i32
  }
  func.func @transform_6(%arg0: i32) -> (i32, i32) {
    %c0_i32 = arith.constant 0 : i32
    %c0_i32_0 = arith.constant 0 : i32
    %c0_i32_1 = arith.constant 0 : i32
    return %c0_i32, %c0_i32_0 : i32, i32
  }
  func.func @transform_7(%arg0: i32) -> (i32, i32) {
    %c0_i32 = arith.constant 0 : i32
    %c0_i32_0 = arith.constant 0 : i32
    return %arg0, %c0_i32 : i32, i32
  }
  func.func @transform_8(%arg0: i32) -> (i32, i32) {
    %c0_i32 = arith.constant 0 : i32
    %c0_i32_0 = arith.constant 0 : i32
    return %arg0, %c0_i32 : i32, i32
  }
}

module attributes {stable_mosaic.version = 11 : i64} {
  func.func @fusion_kernel(%arg0: i32, %arg1: memref<16x128xbf16, #tpu.memory_space<vmem>>, %arg2: memref<128x256xbf16, #tpu.memory_space<vmem>>, %arg3: memref<1x256xf32, #tpu.memory_space<vmem>>, %arg4: memref<256x1024xbf16, #tpu.memory_space<vmem>>, %arg5: memref<1x1024xf32, #tpu.memory_space<vmem>>, %arg6: memref<1024x128xbf16, #tpu.memory_space<vmem>>, %arg7: memref<1x128xf32, #tpu.memory_space<vmem>>, %arg8: memref<16x128xf32, #tpu.memory_space<vmem>>, %arg9: memref<16x256xbf16, #tpu.memory_space<vmem>>) attributes {dimension_semantics = [#tpu.dimension_semantics<parallel>], iteration_bounds = array<i64: 1>, scalar_prefetch = 0 : i64, scratch_operands = 0 : i64, tpu.core_type = #tpu.core_type<tc>, window_params = [{transform_indices = @transform_0, window_bounds = array<i64: 16, 128>}, {pipeline_mode = #tpu.pipeline_mode<synchronous>, transform_indices = @transform_1, window_bounds = array<i64: 128, 256>}, {pipeline_mode = #tpu.pipeline_mode<synchronous>, transform_indices = @transform_2, window_bounds = array<i64: 1, 256>}, {pipeline_mode = #tpu.pipeline_mode<synchronous>, transform_indices = @transform_3, window_bounds = array<i64: 256, 1024>}, {pipeline_mode = #tpu.pipeline_mode<synchronous>, transform_indices = @transform_4, window_bounds = array<i64: 1, 1024>}, {pipeline_mode = #tpu.pipeline_mode<synchronous>, transform_indices = @transform_5, window_bounds = array<i64: 1024, 128>}, {pipeline_mode = #tpu.pipeline_mode<synchronous>, transform_indices = @transform_6, window_bounds = array<i64: 1, 128>}, {transform_indices = @transform_7, window_bounds = array<i64: 16, 128>}, {transform_indices = @transform_8, window_bounds = array<i64: 16, 256>}]} {
    %c0 = arith.constant 0 : index
    %c0_0 = arith.constant 0 : index
    %0 = vector.load %arg1[%c0, %c0_0] : memref<16x128xbf16, #tpu.memory_space<vmem>>, vector<16x128xbf16>
    %c0_1 = arith.constant 0 : index
    %c0_2 = arith.constant 0 : index
    %1 = vector.load %arg2[%c0_1, %c0_2] : memref<128x256xbf16, #tpu.memory_space<vmem>>, vector<128x256xbf16>
    %cst = arith.constant dense<0.000000e+00> : vector<16x256xf32>
    %2 = tpu.matmul %0, %1, %cst {dimension_numbers = #tpu.dot_dimension_numbers<[1], [0], [0], [1], [0, 0, 1, 1], [], []>} : vector<16x128xbf16>, vector<128x256xbf16>, vector<16x256xf32> -> vector<16x256xf32>
    %c0_3 = arith.constant 0 : index
    %c0_4 = arith.constant 0 : index
    %3 = vector.load %arg3[%c0_3, %c0_4] : memref<1x256xf32, #tpu.memory_space<vmem>>, vector<1x256xf32>
    %4 = vector.broadcast %3 : vector<1x256xf32> to vector<16x256xf32>
    %5 = arith.addf %2, %4 : vector<16x256xf32>
    %6 = arith.truncf %5 : vector<16x256xf32> to vector<16x256xbf16>
    %c0_5 = arith.constant 0 : index
    %c0_6 = arith.constant 0 : index
    %7 = vector.load %arg9[%c0_5, %c0_6] : memref<16x256xbf16, #tpu.memory_space<vmem>>, vector<16x256xbf16>
    tpu.vector_store %arg9[%c0_5, %c0_6], %6 {strides = array<i32>} : memref<16x256xbf16, #tpu.memory_space<vmem>>, vector<16x256xbf16>,
    %8 = arith.truncf %5 : vector<16x256xf32> to vector<16x256xbf16>
    %c0_7 = arith.constant 0 : index
    %c0_8 = arith.constant 0 : index
    %9 = vector.load %arg4[%c0_7, %c0_8] : memref<256x1024xbf16, #tpu.memory_space<vmem>>, vector<256x1024xbf16>
    %cst_9 = arith.constant dense<0.000000e+00> : vector<16x1024xf32>
    %10 = tpu.matmul %8, %9, %cst_9 {dimension_numbers = #tpu.dot_dimension_numbers<[1], [0], [0], [1], [0, 0, 1, 1], [], []>} : vector<16x256xbf16>, vector<256x1024xbf16>, vector<16x1024xf32> -> vector<16x1024xf32>
    %c0_10 = arith.constant 0 : index
    %c0_11 = arith.constant 0 : index
    %11 = vector.load %arg5[%c0_10, %c0_11] : memref<1x1024xf32, #tpu.memory_space<vmem>>, vector<1x1024xf32>
    %12 = vector.broadcast %11 : vector<1x1024xf32> to vector<16x1024xf32>
    %13 = arith.addf %10, %12 : vector<16x1024xf32>
    %cst_12 = arith.constant 0.000000e+00 : f32
    %14 = vector.broadcast %cst_12 : f32 to vector<16x1024xf32>
    %15 = arith.maximumf %13, %14 : vector<16x1024xf32>
    %16 = arith.truncf %15 : vector<16x1024xf32> to vector<16x1024xbf16>
    %c0_13 = arith.constant 0 : index
    %c0_14 = arith.constant 0 : index
    %17 = vector.load %arg6[%c0_13, %c0_14] : memref<1024x128xbf16, #tpu.memory_space<vmem>>, vector<1024x128xbf16>
    %cst_15 = arith.constant dense<0.000000e+00> : vector<16x128xf32>
    %18 = tpu.matmul %16, %17, %cst_15 {dimension_numbers = #tpu.dot_dimension_numbers<[1], [0], [0], [1], [0, 0, 1, 1], [], []>} : vector<16x1024xbf16>, vector<1024x128xbf16>, vector<16x128xf32> -> vector<16x128xf32>
    %c0_16 = arith.constant 0 : index
    %c0_17 = arith.constant 0 : index
    %19 = vector.load %arg7[%c0_16, %c0_17] : memref<1x128xf32, #tpu.memory_space<vmem>>, vector<1x128xf32>
    %20 = vector.broadcast %19 : vector<1x128xf32> to vector<16x128xf32>
    %21 = arith.addf %18, %20 : vector<16x128xf32>
    %c0_18 = arith.constant 0 : index
    %c0_19 = arith.constant 0 : index
    %22 = vector.load %arg8[%c0_18, %c0_19] : memref<16x128xf32, #tpu.memory_space<vmem>>, vector<16x128xf32>
    tpu.vector_store %arg8[%c0_18, %c0_19], %21 {strides = array<i32>} : memref<16x128xf32, #tpu.memory_space<vmem>>, vector<16x128xf32>,
    return
  }
  func.func @transform_0(%arg0: i32) -> (i32, i32) {
    %c0_i32 = arith.constant 0 : i32
    %c0_i32_0 = arith.constant 0 : i32
    return %arg0, %c0_i32 : i32, i32
  }
  func.func @transform_1(%arg0: i32) -> (i32, i32) {
    %c0_i32 = arith.constant 0 : i32
    %c0_i32_0 = arith.constant 0 : i32
    %c0_i32_1 = arith.constant 0 : i32
    return %c0_i32, %c0_i32_0 : i32, i32
  }
  func.func @transform_2(%arg0: i32) -> (i32, i32) {
    %c0_i32 = arith.constant 0 : i32
    %c0_i32_0 = arith.constant 0 : i32
    %c0_i32_1 = arith.constant 0 : i32
    return %c0_i32, %c0_i32_0 : i32, i32
  }
  func.func @transform_3(%arg0: i32) -> (i32, i32) {
    %c0_i32 = arith.constant 0 : i32
    %c0_i32_0 = arith.constant 0 : i32
    %c0_i32_1 = arith.constant 0 : i32
    return %c0_i32, %c0_i32_0 : i32, i32
  }
  func.func @transform_4(%arg0: i32) -> (i32, i32) {
    %c0_i32 = arith.constant 0 : i32
    %c0_i32_0 = arith.constant 0 : i32
    %c0_i32_1 = arith.constant 0 : i32
    return %c0_i32, %c0_i32_0 : i32, i32
  }
  func.func @transform_5(%arg0: i32) -> (i32, i32) {
    %c0_i32 = arith.constant 0 : i32
    %c0_i32_0 = arith.constant 0 : i32
    %c0_i32_1 = arith.constant 0 : i32
    return %c0_i32, %c0_i32_0 : i32, i32
  }
  func.func @transform_6(%arg0: i32) -> (i32, i32) {
    %c0_i32 = arith.constant 0 : i32
    %c0_i32_0 = arith.constant 0 : i32
    %c0_i32_1 = arith.constant 0 : i32
    return %c0_i32, %c0_i32_0 : i32, i32
  }
  func.func @transform_7(%arg0: i32) -> (i32, i32) {
    %c0_i32 = arith.constant 0 : i32
    %c0_i32_0 = arith.constant 0 : i32
    return %arg0, %c0_i32 : i32, i32
  }
  func.func @transform_8(%arg0: i32) -> (i32, i32) {
    %c0_i32 = arith.constant 0 : i32
    %c0_i32_0 = arith.constant 0 : i32
    return %arg0, %c0_i32 : i32, i32
  }
}

</mosaic_0001>

<llo_original>
// kernel: tpu_custom_call.1
$region0: #{tpu_custom_call.1}
  #allocation0 [shape = 'u32[]', space=smem, size = 0x4, offset = 0x4, fixed_abs, tag = 'smem constant byte address 0x4 - core index']
  #allocation1 [shape = 'u32[144,128]{1,0:T(1,128)}', space=vmem, size = 0x12000, scoped, tag = 'internal scratch']
  %s0 = inlined_call_operand.hbm [shape: bf16[16,128], index: 0, kind: input, shape index: {}]
  %s1 = inlined_call_operand.hbm [shape: bf16[128,256], index: 1, kind: input, shape index: {}]
  %s2 = inlined_call_operand.vmem [shape: f32[1,256], index: 2, kind: input, shape index: {}]
  %s3 = inlined_call_operand.hbm [shape: bf16[256,1024], index: 3, kind: input, shape index: {}]
  %s4 = inlined_call_operand.hbm [shape: f32[1,1024], index: 4, kind: input, shape index: {}]
  %s5 = inlined_call_operand.hbm [shape: bf16[1024,128], index: 5, kind: input, shape index: {}]
  %s6 = inlined_call_operand.vmem [shape: f32[1,128], index: 6, kind: input, shape index: {}]
  %s7 = inlined_call_operand.hbm [shape: f32[16,128], index: 7, kind: output, shape index: {0}]
  %s8 = inlined_call_operand.hbm [shape: bf16[16,256], index: 8, kind: output, shape index: {1}]
  %9 = xla_tuple %s7, %s8
  %s10 = sld [smem:[#allocation0]]
  $region66: #{tpu_custom_call.1} parent=0
    _
  %s12 = ssub.s32 1, %s10
  %s13 = scalar_select 0, %s12, %s10
  $region1: #{tpu_custom_call.1} parent=0
    #allocation2 [shape = 'u8[4096]{0}', space=vmem, size = 0x1000, scoped, tag = 'input window, operand 0, single buffered']
    #allocation3 [shape = 's32[1]{0}', space=sflag, size = 0x4, scoped, tag = 'scoped memory for tpu_custom_call.1']
    #allocation4 [shape = 's32[1]{0}', space=sflag, size = 0x4, scoped, tag = 'scoped memory for tpu_custom_call.1']
    #allocation5 [shape = 'u8[65536]{0}', space=vmem, size = 0x10000, scoped, tag = 'input window, operand 1, single buffered']
    #allocation6 [shape = 's32[1]{0}', space=sflag, size = 0x4, scoped, tag = 'scoped memory for tpu_custom_call.1']
    #allocation7 [shape = 'u8[524288]{0}', space=vmem, size = 0x80000, scoped, tag = 'input window, operand 3, single buffered']
    #allocation8 [shape = 'u8[4096]{0}', space=vmem, size = 0x1000, scoped, tag = 'input window, operand 4, single buffered']
    #allocation9 [shape = 's32[1]{0}', space=sflag, size = 0x4, scoped, tag = 'scoped memory for tpu_custom_call.1']
    #allocation10 [shape = 'u8[262144]{0}', space=vmem, size = 0x40000, scoped, tag = 'input window, operand 5, single buffered']
    #allocation11 [shape = 'u8[8192]{0}', space=vmem, size = 0x2000, scoped, tag = 'output window, operand 0, single buffered']
    #allocation12 [shape = 'u8[8192]{0}', space=vmem, size = 0x2000, scoped, tag = 'output window, operand 1, single buffered']
    #allocation13 [shape = 's32[1]{0}', space=sflag, size = 0x4, scoped, tag = 'scoped memory for tpu_custom_call.1']
    %14 = vsyncpa [#allocation3], 0
    %15 = vsyncpa [#allocation6], 0
    %16 = vsyncpa [#allocation9], 0
    %17 = vsyncpa [#allocation4], 0
    %18 = vsyncpa [#allocation13], 0
    // Predicated region
    $region2: #{tpu_custom_call.1} parent=1 // pred_check
      _
    $region3: #{tpu_custom_call.1} parent=1 // pred_check_branch
      %20 = sbr.rel (0) target = $region5
    $region4: #{tpu_custom_call.1} parent=1 // pred_region
      %s22 = ssub.s32 128, 128
      %23 = vsyncadd [#allocation3], %s22
      %s24 = sshll.u32 [#allocation2], 4
      %s25 = int_to_ptr.vmem [resolvable:$true] %s24
      %30 = dma.hbm_to_vmem [thread:$0]  %s0, 128, %s25, [#allocation3], 64, 64, 4
    $region5: #{tpu_custom_call.1} parent=1 // pred_fallthru
      _
    // Predicated region
    $region6: #{tpu_custom_call.1} parent=1 // pred_check
      _
    $region7: #{tpu_custom_call.1} parent=1 // pred_check_branch
      %32 = sbr.rel (0) target = $region9
    $region8: #{tpu_custom_call.1} parent=1 // pred_region
      %s34 = ssub.s32 2048, 2048
      %35 = vsyncadd [#allocation6], %s34
      %s36 = sshll.u32 [#allocation5], 4
      %s37 = int_to_ptr.vmem [resolvable:$true] %s36
      %42 = dma.hbm_to_vmem [thread:$0]  %s1, 2048, %s37, [#allocation6], 128, 128, 8
    $region9: #{tpu_custom_call.1} parent=1 // pred_fallthru
      _
    // Predicated region
    $region10: #{tpu_custom_call.1} parent=1 // pred_check
      _
    $region11: #{tpu_custom_call.1} parent=1 // pred_check_branch
      %44 = sbr.rel (0) target = $region13
    $region12: #{tpu_custom_call.1} parent=1 // pred_region
      _
    $region13: #{tpu_custom_call.1} parent=1 // pred_fallthru
      _
    // Predicated region
    $region14: #{tpu_custom_call.1} parent=1 // pred_check
      _
    $region15: #{tpu_custom_call.1} parent=1 // pred_check_branch
      %46 = sbr.rel (0) target = $region17
    $region16: #{tpu_custom_call.1} parent=1 // pred_region
      %s48 = ssub.s32 16384, 16384
      %49 = vsyncadd [#allocation6], %s48
      %s50 = sshll.u32 [#allocation7], 4
      %s51 = int_to_ptr.vmem [resolvable:$true] %s50
      %56 = dma.hbm_to_vmem [thread:$0]  %s3, 16384, %s51, [#allocation6], 512, 512, 32
    $region17: #{tpu_custom_call.1} parent=1 // pred_fallthru
      _
    // Predicated region
    $region18: #{tpu_custom_call.1} parent=1 // pred_check
      _
    $region19: #{tpu_custom_call.1} parent=1 // pred_check_branch
      %58 = sbr.rel (0) target = $region21
    $region20: #{tpu_custom_call.1} parent=1 // pred_region
      %s60 = ssub.s32 128, 128
      %61 = vsyncadd [#allocation9], %s60
      %s63 = sshll.u32 [#allocation8], 4
      %s64 = int_to_ptr.vmem [resolvable:$true] %s63
      %66 = dma.hbm_to_vmem [thread:$0]  %s4, 128, %s64, [#allocation9]
    $region21: #{tpu_custom_call.1} parent=1 // pred_fallthru
      _
    // Predicated region
    $region22: #{tpu_custom_call.1} parent=1 // pred_check
      _
    $region23: #{tpu_custom_call.1} parent=1 // pred_check_branch
      %68 = sbr.rel (0) target = $region25
    $region24: #{tpu_custom_call.1} parent=1 // pred_region
      %s70 = ssub.s32 8192, 8192
      %71 = vsyncadd [#allocation9], %s70
      %s72 = sshll.u32 [#allocation10], 4
      %s73 = int_to_ptr.vmem [resolvable:$true] %s72
      %78 = dma.hbm_to_vmem [thread:$0]  %s5, 8192, %s73, [#allocation9], 64, 64, 4
    $region25: #{tpu_custom_call.1} parent=1 // pred_fallthru
      _
    // Predicated region
    $region26: #{tpu_custom_call.1} parent=1 // pred_check
      _
    $region27: #{tpu_custom_call.1} parent=1 // pred_check_branch
      %80 = sbr.rel (0) target = $region29
    $region28: #{tpu_custom_call.1} parent=1 // pred_region
      _
    $region29: #{tpu_custom_call.1} parent=1 // pred_fallthru
      _
    // Predicated region
    $region30: #{tpu_custom_call.1} parent=1 // pred_check
      _
    $region31: #{tpu_custom_call.1} parent=1 // pred_check_branch
      %82 = sbr.rel (0) target = $region33
    $region32: #{tpu_custom_call.1} parent=1 // pred_region
      %83 = dma.done [#allocation3], 128
    $region33: #{tpu_custom_call.1} parent=1 // pred_fallthru
      _
    // Predicated region
    $region34: #{tpu_custom_call.1} parent=1 // pred_check
      _
    $region35: #{tpu_custom_call.1} parent=1 // pred_check_branch
      %85 = sbr.rel (0) target = $region37
    $region36: #{tpu_custom_call.1} parent=1 // pred_region
      %86 = dma.done [#allocation6], 2048
    $region37: #{tpu_custom_call.1} parent=1 // pred_fallthru
      _
    // Predicated region
    $region38: #{tpu_custom_call.1} parent=1 // pred_check
      _
    $region39: #{tpu_custom_call.1} parent=1 // pred_check_branch
      %88 = sbr.rel (0) target = $region41
    $region40: #{tpu_custom_call.1} parent=1 // pred_region
      %89 = dma.done [#allocation6], 16384
    $region41: #{tpu_custom_call.1} parent=1 // pred_fallthru
      _
    // Predicated region
    $region42: #{tpu_custom_call.1} parent=1 // pred_check
      _
    $region43: #{tpu_custom_call.1} parent=1 // pred_check_branch
      %91 = sbr.rel (0) target = $region45
    $region44: #{tpu_custom_call.1} parent=1 // pred_region
      %92 = dma.done [#allocation9], 128
    $region45: #{tpu_custom_call.1} parent=1 // pred_fallthru
      _
    // Predicated region
    $region46: #{tpu_custom_call.1} parent=1 // pred_check
      _
    $region47: #{tpu_custom_call.1} parent=1 // pred_check_branch
      %94 = sbr.rel (0) target = $region49
    $region48: #{tpu_custom_call.1} parent=1 // pred_region
      %95 = dma.done [#allocation9], 8192
    $region49: #{tpu_custom_call.1} parent=1 // pred_fallthru
      _
    %v97 = vld [vmem:[#allocation2] sm:$0xf]
    %v98 = vld [vmem:[#allocation2 + $0x4] sm:$0xf]
    %v99 = vld [vmem:[#allocation5] sm:$0xff]
    %v100 = vld [vmem:[#allocation5 + $0x8] sm:$0xff]
    %v101 = vld [vmem:[#allocation5 + $0x10] sm:$0xff]
    %v102 = vld [vmem:[#allocation5 + $0x18] sm:$0xff]
    %v103 = vld [vmem:[#allocation5 + $0x20] sm:$0xff]
    %v104 = vld [vmem:[#allocation5 + $0x28] sm:$0xff]
    %v105 = vld [vmem:[#allocation5 + $0x30] sm:$0xff]
    %v106 = vld [vmem:[#allocation5 + $0x38] sm:$0xff]
    %v107 = vld [vmem:[#allocation5 + $0x40] sm:$0xff]
    %v108 = vld [vmem:[#allocation5 + $0x48] sm:$0xff]
    %v109 = vld [vmem:[#allocation5 + $0x50] sm:$0xff]
    %v110 = vld [vmem:[#allocation5 + $0x58] sm:$0xff]
    %v111 = vld [vmem:[#allocation5 + $0x60] sm:$0xff]
    %v112 = vld [vmem:[#allocation5 + $0x68] sm:$0xff]
    %v113 = vld [vmem:[#allocation5 + $0x70] sm:$0xff]
    %v114 = vld [vmem:[#allocation5 + $0x78] sm:$0xff]
    %v115 = vld [vmem:[%s2] sm:$0x3]
    %v117 = vlaneseq
    %v118 = vshrl.u32 %v117, 7
    %v119 = vsub.s32 0, %v118
    %v120 = vrot.slane %v115, %v119
    %v121 = vlaneseq
    %v122 = vshrl.u32 %v121, 7
    %v123 = vsub.s32 1, %v122
    %v124 = vrot.slane %v115, %v123
    %v129 = vunpack.c.l.b16 %v97
    %v130 = vunpack.c.l.b16 %v98
    %v131 = vpack.c.b16 %v130, %v129
    %v149 = vunpack.c.l.b16 %v99
    %v150 = vunpack.c.h.b16 %v99
    %v151 = vunpack.c.l.b16 %v100
    %v152 = vunpack.c.h.b16 %v100
    %v153 = vunpack.c.l.b16 %v101
    %v154 = vunpack.c.h.b16 %v101
    %v155 = vunpack.c.l.b16 %v102
    %v156 = vunpack.c.h.b16 %v102
    %v157 = vunpack.c.l.b16 %v103
    %v158 = vunpack.c.h.b16 %v103
    %v159 = vunpack.c.l.b16 %v104
    %v160 = vunpack.c.h.b16 %v104
    %v161 = vunpack.c.l.b16 %v105
    %v162 = vunpack.c.h.b16 %v105
    %v163 = vunpack.c.l.b16 %v106
    %v164 = vunpack.c.h.b16 %v106
    %v165 = vunpack.c.l.b16 %v107
    %v166 = vunpack.c.h.b16 %v107
    %v167 = vunpack.c.l.b16 %v108
    %v168 = vunpack.c.h.b16 %v108
    %v169 = vunpack.c.l.b16 %v109
    %v170 = vunpack.c.h.b16 %v109
    %v171 = vunpack.c.l.b16 %v110
    %v172 = vunpack.c.h.b16 %v110
    %v173 = vunpack.c.l.b16 %v111
    %v174 = vunpack.c.h.b16 %v111
    %v175 = vunpack.c.l.b16 %v112
    %v176 = vunpack.c.h.b16 %v112
    %v177 = vunpack.c.l.b16 %v113
    %v178 = vunpack.c.h.b16 %v113
    %v179 = vunpack.c.l.b16 %v114
    %v180 = vunpack.c.h.b16 %v114
    %v181 = vpack.c.b16 %v151, %v149
    %v182 = vpack.c.b16 %v152, %v150
    %v183 = vpack.c.b16 %v155, %v153
    %v184 = vpack.c.b16 %v156, %v154
    %v185 = vpack.c.b16 %v159, %v157
    %v186 = vpack.c.b16 %v160, %v158
    %v187 = vpack.c.b16 %v163, %v161
    %v188 = vpack.c.b16 %v164, %v162
    %v189 = vpack.c.b16 %v167, %v165
    %v190 = vpack.c.b16 %v168, %v166
    %v191 = vpack.c.b16 %v171, %v169
    %v192 = vpack.c.b16 %v172, %v170
    %v193 = vpack.c.b16 %v175, %v173
    %v194 = vpack.c.b16 %v176, %v174
    %v195 = vpack.c.b16 %v179, %v177
    %v196 = vpack.c.b16 %v180, %v178
    %213 = vmatprep.subr.bf16.mxu0 %v196
    %214 = vmatpush1.bf16.msra.mxu0 %v195
    %215 = vmatprep.subr.bf16.mxu0 %v194
    %216 = vmatpush1.bf16.msra.mxu0 %v193
    %217 = vmatprep.subr.bf16.mxu0 %v192
    %218 = vmatpush1.bf16.msra.mxu0 %v191
    %219 = vmatprep.subr.bf16.mxu0 %v190
    %220 = vmatpush1.bf16.msra.mxu0 %v189
    %221 = vmatprep.subr.bf16.mxu0 %v188
    %222 = vmatpush1.bf16.msra.mxu0 %v187
    %223 = vmatprep.subr.bf16.mxu0 %v186
    %224 = vmatpush1.bf16.msra.mxu0 %v185
    %225 = vmatprep.subr.bf16.mxu0 %v184
    %226 = vmatpush1.bf16.msra.mxu0 %v183
    %227 = vmatprep.subr.bf16.mxu0 %v182
    %228 = vmatpush1.bf16.msra.mxu0 %v181
    %229 = vmatprep.subr.bf16.mxu0 0
    %230 = vmatpush2.bf16.msra.mxu0 0
    %231 = vmatprep.subr.bf16.mxu0 0
    %232 = vmatpush2.bf16.msra.mxu0 0
    %233 = vmatprep.subr.bf16.mxu0 0
    %234 = vmatpush2.bf16.msra.mxu0 0
    %235 = vmatprep.subr.bf16.mxu0 0
    %236 = vmatpush2.bf16.msra.mxu0 0
    %237 = vmatprep.subr.bf16.mxu0 0
    %238 = vmatpush2.bf16.msra.mxu0 0
    %239 = vmatprep.subr.bf16.mxu0 0
    %240 = vmatpush2.bf16.msra.mxu0 0
    %241 = vmatprep.subr.bf16.mxu0 0
    %242 = vmatpush2.bf16.msra.mxu0 0
    %243 = vmatprep.subr.bf16.mxu0 0
    %244 = vmatpush2.bf16.msra.mxu0 0
    %245 = vmatprep.mubr.bf16.mxu0 0
    %246 = vmatmul.mubr.bf16.gmra.mxu0 %v131
    %v247 = vpop.f32.mrf.mxu0
    %v248 = vadd.f32 %v120, %v247
    %v249 = vpop.f32.mrf.mxu0
    %v250 = vadd.f32 %v124, %v249
    %v251 = vpop.f32.mrf.mxu0
    %v252 = vadd.f32 %v120, %v251
    %v253 = vpop.f32.mrf.mxu0
    %v254 = vadd.f32 %v124, %v253
    %255 = vdwg.mxu0
    %v256 = vpack.c.bf16 %v252, %v248
    %v257 = vpack.c.bf16 %v254, %v250
    %v260 = vunpack.c.l.b16 %v256
    %v261 = vunpack.c.l.b16 %v257
    %v262 = vunpack.c.h.b16 %v256
    %v263 = vunpack.c.h.b16 %v257
    %v264 = vpack.c.b16 %v261, %v260
    %v265 = vpack.c.b16 %v263, %v262
    %268 = vst [vmem:[#allocation12] sm:$0xff] %v264
    %269 = vst [vmem:[#allocation12 + $0x8] sm:$0xff] %v265
    %v270 = vld [vmem:[#allocation7] sm:$0xff]
    %v271 = vld [vmem:[#allocation7 + $0x8] sm:$0xff]
    %v272 = vld [vmem:[#allocation7 + $0x10] sm:$0xff]
    %v273 = vld [vmem:[#allocation7 + $0x18] sm:$0xff]
    %v274 = vld [vmem:[#allocation7 + $0x20] sm:$0xff]
    %v275 = vld [vmem:[#allocation7 + $0x28] sm:$0xff]
    %v276 = vld [vmem:[#allocation7 + $0x30] sm:$0xff]
    %v277 = vld [vmem:[#allocation7 + $0x38] sm:$0xff]
    %v278 = vld [vmem:[#allocation7 + $0x40] sm:$0xff]
    %v279 = vld [vmem:[#allocation7 + $0x48] sm:$0xff]
    %v280 = vld [vmem:[#allocation7 + $0x50] sm:$0xff]
    %v281 = vld [vmem:[#allocation7 + $0x58] sm:$0xff]
    %v282 = vld [vmem:[#allocation7 + $0x60] sm:$0xff]
    %v283 = vld [vmem:[#allocation7 + $0x68] sm:$0xff]
    %v284 = vld [vmem:[#allocation7 + $0x70] sm:$0xff]
    %v285 = vld [vmem:[#allocation7 + $0x78] sm:$0xff]
    %v286 = vld [vmem:[#allocation7 + $0x80] sm:$0xff]
    %v287 = vld [vmem:[#allocation7 + $0x88] sm:$0xff]
    %v288 = vld [vmem:[#allocation7 + $0x90] sm:$0xff]
    %v289 = vld [vmem:[#allocation7 + $0x98] sm:$0xff]
    %v290 = vld [vmem:[#allocation7 + $0xa0] sm:$0xff]
    %v291 = vld [vmem:[#allocation7 + $0xa8] sm:$0xff]
    %v292 = vld [vmem:[#allocation7 + $0xb0] sm:$0xff]
    %v293 = vld [vmem:[#allocation7 + $0xb8] sm:$0xff]
    %v294 = vld [vmem:[#allocation7 + $0xc0] sm:$0xff]
    %v295 = vld [vmem:[#allocation7 + $0xc8] sm:$0xff]
    %v296 = vld [vmem:[#allocation7 + $0xd0] sm:$0xff]
    %v297 = vld [vmem:[#allocation7 + $0xd8] sm:$0xff]
    %v298 = vld [vmem:[#allocation7 + $0xe0] sm:$0xff]
    %v299 = vld [vmem:[#allocation7 + $0xe8] sm:$0xff]
    %v300 = vld [vmem:[#allocation7 + $0xf0] sm:$0xff]
    %v301 = vld [vmem:[#allocation7 + $0xf8] sm:$0xff]
    %v302 = vld [vmem:[#allocation7 + $0x100] sm:$0xff]
    %v303 = vld [vmem:[#allocation7 + $0x108] sm:$0xff]
    %v304 = vld [vmem:[#allocation7 + $0x110] sm:$0xff]
    %v305 = vld [vmem:[#allocation7 + $0x118] sm:$0xff]
    %v306 = vld [vmem:[#allocation7 + $0x120] sm:$0xff]
    %v307 = vld [vmem:[#allocation7 + $0x128] sm:$0xff]
    %v308 = vld [vmem:[#allocation7 + $0x130] sm:$0xff]
    %v309 = vld [vmem:[#allocation7 + $0x138] sm:$0xff]
    %v310 = vld [vmem:[#allocation7 + $0x140] sm:$0xff]
    %v311 = vld [vmem:[#allocation7 + $0x148] sm:$0xff]
    %v312 = vld [vmem:[#allocation7 + $0x150] sm:$0xff]
    %v313 = vld [vmem:[#allocation7 + $0x158] sm:$0xff]
    %v314 = vld [vmem:[#allocation7 + $0x160] sm:$0xff]
    %v315 = vld [vmem:[#allocation7 + $0x168] sm:$0xff]
    %v316 = vld [vmem:[#allocation7 + $0x170] sm:$0xff]
    %v317 = vld [vmem:[#allocation7 + $0x178] sm:$0xff]
    %v318 = vld [vmem:[#allocation7 + $0x180] sm:$0xff]
    %v319 = vld [vmem:[#allocation7 + $0x188] sm:$0xff]
    %v320 = vld [vmem:[#allocation7 + $0x190] sm:$0xff]
    %v321 = vld [vmem:[#allocation7 + $0x198] sm:$0xff]
    %v322 = vld [vmem:[#allocation7 + $0x1a0] sm:$0xff]
    %v323 = vld [vmem:[#allocation7 + $0x1a8] sm:$0xff]
    %v324 = vld [vmem:[#allocation7 + $0x1b0] sm:$0xff]
    %v325 = vld [vmem:[#allocation7 + $0x1b8] sm:$0xff]
    %v326 = vld [vmem:[#allocation7 + $0x1c0] sm:$0xff]
    %v327 = vld [vmem:[#allocation7 + $0x1c8] sm:$0xff]
    %v328 = vld [vmem:[#allocation7 + $0x1d0] sm:$0xff]
    %v329 = vld [vmem:[#allocation7 + $0x1d8] sm:$0xff]
    %v330 = vld [vmem:[#allocation7 + $0x1e0] sm:$0xff]
    %v331 = vld [vmem:[#allocation7 + $0x1e8] sm:$0xff]
    %v332 = vld [vmem:[#allocation7 + $0x1f0] sm:$0xff]
    %v333 = vld [vmem:[#allocation7 + $0x1f8] sm:$0xff]
    %v334 = vld [vmem:[#allocation7 + $0x200] sm:$0xff]
    %v335 = vld [vmem:[#allocation7 + $0x208] sm:$0xff]
    %v336 = vld [vmem:[#allocation7 + $0x210] sm:$0xff]
    %v337 = vld [vmem:[#allocation7 + $0x218] sm:$0xff]
    %v338 = vld [vmem:[#allocation7 + $0x220] sm:$0xff]
    %v339 = vld [vmem:[#allocation7 + $0x228] sm:$0xff]
    %v340 = vld [vmem:[#allocation7 + $0x230] sm:$0xff]
    %v341 = vld [vmem:[#allocation7 + $0x238] sm:$0xff]
    %v342 = vld [vmem:[#allocation7 + $0x240] sm:$0xff]
    %v343 = vld [vmem:[#allocation7 + $0x248] sm:$0xff]
    %v344 = vld [vmem:[#allocation7 + $0x250] sm:$0xff]
    %v345 = vld [vmem:[#allocation7 + $0x258] sm:$0xff]
    %v346 = vld [vmem:[#allocation7 + $0x260] sm:$0xff]
    %v347 = vld [vmem:[#allocation7 + $0x268] sm:$0xff]
    %v348 = vld [vmem:[#allocation7 + $0x270] sm:$0xff]
    %v349 = vld [vmem:[#allocation7 + $0x278] sm:$0xff]
    %v350 = vld [vmem:[#allocation7 + $0x280] sm:$0xff]
    %v351 = vld [vmem:[#allocation7 + $0x288] sm:$0xff]
    %v352 = vld [vmem:[#allocation7 + $0x290] sm:$0xff]
    %v353 = vld [vmem:[#allocation7 + $0x298] sm:$0xff]
    %v354 = vld [vmem:[#allocation7 + $0x2a0] sm:$0xff]
    %v355 = vld [vmem:[#allocation7 + $0x2a8] sm:$0xff]
    %v356 = vld [vmem:[#allocation7 + $0x2b0] sm:$0xff]
    %v357 = vld [vmem:[#allocation7 + $0x2b8] sm:$0xff]
    %v358 = vld [vmem:[#allocation7 + $0x2c0] sm:$0xff]
    %v359 = vld [vmem:[#allocation7 + $0x2c8] sm:$0xff]
    %v360 = vld [vmem:[#allocation7 + $0x2d0] sm:$0xff]
    %v361 = vld [vmem:[#allocation7 + $0x2d8] sm:$0xff]
    %v362 = vld [vmem:[#allocation7 + $0x2e0] sm:$0xff]
    %v363 = vld [vmem:[#allocation7 + $0x2e8] sm:$0xff]
    %v364 = vld [vmem:[#allocation7 + $0x2f0] sm:$0xff]
    %v365 = vld [vmem:[#allocation7 + $0x2f8] sm:$0xff]
    %v366 = vld [vmem:[#allocation7 + $0x300] sm:$0xff]
    %v367 = vld [vmem:[#allocation7 + $0x308] sm:$0xff]
    %v368 = vld [vmem:[#allocation7 + $0x310] sm:$0xff]
    %v369 = vld [vmem:[#allocation7 + $0x318] sm:$0xff]
    %v370 = vld [vmem:[#allocation7 + $0x320] sm:$0xff]
    %v371 = vld [vmem:[#allocation7 + $0x328] sm:$0xff]
    %v372 = vld [vmem:[#allocation7 + $0x330] sm:$0xff]
    %v373 = vld [vmem:[#allocation7 + $0x338] sm:$0xff]
    %v374 = vld [vmem:[#allocation7 + $0x340] sm:$0xff]
    %v375 = vld [vmem:[#allocation7 + $0x348] sm:$0xff]
    %v376 = vld [vmem:[#allocation7 + $0x350] sm:$0xff]
    %v377 = vld [vmem:[#allocation7 + $0x358] sm:$0xff]
    %v378 = vld [vmem:[#allocation7 + $0x360] sm:$0xff]
    %v379 = vld [vmem:[#allocation7 + $0x368] sm:$0xff]
    %v380 = vld [vmem:[#allocation7 + $0x370] sm:$0xff]
    %v381 = vld [vmem:[#allocation7 + $0x378] sm:$0xff]
    %v382 = vld [vmem:[#allocation7 + $0x380] sm:$0xff]
    %v383 = vld [vmem:[#allocation7 + $0x388] sm:$0xff]
    %v384 = vld [vmem:[#allocation7 + $0x390] sm:$0xff]
    %v385 = vld [vmem:[#allocation7 + $0x398] sm:$0xff]
    %v386 = vld [vmem:[#allocation7 + $0x3a0] sm:$0xff]
    %v387 = vld [vmem:[#allocation7 + $0x3a8] sm:$0xff]
    %v388 = vld [vmem:[#allocation7 + $0x3b0] sm:$0xff]
    %v389 = vld [vmem:[#allocation7 + $0x3b8] sm:$0xff]
    %v390 = vld [vmem:[#allocation7 + $0x3c0] sm:$0xff]
    %v391 = vld [vmem:[#allocation7 + $0x3c8] sm:$0xff]
    %v392 = vld [vmem:[#allocation7 + $0x3d0] sm:$0xff]
    %v393 = vld [vmem:[#allocation7 + $0x3d8] sm:$0xff]
    %v394 = vld [vmem:[#allocation7 + $0x3e0] sm:$0xff]
    %v395 = vld [vmem:[#allocation7 + $0x3e8] sm:$0xff]
    %v396 = vld [vmem:[#allocation7 + $0x3f0] sm:$0xff]
    %v397 = vld [vmem:[#allocation7 + $0x3f8] sm:$0xff]
    %v398 = vld [vmem:[#allocation8] sm:$0xff]
    %v400 = vlaneseq
    %v401 = vshrl.u32 %v400, 7
    %v402 = vsub.s32 0, %v401
    %v403 = vrot.slane %v398, %v402
    %v404 = vlaneseq
    %v405 = vshrl.u32 %v404, 7
    %v406 = vsub.s32 1, %v405
    %v407 = vrot.slane %v398, %v406
    %v408 = vlaneseq
    %v409 = vshrl.u32 %v408, 7
    %v410 = vsub.s32 2, %v409
    %v411 = vrot.slane %v398, %v410
    %v412 = vlaneseq
    %v413 = vshrl.u32 %v412, 7
    %v414 = vsub.s32 3, %v413
    %v415 = vrot.slane %v398, %v414
    %v416 = vlaneseq
    %v417 = vshrl.u32 %v416, 7
    %v418 = vsub.s32 4, %v417
    %v419 = vrot.slane %v398, %v418
    %v420 = vlaneseq
    %v421 = vshrl.u32 %v420, 7
    %v422 = vsub.s32 5, %v421
    %v423 = vrot.slane %v398, %v422
    %v424 = vlaneseq
    %v425 = vshrl.u32 %v424, 7
    %v426 = vsub.s32 6, %v425
    %v427 = vrot.slane %v398, %v426
    %v428 = vlaneseq
    %v429 = vshrl.u32 %v428, 7
    %v430 = vsub.s32 7, %v429
    %v431 = vrot.slane %v398, %v430
    %v568 = vunpack.c.l.b16 %v270
    %v569 = vunpack.c.h.b16 %v270
    %v570 = vunpack.c.l.b16 %v271
    %v571 = vunpack.c.h.b16 %v271
    %v572 = vunpack.c.l.b16 %v272
    %v573 = vunpack.c.h.b16 %v272
    %v574 = vunpack.c.l.b16 %v273
    %v575 = vunpack.c.h.b16 %v273
    %v576 = vunpack.c.l.b16 %v274
    %v577 = vunpack.c.h.b16 %v274
    %v578 = vunpack.c.l.b16 %v275
    %v579 = vunpack.c.h.b16 %v275
    %v580 = vunpack.c.l.b16 %v276
    %v581 = vunpack.c.h.b16 %v276
    %v582 = vunpack.c.l.b16 %v277
    %v583 = vunpack.c.h.b16 %v277
    %v584 = vunpack.c.l.b16 %v278
    %v585 = vunpack.c.h.b16 %v278
    %v586 = vunpack.c.l.b16 %v279
    %v587 = vunpack.c.h.b16 %v279
    %v588 = vunpack.c.l.b16 %v280
    %v589 = vunpack.c.h.b16 %v280
    %v590 = vunpack.c.l.b16 %v281
    %v591 = vunpack.c.h.b16 %v281
    %v592 = vunpack.c.l.b16 %v282
    %v593 = vunpack.c.h.b16 %v282
    %v594 = vunpack.c.l.b16 %v283
    %v595 = vunpack.c.h.b16 %v283
    %v596 = vunpack.c.l.b16 %v284
    %v597 = vunpack.c.h.b16 %v284
    %v598 = vunpack.c.l.b16 %v285
    %v599 = vunpack.c.h.b16 %v285
    %v600 = vunpack.c.l.b16 %v286
    %v601 = vunpack.c.h.b16 %v286
    %v602 = vunpack.c.l.b16 %v287
    %v603 = vunpack.c.h.b16 %v287
    %v604 = vunpack.c.l.b16 %v288
    %v605 = vunpack.c.h.b16 %v288
    %v606 = vunpack.c.l.b16 %v289
    %v607 = vunpack.c.h.b16 %v289
    %v608 = vunpack.c.l.b16 %v290
    %v609 = vunpack.c.h.b16 %v290
    %v610 = vunpack.c.l.b16 %v291
    %v611 = vunpack.c.h.b16 %v291
    %v612 = vunpack.c.l.b16 %v292
    %v613 = vunpack.c.h.b16 %v292
    %v614 = vunpack.c.l.b16 %v293
    %v615 = vunpack.c.h.b16 %v293
    %v616 = vunpack.c.l.b16 %v294
    %v617 = vunpack.c.h.b16 %v294
    %v618 = vunpack.c.l.b16 %v295
    %v619 = vunpack.c.h.b16 %v295
    %v620 = vunpack.c.l.b16 %v296
    %v621 = vunpack.c.h.b16 %v296
    %v622 = vunpack.c.l.b16 %v297
    %v623 = vunpack.c.h.b16 %v297
    %v624 = vunpack.c.l.b16 %v298
    %v625 = vunpack.c.h.b16 %v298
    %v626 = vunpack.c.l.b16 %v299
    %v627 = vunpack.c.h.b16 %v299
    %v628 = vunpack.c.l.b16 %v300
    %v629 = vunpack.c.h.b16 %v300
    %v630 = vunpack.c.l.b16 %v301
    %v631 = vunpack.c.h.b16 %v301
    %v632 = vunpack.c.l.b16 %v302
    %v633 = vunpack.c.h.b16 %v302
    %v634 = vunpack.c.l.b16 %v303
    %v635 = vunpack.c.h.b16 %v303
    %v636 = vunpack.c.l.b16 %v304
    %v637 = vunpack.c.h.b16 %v304
    %v638 = vunpack.c.l.b16 %v305
    %v639 = vunpack.c.h.b16 %v305
    %v640 = vunpack.c.l.b16 %v306
    %v641 = vunpack.c.h.b16 %v306
    %v642 = vunpack.c.l.b16 %v307
    %v643 = vunpack.c.h.b16 %v307
    %v644 = vunpack.c.l.b16 %v308
    %v645 = vunpack.c.h.b16 %v308
    %v646 = vunpack.c.l.b16 %v309
    %v647 = vunpack.c.h.b16 %v309
    %v648 = vunpack.c.l.b16 %v310
    %v649 = vunpack.c.h.b16 %v310
    %v650 = vunpack.c.l.b16 %v311
    %v651 = vunpack.c.h.b16 %v311
    %v652 = vunpack.c.l.b16 %v312
    %v653 = vunpack.c.h.b16 %v312
    %v654 = vunpack.c.l.b16 %v313
    %v655 = vunpack.c.h.b16 %v313
    %v656 = vunpack.c.l.b16 %v314
    %v657 = vunpack.c.h.b16 %v314
    %v658 = vunpack.c.l.b16 %v315
    %v659 = vunpack.c.h.b16 %v315
    %v660 = vunpack.c.l.b16 %v316
    %v661 = vunpack.c.h.b16 %v316
    %v662 = vunpack.c.l.b16 %v317
    %v663 = vunpack.c.h.b16 %v317
    %v664 = vunpack.c.l.b16 %v318
    %v665 = vunpack.c.h.b16 %v318
    %v666 = vunpack.c.l.b16 %v319
    %v667 = vunpack.c.h.b16 %v319
    %v668 = vunpack.c.l.b16 %v320
    %v669 = vunpack.c.h.b16 %v320
    %v670 = vunpack.c.l.b16 %v321
    %v671 = vunpack.c.h.b16 %v321
    %v672 = vunpack.c.l.b16 %v322
    %v673 = vunpack.c.h.b16 %v322
    %v674 = vunpack.c.l.b16 %v323
    %v675 = vunpack.c.h.b16 %v323
    %v676 = vunpack.c.l.b16 %v324
    %v677 = vunpack.c.h.b16 %v324
    %v678 = vunpack.c.l.b16 %v325
    %v679 = vunpack.c.h.b16 %v325
    %v680 = vunpack.c.l.b16 %v326
    %v681 = vunpack.c.h.b16 %v326
    %v682 = vunpack.c.l.b16 %v327
    %v683 = vunpack.c.h.b16 %v327
    %v684 = vunpack.c.l.b16 %v328
    %v685 = vunpack.c.h.b16 %v328
    %v686 = vunpack.c.l.b16 %v329
    %v687 = vunpack.c.h.b16 %v329
    %v688 = vunpack.c.l.b16 %v330
    %v689 = vunpack.c.h.b16 %v330
    %v690 = vunpack.c.l.b16 %v331
    %v691 = vunpack.c.h.b16 %v331
    %v692 = vunpack.c.l.b16 %v332
    %v693 = vunpack.c.h.b16 %v332
    %v694 = vunpack.c.l.b16 %v333
    %v695 = vunpack.c.h.b16 %v333
    %v696 = vunpack.c.l.b16 %v334
    %v697 = vunpack.c.h.b16 %v334
    %v698 = vunpack.c.l.b16 %v335
    %v699 = vunpack.c.h.b16 %v335
    %v700 = vunpack.c.l.b16 %v336
    %v701 = vunpack.c.h.b16 %v336
    %v702 = vunpack.c.l.b16 %v337
    %v703 = vunpack.c.h.b16 %v337
    %v704 = vunpack.c.l.b16 %v338
    %v705 = vunpack.c.h.b16 %v338
    %v706 = vunpack.c.l.b16 %v339
    %v707 = vunpack.c.h.b16 %v339
    %v708 = vunpack.c.l.b16 %v340
    %v709 = vunpack.c.h.b16 %v340
    %v710 = vunpack.c.l.b16 %v341
    %v711 = vunpack.c.h.b16 %v341
    %v712 = vunpack.c.l.b16 %v342
    %v713 = vunpack.c.h.b16 %v342
    %v714 = vunpack.c.l.b16 %v343
    %v715 = vunpack.c.h.b16 %v343
    %v716 = vunpack.c.l.b16 %v344
    %v717 = vunpack.c.h.b16 %v344
    %v718 = vunpack.c.l.b16 %v345
    %v719 = vunpack.c.h.b16 %v345
    %v720 = vunpack.c.l.b16 %v346
    %v721 = vunpack.c.h.b16 %v346
    %v722 = vunpack.c.l.b16 %v347
    %v723 = vunpack.c.h.b16 %v347
    %v724 = vunpack.c.l.b16 %v348
    %v725 = vunpack.c.h.b16 %v348
    %v726 = vunpack.c.l.b16 %v349
    %v727 = vunpack.c.h.b16 %v349
    %v728 = vunpack.c.l.b16 %v350
    %v729 = vunpack.c.h.b16 %v350
    %v730 = vunpack.c.l.b16 %v351
    %v731 = vunpack.c.h.b16 %v351
    %v732 = vunpack.c.l.b16 %v352
    %v733 = vunpack.c.h.b16 %v352
    %v734 = vunpack.c.l.b16 %v353
    %v735 = vunpack.c.h.b16 %v353
    %v736 = vunpack.c.l.b16 %v354
    %v737 = vunpack.c.h.b16 %v354
    %v738 = vunpack.c.l.b16 %v355
    %v739 = vunpack.c.h.b16 %v355
    %v740 = vunpack.c.l.b16 %v356
    %v741 = vunpack.c.h.b16 %v356
    %v742 = vunpack.c.l.b16 %v357
    %v743 = vunpack.c.h.b16 %v357
    %v744 = vunpack.c.l.b16 %v358
    %v745 = vunpack.c.h.b16 %v358
    %v746 = vunpack.c.l.b16 %v359
    %v747 = vunpack.c.h.b16 %v359
    %v748 = vunpack.c.l.b16 %v360
    %v749 = vunpack.c.h.b16 %v360
    %v750 = vunpack.c.l.b16 %v361
    %v751 = vunpack.c.h.b16 %v361
    %v752 = vunpack.c.l.b16 %v362
    %v753 = vunpack.c.h.b16 %v362
    %v754 = vunpack.c.l.b16 %v363
    %v755 = vunpack.c.h.b16 %v363
    %v756 = vunpack.c.l.b16 %v364
    %v757 = vunpack.c.h.b16 %v364
    %v758 = vunpack.c.l.b16 %v365
    %v759 = vunpack.c.h.b16 %v365
    %v760 = vunpack.c.l.b16 %v366
    %v761 = vunpack.c.h.b16 %v366
    %v762 = vunpack.c.l.b16 %v367
    %v763 = vunpack.c.h.b16 %v367
    %v764 = vunpack.c.l.b16 %v368
    %v765 = vunpack.c.h.b16 %v368
    %v766 = vunpack.c.l.b16 %v369
    %v767 = vunpack.c.h.b16 %v369
    %v768 = vunpack.c.l.b16 %v370
    %v769 = vunpack.c.h.b16 %v370
    %v770 = vunpack.c.l.b16 %v371
    %v771 = vunpack.c.h.b16 %v371
    %v772 = vunpack.c.l.b16 %v372
    %v773 = vunpack.c.h.b16 %v372
    %v774 = vunpack.c.l.b16 %v373
    %v775 = vunpack.c.h.b16 %v373
    %v776 = vunpack.c.l.b16 %v374
    %v777 = vunpack.c.h.b16 %v374
    %v778 = vunpack.c.l.b16 %v375
    %v779 = vunpack.c.h.b16 %v375
    %v780 = vunpack.c.l.b16 %v376
    %v781 = vunpack.c.h.b16 %v376
    %v782 = vunpack.c.l.b16 %v377
    %v783 = vunpack.c.h.b16 %v377
    %v784 = vunpack.c.l.b16 %v378
    %v785 = vunpack.c.h.b16 %v378
    %v786 = vunpack.c.l.b16 %v379
    %v787 = vunpack.c.h.b16 %v379
    %v788 = vunpack.c.l.b16 %v380
    %v789 = vunpack.c.h.b16 %v380
    %v790 = vunpack.c.l.b16 %v381
    %v791 = vunpack.c.h.b16 %v381
    %v792 = vunpack.c.l.b16 %v382
    %v793 = vunpack.c.h.b16 %v382
    %v794 = vunpack.c.l.b16 %v383
    %v795 = vunpack.c.h.b16 %v383
    %v796 = vunpack.c.l.b16 %v384
    %v797 = vunpack.c.h.b16 %v384
    %v798 = vunpack.c.l.b16 %v385
    %v799 = vunpack.c.h.b16 %v385
    %v800 = vunpack.c.l.b16 %v386
    %v801 = vunpack.c.h.b16 %v386
    %v802 = vunpack.c.l.b16 %v387
    %v803 = vunpack.c.h.b16 %v387
    %v804 = vunpack.c.l.b16 %v388
    %v805 = vunpack.c.h.b16 %v388
    %v806 = vunpack.c.l.b16 %v389
    %v807 = vunpack.c.h.b16 %v389
    %v808 = vunpack.c.l.b16 %v390
    %v809 = vunpack.c.h.b16 %v390
    %v810 = vunpack.c.l.b16 %v391
    %v811 = vunpack.c.h.b16 %v391
    %v812 = vunpack.c.l.b16 %v392
    %v813 = vunpack.c.h.b16 %v392
    %v814 = vunpack.c.l.b16 %v393
    %v815 = vunpack.c.h.b16 %v393
    %v816 = vunpack.c.l.b16 %v394
    %v817 = vunpack.c.h.b16 %v394
    %v818 = vunpack.c.l.b16 %v395
    %v819 = vunpack.c.h.b16 %v395
    %v820 = vunpack.c.l.b16 %v396
    %v821 = vunpack.c.h.b16 %v396
    %v822 = vunpack.c.l.b16 %v397
    %v823 = vunpack.c.h.b16 %v397
    %v824 = vpack.c.b16 %v576, %v568
    %v825 = vpack.c.b16 %v577, %v569
    %v826 = vpack.c.b16 %v578, %v570
    %v827 = vpack.c.b16 %v579, %v571
    %v828 = vpack.c.b16 %v580, %v572
    %v829 = vpack.c.b16 %v581, %v573
    %v830 = vpack.c.b16 %v582, %v574
    %v831 = vpack.c.b16 %v583, %v575
    %v832 = vpack.c.b16 %v592, %v584
    %v833 = vpack.c.b16 %v593, %v585
    %v834 = vpack.c.b16 %v594, %v586
    %v835 = vpack.c.b16 %v595, %v587
    %v836 = vpack.c.b16 %v596, %v588
    %v837 = vpack.c.b16 %v597, %v589
    %v838 = vpack.c.b16 %v598, %v590
    %v839 = vpack.c.b16 %v599, %v591
    %v840 = vpack.c.b16 %v608, %v600
    %v841 = vpack.c.b16 %v609, %v601
    %v842 = vpack.c.b16 %v610, %v602
    %v843 = vpack.c.b16 %v611, %v603
    %v844 = vpack.c.b16 %v612, %v604
    %v845 = vpack.c.b16 %v613, %v605
    %v846 = vpack.c.b16 %v614, %v606
    %v847 = vpack.c.b16 %v615, %v607
    %v848 = vpack.c.b16 %v624, %v616
    %v849 = vpack.c.b16 %v625, %v617
    %v850 = vpack.c.b16 %v626, %v618
    %v851 = vpack.c.b16 %v627, %v619
    %v852 = vpack.c.b16 %v628, %v620
    %v853 = vpack.c.b16 %v629, %v621
    %v854 = vpack.c.b16 %v630, %v622
    %v855 = vpack.c.b16 %v631, %v623
    %v856 = vpack.c.b16 %v640, %v632
    %v857 = vpack.c.b16 %v641, %v633
    %v858 = vpack.c.b16 %v642, %v634
    %v859 = vpack.c.b16 %v643, %v635
    %v860 = vpack.c.b16 %v644, %v636
    %v861 = vpack.c.b16 %v645, %v637
    %v862 = vpack.c.b16 %v646, %v638
    %v863 = vpack.c.b16 %v647, %v639
    %v864 = vpack.c.b16 %v656, %v648
    %v865 = vpack.c.b16 %v657, %v649
    %v866 = vpack.c.b16 %v658, %v650
    %v867 = vpack.c.b16 %v659, %v651
    %v868 = vpack.c.b16 %v660, %v652
    %v869 = vpack.c.b16 %v661, %v653
    %v870 = vpack.c.b16 %v662, %v654
    %v871 = vpack.c.b16 %v663, %v655
    %v872 = vpack.c.b16 %v672, %v664
    %v873 = vpack.c.b16 %v673, %v665
    %v874 = vpack.c.b16 %v674, %v666
    %v875 = vpack.c.b16 %v675, %v667
    %v876 = vpack.c.b16 %v676, %v668
    %v877 = vpack.c.b16 %v677, %v669
    %v878 = vpack.c.b16 %v678, %v670
    %v879 = vpack.c.b16 %v679, %v671
    %v880 = vpack.c.b16 %v688, %v680
    %v881 = vpack.c.b16 %v689, %v681
    %v882 = vpack.c.b16 %v690, %v682
    %v883 = vpack.c.b16 %v691, %v683
    %v884 = vpack.c.b16 %v692, %v684
    %v885 = vpack.c.b16 %v693, %v685
    %v886 = vpack.c.b16 %v694, %v686
    %v887 = vpack.c.b16 %v695, %v687
    %v888 = vpack.c.b16 %v704, %v696
    %v889 = vpack.c.b16 %v705, %v697
    %v890 = vpack.c.b16 %v706, %v698
    %v891 = vpack.c.b16 %v707, %v699
    %v892 = vpack.c.b16 %v708, %v700
    %v893 = vpack.c.b16 %v709, %v701
    %v894 = vpack.c.b16 %v710, %v702
    %v895 = vpack.c.b16 %v711, %v703
    %v896 = vpack.c.b16 %v720, %v712
    %v897 = vpack.c.b16 %v721, %v713
    %v898 = vpack.c.b16 %v722, %v714
    %v899 = vpack.c.b16 %v723, %v715
    %v900 = vpack.c.b16 %v724, %v716
    %v901 = vpack.c.b16 %v725, %v717
    %v902 = vpack.c.b16 %v726, %v718
    %v903 = vpack.c.b16 %v727, %v719
    %v904 = vpack.c.b16 %v736, %v728
    %v905 = vpack.c.b16 %v737, %v729
    %v906 = vpack.c.b16 %v738, %v730
    %v907 = vpack.c.b16 %v739, %v731
    %v908 = vpack.c.b16 %v740, %v732
    %v909 = vpack.c.b16 %v741, %v733
    %v910 = vpack.c.b16 %v742, %v734
    %v911 = vpack.c.b16 %v743, %v735
    %v912 = vpack.c.b16 %v752, %v744
    %v913 = vpack.c.b16 %v753, %v745
    %v914 = vpack.c.b16 %v754, %v746
    %v915 = vpack.c.b16 %v755, %v747
    %v916 = vpack.c.b16 %v756, %v748
    %v917 = vpack.c.b16 %v757, %v749
    %v918 = vpack.c.b16 %v758, %v750
    %v919 = vpack.c.b16 %v759, %v751
    %v920 = vpack.c.b16 %v768, %v760
    %v921 = vpack.c.b16 %v769, %v761
    %v922 = vpack.c.b16 %v770, %v762
    %v923 = vpack.c.b16 %v771, %v763
    %v924 = vpack.c.b16 %v772, %v764
    %v925 = vpack.c.b16 %v773, %v765
    %v926 = vpack.c.b16 %v774, %v766
    %v927 = vpack.c.b16 %v775, %v767
    %v928 = vpack.c.b16 %v784, %v776
    %v929 = vpack.c.b16 %v785, %v777
    %v930 = vpack.c.b16 %v786, %v778
    %v931 = vpack.c.b16 %v787, %v779
    %v932 = vpack.c.b16 %v788, %v780
    %v933 = vpack.c.b16 %v789, %v781
    %v934 = vpack.c.b16 %v790, %v782
    %v935 = vpack.c.b16 %v791, %v783
    %v936 = vpack.c.b16 %v800, %v792
    %v937 = vpack.c.b16 %v801, %v793
    %v938 = vpack.c.b16 %v802, %v794
    %v939 = vpack.c.b16 %v803, %v795
    %v940 = vpack.c.b16 %v804, %v796
    %v941 = vpack.c.b16 %v805, %v797
    %v942 = vpack.c.b16 %v806, %v798
    %v943 = vpack.c.b16 %v807, %v799
    %v944 = vpack.c.b16 %v816, %v808
    %v945 = vpack.c.b16 %v817, %v809
    %v946 = vpack.c.b16 %v818, %v810
    %v947 = vpack.c.b16 %v819, %v811
    %v948 = vpack.c.b16 %v820, %v812
    %v949 = vpack.c.b16 %v821, %v813
    %v950 = vpack.c.b16 %v822, %v814
    %v951 = vpack.c.b16 %v823, %v815
    %1080 = vmatprep.subr.bf16.mxu0 %v881
    %1081 = vmatpush1.bf16.msra.mxu0 %v880
    %1082 = vmatprep.subr.bf16.mxu0 %v873
    %1083 = vmatpush1.bf16.msra.mxu0 %v872
    %1084 = vmatprep.subr.bf16.mxu0 %v865
    %1085 = vmatpush1.bf16.msra.mxu0 %v864
    %1086 = vmatprep.subr.bf16.mxu0 %v857
    %1087 = vmatpush1.bf16.msra.mxu0 %v856
    %1088 = vmatprep.subr.bf16.mxu0 %v849
    %1089 = vmatpush1.bf16.msra.mxu0 %v848
    %1090 = vmatprep.subr.bf16.mxu0 %v841
    %1091 = vmatpush1.bf16.msra.mxu0 %v840
    %1092 = vmatprep.subr.bf16.mxu0 %v833
    %1093 = vmatpush1.bf16.msra.mxu0 %v832
    %1094 = vmatprep.subr.bf16.mxu0 %v825
    %1095 = vmatpush1.bf16.msra.mxu0 %v824
    %1096 = vmatprep.subr.bf16.mxu0 %v945
    %1097 = vmatpush2.bf16.msra.mxu0 %v944
    %1098 = vmatprep.subr.bf16.mxu0 %v937
    %1099 = vmatpush2.bf16.msra.mxu0 %v936
    %1100 = vmatprep.subr.bf16.mxu0 %v929
    %1101 = vmatpush2.bf16.msra.mxu0 %v928
    %1102 = vmatprep.subr.bf16.mxu0 %v921
    %1103 = vmatpush2.bf16.msra.mxu0 %v920
    %1104 = vmatprep.subr.bf16.mxu0 %v913
    %1105 = vmatpush2.bf16.msra.mxu0 %v912
    %1106 = vmatprep.subr.bf16.mxu0 %v905
    %1107 = vmatpush2.bf16.msra.mxu0 %v904
    %1108 = vmatprep.subr.bf16.mxu0 %v897
    %1109 = vmatpush2.bf16.msra.mxu0 %v896
    %1110 = vmatprep.subr.bf16.mxu0 %v889
    %1111 = vmatpush2.bf16.msra.mxu0 %v888
    %1112 = vmatprep.mubr.bf16.mxu0 %v257
    %1113 = vmatmul.mubr.bf16.gmra.mxu0 %v256
    %v1114 = vpop.f32.mrf.mxu0
    %v1115 = vadd.f32 %v403, %v1114
    %v1116 = vpop.f32.mrf.mxu0
    %v1117 = vadd.f32 %v407, %v1116
    %v1118 = vpop.f32.mrf.mxu0
    %v1119 = vadd.f32 %v403, %v1118
    %v1120 = vpop.f32.mrf.mxu0
    %v1121 = vadd.f32 %v407, %v1120
    %1122 = vdwg.mxu0
    %1123 = vmatprep.subr.bf16.mxu0 %v883
    %1124 = vmatpush1.bf16.msra.mxu0 %v882
    %1125 = vmatprep.subr.bf16.mxu0 %v875
    %1126 = vmatpush1.bf16.msra.mxu0 %v874
    %1127 = vmatprep.subr.bf16.mxu0 %v867
    %1128 = vmatpush1.bf16.msra.mxu0 %v866
    %1129 = vmatprep.subr.bf16.mxu0 %v859
    %1130 = vmatpush1.bf16.msra.mxu0 %v858
    %1131 = vmatprep.subr.bf16.mxu0 %v851
    %1132 = vmatpush1.bf16.msra.mxu0 %v850
    %1133 = vmatprep.subr.bf16.mxu0 %v843
    %1134 = vmatpush1.bf16.msra.mxu0 %v842
    %1135 = vmatprep.subr.bf16.mxu0 %v835
    %1136 = vmatpush1.bf16.msra.mxu0 %v834
    %1137 = vmatprep.subr.bf16.mxu0 %v827
    %1138 = vmatpush1.bf16.msra.mxu0 %v826
    %1139 = vmatprep.subr.bf16.mxu0 %v947
    %1140 = vmatpush2.bf16.msra.mxu0 %v946
    %1141 = vmatprep.subr.bf16.mxu0 %v939
    %1142 = vmatpush2.bf16.msra.mxu0 %v938
    %1143 = vmatprep.subr.bf16.mxu0 %v931
    %1144 = vmatpush2.bf16.msra.mxu0 %v930
    %1145 = vmatprep.subr.bf16.mxu0 %v923
    %1146 = vmatpush2.bf16.msra.mxu0 %v922
    %1147 = vmatprep.subr.bf16.mxu0 %v915
    %1148 = vmatpush2.bf16.msra.mxu0 %v914
    %1149 = vmatprep.subr.bf16.mxu0 %v907
    %1150 = vmatpush2.bf16.msra.mxu0 %v906
    %1151 = vmatprep.subr.bf16.mxu0 %v899
    %1152 = vmatpush2.bf16.msra.mxu0 %v898
    %1153 = vmatprep.subr.bf16.mxu0 %v891
    %1154 = vmatpush2.bf16.msra.mxu0 %v890
    %1155 = vmatprep.mubr.bf16.mxu0 %v257
    %1156 = vmatmul.mubr.bf16.gmra.mxu0 %v256
    %v1157 = vpop.f32.mrf.mxu0
    %v1158 = vadd.f32 %v411, %v1157
    %v1159 = vpop.f32.mrf.mxu0
    %v1160 = vadd.f32 %v415, %v1159
    %v1161 = vpop.f32.mrf.mxu0
    %v1162 = vadd.f32 %v411, %v1161
    %v1163 = vpop.f32.mrf.mxu0
    %v1164 = vadd.f32 %v415, %v1163
    %1165 = vdwg.mxu0
    %1166 = vmatprep.subr.bf16.mxu0 %v885
    %1167 = vmatpush1.bf16.msra.mxu0 %v884
    %1168 = vmatprep.subr.bf16.mxu0 %v877
    %1169 = vmatpush1.bf16.msra.mxu0 %v876
    %1170 = vmatprep.subr.bf16.mxu0 %v869
    %1171 = vmatpush1.bf16.msra.mxu0 %v868
    %1172 = vmatprep.subr.bf16.mxu0 %v861
    %1173 = vmatpush1.bf16.msra.mxu0 %v860
    %1174 = vmatprep.subr.bf16.mxu0 %v853
    %1175 = vmatpush1.bf16.msra.mxu0 %v852
    %1176 = vmatprep.subr.bf16.mxu0 %v845
    %1177 = vmatpush1.bf16.msra.mxu0 %v844
    %1178 = vmatprep.subr.bf16.mxu0 %v837
    %1179 = vmatpush1.bf16.msra.mxu0 %v836
    %1180 = vmatprep.subr.bf16.mxu0 %v829
    %1181 = vmatpush1.bf16.msra.mxu0 %v828
    %1182 = vmatprep.subr.bf16.mxu0 %v949
    %1183 = vmatpush2.bf16.msra.mxu0 %v948
    %1184 = vmatprep.subr.bf16.mxu0 %v941
    %1185 = vmatpush2.bf16.msra.mxu0 %v940
    %1186 = vmatprep.subr.bf16.mxu0 %v933
    %1187 = vmatpush2.bf16.msra.mxu0 %v932
    %1188 = vmatprep.subr.bf16.mxu0 %v925
    %1189 = vmatpush2.bf16.msra.mxu0 %v924
    %1190 = vmatprep.subr.bf16.mxu0 %v917
    %1191 = vmatpush2.bf16.msra.mxu0 %v916
    %1192 = vmatprep.subr.bf16.mxu0 %v909
    %1193 = vmatpush2.bf16.msra.mxu0 %v908
    %1194 = vmatprep.subr.bf16.mxu0 %v901
    %1195 = vmatpush2.bf16.msra.mxu0 %v900
    %1196 = vmatprep.subr.bf16.mxu0 %v893
    %1197 = vmatpush2.bf16.msra.mxu0 %v892
    %1198 = vmatprep.mubr.bf16.mxu0 %v257
    %1199 = vmatmul.mubr.bf16.gmra.mxu0 %v256
    %v1200 = vpop.f32.mrf.mxu0
    %v1201 = vadd.f32 %v419, %v1200
    %v1202 = vpop.f32.mrf.mxu0
    %v1203 = vadd.f32 %v423, %v1202
    %v1204 = vpop.f32.mrf.mxu0
    %v1205 = vadd.f32 %v419, %v1204
    %v1206 = vpop.f32.mrf.mxu0
    %v1207 = vadd.f32 %v423, %v1206
    %1208 = vdwg.mxu0
    %1209 = vmatprep.subr.bf16.mxu0 %v887
    %1210 = vmatpush1.bf16.msra.mxu0 %v886
    %1211 = vmatprep.subr.bf16.mxu0 %v879
    %1212 = vmatpush1.bf16.msra.mxu0 %v878
    %1213 = vmatprep.subr.bf16.mxu0 %v871
    %1214 = vmatpush1.bf16.msra.mxu0 %v870
    %1215 = vmatprep.subr.bf16.mxu0 %v863
    %1216 = vmatpush1.bf16.msra.mxu0 %v862
    %1217 = vmatprep.subr.bf16.mxu0 %v855
    %1218 = vmatpush1.bf16.msra.mxu0 %v854
    %1219 = vmatprep.subr.bf16.mxu0 %v847
    %1220 = vmatpush1.bf16.msra.mxu0 %v846
    %1221 = vmatprep.subr.bf16.mxu0 %v839
    %1222 = vmatpush1.bf16.msra.mxu0 %v838
    %1223 = vmatprep.subr.bf16.mxu0 %v831
    %1224 = vmatpush1.bf16.msra.mxu0 %v830
    %1225 = vmatprep.subr.bf16.mxu0 %v951
    %1226 = vmatpush2.bf16.msra.mxu0 %v950
    %1227 = vmatprep.subr.bf16.mxu0 %v943
    %1228 = vmatpush2.bf16.msra.mxu0 %v942
    %1229 = vmatprep.subr.bf16.mxu0 %v935
    %1230 = vmatpush2.bf16.msra.mxu0 %v934
    %1231 = vmatprep.subr.bf16.mxu0 %v927
    %1232 = vmatpush2.bf16.msra.mxu0 %v926
    %1233 = vmatprep.subr.bf16.mxu0 %v919
    %1234 = vmatpush2.bf16.msra.mxu0 %v918
    %1235 = vmatprep.subr.bf16.mxu0 %v911
    %1236 = vmatpush2.bf16.msra.mxu0 %v910
    %1237 = vmatprep.subr.bf16.mxu0 %v903
    %1238 = vmatpush2.bf16.msra.mxu0 %v902
    %1239 = vmatprep.subr.bf16.mxu0 %v895
    %1240 = vmatpush2.bf16.msra.mxu0 %v894
    %1241 = vmatprep.mubr.bf16.mxu0 %v257
    %1242 = vmatmul.mubr.bf16.gmra.mxu0 %v256
    %v1243 = vpop.f32.mrf.mxu0
    %v1244 = vadd.f32 %v427, %v1243
    %v1245 = vpop.f32.mrf.mxu0
    %v1246 = vadd.f32 %v431, %v1245
    %v1247 = vpop.f32.mrf.mxu0
    %v1248 = vadd.f32 %v427, %v1247
    %v1249 = vpop.f32.mrf.mxu0
    %v1250 = vadd.f32 %v431, %v1249
    %1251 = vdwg.mxu0
    %v1252 = vmax.f32 %v1115, 0.0
    %v1253 = vmax.f32 %v1117, 0.0
    %v1254 = vmax.f32 %v1158, 0.0
    %v1255 = vmax.f32 %v1160, 0.0
    %v1256 = vmax.f32 %v1201, 0.0
    %v1257 = vmax.f32 %v1203, 0.0
    %v1258 = vmax.f32 %v1244, 0.0
    %v1259 = vmax.f32 %v1246, 0.0
    %v1260 = vmax.f32 %v1119, 0.0
    %v1261 = vmax.f32 %v1121, 0.0
    %v1262 = vmax.f32 %v1162, 0.0
    %v1263 = vmax.f32 %v1164, 0.0
    %v1264 = vmax.f32 %v1205, 0.0
    %v1265 = vmax.f32 %v1207, 0.0
    %v1266 = vmax.f32 %v1248, 0.0
    %v1267 = vmax.f32 %v1250, 0.0
    %v1268 = vpack.c.bf16 %v1260, %v1252
    %v1269 = vpack.c.bf16 %v1261, %v1253
    %v1270 = vpack.c.bf16 %v1262, %v1254
    %v1271 = vpack.c.bf16 %v1263, %v1255
    %v1272 = vpack.c.bf16 %v1264, %v1256
    %v1273 = vpack.c.bf16 %v1265, %v1257
    %v1274 = vpack.c.bf16 %v1266, %v1258
    %v1275 = vpack.c.bf16 %v1267, %v1259
    %v1276 = vld [vmem:[#allocation10] sm:$0xf]
    %v1277 = vld [vmem:[#allocation10 + $0x4] sm:$0xf]
    %v1278 = vld [vmem:[#allocation10 + $0x8] sm:$0xf]
    %v1279 = vld [vmem:[#allocation10 + $0xc] sm:$0xf]
    %v1280 = vld [vmem:[#allocation10 + $0x10] sm:$0xf]
    %v1281 = vld [vmem:[#allocation10 + $0x14] sm:$0xf]
    %v1282 = vld [vmem:[#allocation10 + $0x18] sm:$0xf]
    %v1283 = vld [vmem:[#allocation10 + $0x1c] sm:$0xf]
    %v1284 = vld [vmem:[#allocation10 + $0x20] sm:$0xf]
    %v1285 = vld [vmem:[#allocation10 + $0x24] sm:$0xf]
    %v1286 = vld [vmem:[#allocation10 + $0x28] sm:$0xf]
    %v1287 = vld [vmem:[#allocation10 + $0x2c] sm:$0xf]
    %v1288 = vld [vmem:[#allocation10 + $0x30] sm:$0xf]
    %v1289 = vld [vmem:[#allocation10 + $0x34] sm:$0xf]
    %v1290 = vld [vmem:[#allocation10 + $0x38] sm:$0xf]
    %v1291 = vld [vmem:[#allocation10 + $0x3c] sm:$0xf]
    %v1292 = vld [vmem:[#allocation10 + $0x40] sm:$0xf]
    %v1293 = vld [vmem:[#allocation10 + $0x44] sm:$0xf]
    %v1294 = vld [vmem:[#allocation10 + $0x48] sm:$0xf]
    %v1295 = vld [vmem:[#allocation10 + $0x4c] sm:$0xf]
    %v1296 = vld [vmem:[#allocation10 + $0x50] sm:$0xf]
    %v1297 = vld [vmem:[#allocation10 + $0x54] sm:$0xf]
    %v1298 = vld [vmem:[#allocation10 + $0x58] sm:$0xf]
    %v1299 = vld [vmem:[#allocation10 + $0x5c] sm:$0xf]
    %v1300 = vld [vmem:[#allocation10 + $0x60] sm:$0xf]
    %v1301 = vld [vmem:[#allocation10 + $0x64] sm:$0xf]
    %v1302 = vld [vmem:[#allocation10 + $0x68] sm:$0xf]
    %v1303 = vld [vmem:[#allocation10 + $0x6c] sm:$0xf]
    %v1304 = vld [vmem:[#allocation10 + $0x70] sm:$0xf]
    %v1305 = vld [vmem:[#allocation10 + $0x74] sm:$0xf]
    %v1306 = vld [vmem:[#allocation10 + $0x78] sm:$0xf]
    %v1307 = vld [vmem:[#allocation10 + $0x7c] sm:$0xf]
    %v1308 = vld [vmem:[#allocation10 + $0x80] sm:$0xf]
    %v1309 = vld [vmem:[#allocation10 + $0x84] sm:$0xf]
    %v1310 = vld [vmem:[#allocation10 + $0x88] sm:$0xf]
    %v1311 = vld [vmem:[#allocation10 + $0x8c] sm:$0xf]
    %v1312 = vld [vmem:[#allocation10 + $0x90] sm:$0xf]
    %v1313 = vld [vmem:[#allocation10 + $0x94] sm:$0xf]
    %v1314 = vld [vmem:[#allocation10 + $0x98] sm:$0xf]
    %v1315 = vld [vmem:[#allocation10 + $0x9c] sm:$0xf]
    %v1316 = vld [vmem:[#allocation10 + $0xa0] sm:$0xf]
    %v1317 = vld [vmem:[#allocation10 + $0xa4] sm:$0xf]
    %v1318 = vld [vmem:[#allocation10 + $0xa8] sm:$0xf]
    %v1319 = vld [vmem:[#allocation10 + $0xac] sm:$0xf]
    %v1320 = vld [vmem:[#allocation10 + $0xb0] sm:$0xf]
    %v1321 = vld [vmem:[#allocation10 + $0xb4] sm:$0xf]
    %v1322 = vld [vmem:[#allocation10 + $0xb8] sm:$0xf]
    %v1323 = vld [vmem:[#allocation10 + $0xbc] sm:$0xf]
    %v1324 = vld [vmem:[#allocation10 + $0xc0] sm:$0xf]
    %v1325 = vld [vmem:[#allocation10 + $0xc4] sm:$0xf]
    %v1326 = vld [vmem:[#allocation10 + $0xc8] sm:$0xf]
    %v1327 = vld [vmem:[#allocation10 + $0xcc] sm:$0xf]
    %v1328 = vld [vmem:[#allocation10 + $0xd0] sm:$0xf]
    %v1329 = vld [vmem:[#allocation10 + $0xd4] sm:$0xf]
    %v1330 = vld [vmem:[#allocation10 + $0xd8] sm:$0xf]
    %v1331 = vld [vmem:[#allocation10 + $0xdc] sm:$0xf]
    %v1332 = vld [vmem:[#allocation10 + $0xe0] sm:$0xf]
    %v1333 = vld [vmem:[#allocation10 + $0xe4] sm:$0xf]
    %v1334 = vld [vmem:[#allocation10 + $0xe8] sm:$0xf]
    %v1335 = vld [vmem:[#allocation10 + $0xec] sm:$0xf]
    %v1336 = vld [vmem:[#allocation10 + $0xf0] sm:$0xf]
    %v1337 = vld [vmem:[#allocation10 + $0xf4] sm:$0xf]
    %v1338 = vld [vmem:[#allocation10 + $0xf8] sm:$0xf]
    %v1339 = vld [vmem:[#allocation10 + $0xfc] sm:$0xf]
    %v1340 = vld [vmem:[#allocation10 + $0x100] sm:$0xf]
    %v1341 = vld [vmem:[#allocation10 + $0x104] sm:$0xf]
    %v1342 = vld [vmem:[#allocation10 + $0x108] sm:$0xf]
    %v1343 = vld [vmem:[#allocation10 + $0x10c] sm:$0xf]
    %v1344 = vld [vmem:[#allocation10 + $0x110] sm:$0xf]
    %v1345 = vld [vmem:[#allocation10 + $0x114] sm:$0xf]
    %v1346 = vld [vmem:[#allocation10 + $0x118] sm:$0xf]
    %v1347 = vld [vmem:[#allocation10 + $0x11c] sm:$0xf]
    %v1348 = vld [vmem:[#allocation10 + $0x120] sm:$0xf]
    %v1349 = vld [vmem:[#allocation10 + $0x124] sm:$0xf]
    %v1350 = vld [vmem:[#allocation10 + $0x128] sm:$0xf]
    %v1351 = vld [vmem:[#allocation10 + $0x12c] sm:$0xf]
    %v1352 = vld [vmem:[#allocation10 + $0x130] sm:$0xf]
    %v1353 = vld [vmem:[#allocation10 + $0x134] sm:$0xf]
    %v1354 = vld [vmem:[#allocation10 + $0x138] sm:$0xf]
    %v1355 = vld [vmem:[#allocation10 + $0x13c] sm:$0xf]
    %v1356 = vld [vmem:[#allocation10 + $0x140] sm:$0xf]
    %v1357 = vld [vmem:[#allocation10 + $0x144] sm:$0xf]
    %v1358 = vld [vmem:[#allocation10 + $0x148] sm:$0xf]
    %v1359 = vld [vmem:[#allocation10 + $0x14c] sm:$0xf]
    %v1360 = vld [vmem:[#allocation10 + $0x150] sm:$0xf]
    %v1361 = vld [vmem:[#allocation10 + $0x154] sm:$0xf]
    %v1362 = vld [vmem:[#allocation10 + $0x158] sm:$0xf]
    %v1363 = vld [vmem:[#allocation10 + $0x15c] sm:$0xf]
    %v1364 = vld [vmem:[#allocation10 + $0x160] sm:$0xf]
    %v1365 = vld [vmem:[#allocation10 + $0x164] sm:$0xf]
    %v1366 = vld [vmem:[#allocation10 + $0x168] sm:$0xf]
    %v1367 = vld [vmem:[#allocation10 + $0x16c] sm:$0xf]
    %v1368 = vld [vmem:[#allocation10 + $0x170] sm:$0xf]
    %v1369 = vld [vmem:[#allocation10 + $0x174] sm:$0xf]
    %v1370 = vld [vmem:[#allocation10 + $0x178] sm:$0xf]
    %v1371 = vld [vmem:[#allocation10 + $0x17c] sm:$0xf]
    %v1372 = vld [vmem:[#allocation10 + $0x180] sm:$0xf]
    %v1373 = vld [vmem:[#allocation10 + $0x184] sm:$0xf]
    %v1374 = vld [vmem:[#allocation10 + $0x188] sm:$0xf]
    %v1375 = vld [vmem:[#allocation10 + $0x18c] sm:$0xf]
    %v1376 = vld [vmem:[#allocation10 + $0x190] sm:$0xf]
    %v1377 = vld [vmem:[#allocation10 + $0x194] sm:$0xf]
    %v1378 = vld [vmem:[#allocation10 + $0x198] sm:$0xf]
    %v1379 = vld [vmem:[#allocation10 + $0x19c] sm:$0xf]
    %v1380 = vld [vmem:[#allocation10 + $0x1a0] sm:$0xf]
    %v1381 = vld [vmem:[#allocation10 + $0x1a4] sm:$0xf]
    %v1382 = vld [vmem:[#allocation10 + $0x1a8] sm:$0xf]
    %v1383 = vld [vmem:[#allocation10 + $0x1ac] sm:$0xf]
    %v1384 = vld [vmem:[#allocation10 + $0x1b0] sm:$0xf]
    %v1385 = vld [vmem:[#allocation10 + $0x1b4] sm:$0xf]
    %v1386 = vld [vmem:[#allocation10 + $0x1b8] sm:$0xf]
    %v1387 = vld [vmem:[#allocation10 + $0x1bc] sm:$0xf]
    %v1388 = vld [vmem:[#allocation10 + $0x1c0] sm:$0xf]
    %v1389 = vld [vmem:[#allocation10 + $0x1c4] sm:$0xf]
    %v1390 = vld [vmem:[#allocation10 + $0x1c8] sm:$0xf]
    %v1391 = vld [vmem:[#allocation10 + $0x1cc] sm:$0xf]
    %v1392 = vld [vmem:[#allocation10 + $0x1d0] sm:$0xf]
    %v1393 = vld [vmem:[#allocation10 + $0x1d4] sm:$0xf]
    %v1394 = vld [vmem:[#allocation10 + $0x1d8] sm:$0xf]
    %v1395 = vld [vmem:[#allocation10 + $0x1dc] sm:$0xf]
    %v1396 = vld [vmem:[#allocation10 + $0x1e0] sm:$0xf]
    %v1397 = vld [vmem:[#allocation10 + $0x1e4] sm:$0xf]
    %v1398 = vld [vmem:[#allocation10 + $0x1e8] sm:$0xf]
    %v1399 = vld [vmem:[#allocation10 + $0x1ec] sm:$0xf]
    %v1400 = vld [vmem:[#allocation10 + $0x1f0] sm:$0xf]
    %v1401 = vld [vmem:[#allocation10 + $0x1f4] sm:$0xf]
    %v1402 = vld [vmem:[#allocation10 + $0x1f8] sm:$0xf]
    %v1403 = vld [vmem:[#allocation10 + $0x1fc] sm:$0xf]
    %v1404 = vld [vmem:[%s6] sm:$0x1]
    %v1406 = vlaneseq
    %v1407 = vshrl.u32 %v1406, 7
    %v1408 = vsub.s32 0, %v1407
    %v1409 = vrot.slane %v1404, %v1408
    %v1539 = vunpack.c.l.b16 %v1276
    %v1540 = vunpack.c.l.b16 %v1277
    %v1541 = vunpack.c.l.b16 %v1278
    %v1542 = vunpack.c.l.b16 %v1279
    %v1543 = vunpack.c.l.b16 %v1280
    %v1544 = vunpack.c.l.b16 %v1281
    %v1545 = vunpack.c.l.b16 %v1282
    %v1546 = vunpack.c.l.b16 %v1283
    %v1547 = vunpack.c.l.b16 %v1284
    %v1548 = vunpack.c.l.b16 %v1285
    %v1549 = vunpack.c.l.b16 %v1286
    %v1550 = vunpack.c.l.b16 %v1287
    %v1551 = vunpack.c.l.b16 %v1288
    %v1552 = vunpack.c.l.b16 %v1289
    %v1553 = vunpack.c.l.b16 %v1290
    %v1554 = vunpack.c.l.b16 %v1291
    %v1555 = vunpack.c.l.b16 %v1292
    %v1556 = vunpack.c.l.b16 %v1293
    %v1557 = vunpack.c.l.b16 %v1294
    %v1558 = vunpack.c.l.b16 %v1295
    %v1559 = vunpack.c.l.b16 %v1296
    %v1560 = vunpack.c.l.b16 %v1297
    %v1561 = vunpack.c.l.b16 %v1298
    %v1562 = vunpack.c.l.b16 %v1299
    %v1563 = vunpack.c.l.b16 %v1300
    %v1564 = vunpack.c.l.b16 %v1301
    %v1565 = vunpack.c.l.b16 %v1302
    %v1566 = vunpack.c.l.b16 %v1303
    %v1567 = vunpack.c.l.b16 %v1304
    %v1568 = vunpack.c.l.b16 %v1305
    %v1569 = vunpack.c.l.b16 %v1306
    %v1570 = vunpack.c.l.b16 %v1307
    %v1571 = vunpack.c.l.b16 %v1308
    %v1572 = vunpack.c.l.b16 %v1309
    %v1573 = vunpack.c.l.b16 %v1310
    %v1574 = vunpack.c.l.b16 %v1311
    %v1575 = vunpack.c.l.b16 %v1312
    %v1576 = vunpack.c.l.b16 %v1313
    %v1577 = vunpack.c.l.b16 %v1314
    %v1578 = vunpack.c.l.b16 %v1315
    %v1579 = vunpack.c.l.b16 %v1316
    %v1580 = vunpack.c.l.b16 %v1317
    %v1581 = vunpack.c.l.b16 %v1318
    %v1582 = vunpack.c.l.b16 %v1319
    %v1583 = vunpack.c.l.b16 %v1320
    %v1584 = vunpack.c.l.b16 %v1321
    %v1585 = vunpack.c.l.b16 %v1322
    %v1586 = vunpack.c.l.b16 %v1323
    %v1587 = vunpack.c.l.b16 %v1324
    %v1588 = vunpack.c.l.b16 %v1325
    %v1589 = vunpack.c.l.b16 %v1326
    %v1590 = vunpack.c.l.b16 %v1327
    %v1591 = vunpack.c.l.b16 %v1328
    %v1592 = vunpack.c.l.b16 %v1329
    %v1593 = vunpack.c.l.b16 %v1330
    %v1594 = vunpack.c.l.b16 %v1331
    %v1595 = vunpack.c.l.b16 %v1332
    %v1596 = vunpack.c.l.b16 %v1333
    %v1597 = vunpack.c.l.b16 %v1334
    %v1598 = vunpack.c.l.b16 %v1335
    %v1599 = vunpack.c.l.b16 %v1336
    %v1600 = vunpack.c.l.b16 %v1337
    %v1601 = vunpack.c.l.b16 %v1338
    %v1602 = vunpack.c.l.b16 %v1339
    %v1603 = vunpack.c.l.b16 %v1340
    %v1604 = vunpack.c.l.b16 %v1341
    %v1605 = vunpack.c.l.b16 %v1342
    %v1606 = vunpack.c.l.b16 %v1343
    %v1607 = vunpack.c.l.b16 %v1344
    %v1608 = vunpack.c.l.b16 %v1345
    %v1609 = vunpack.c.l.b16 %v1346
    %v1610 = vunpack.c.l.b16 %v1347
    %v1611 = vunpack.c.l.b16 %v1348
    %v1612 = vunpack.c.l.b16 %v1349
    %v1613 = vunpack.c.l.b16 %v1350
    %v1614 = vunpack.c.l.b16 %v1351
    %v1615 = vunpack.c.l.b16 %v1352
    %v1616 = vunpack.c.l.b16 %v1353
    %v1617 = vunpack.c.l.b16 %v1354
    %v1618 = vunpack.c.l.b16 %v1355
    %v1619 = vunpack.c.l.b16 %v1356
    %v1620 = vunpack.c.l.b16 %v1357
    %v1621 = vunpack.c.l.b16 %v1358
    %v1622 = vunpack.c.l.b16 %v1359
    %v1623 = vunpack.c.l.b16 %v1360
    %v1624 = vunpack.c.l.b16 %v1361
    %v1625 = vunpack.c.l.b16 %v1362
    %v1626 = vunpack.c.l.b16 %v1363
    %v1627 = vunpack.c.l.b16 %v1364
    %v1628 = vunpack.c.l.b16 %v1365
    %v1629 = vunpack.c.l.b16 %v1366
    %v1630 = vunpack.c.l.b16 %v1367
    %v1631 = vunpack.c.l.b16 %v1368
    %v1632 = vunpack.c.l.b16 %v1369
    %v1633 = vunpack.c.l.b16 %v1370
    %v1634 = vunpack.c.l.b16 %v1371
    %v1635 = vunpack.c.l.b16 %v1372
    %v1636 = vunpack.c.l.b16 %v1373
    %v1637 = vunpack.c.l.b16 %v1374
    %v1638 = vunpack.c.l.b16 %v1375
    %v1639 = vunpack.c.l.b16 %v1376
    %v1640 = vunpack.c.l.b16 %v1377
    %v1641 = vunpack.c.l.b16 %v1378
    %v1642 = vunpack.c.l.b16 %v1379
    %v1643 = vunpack.c.l.b16 %v1380
    %v1644 = vunpack.c.l.b16 %v1381
    %v1645 = vunpack.c.l.b16 %v1382
    %v1646 = vunpack.c.l.b16 %v1383
    %v1647 = vunpack.c.l.b16 %v1384
    %v1648 = vunpack.c.l.b16 %v1385
    %v1649 = vunpack.c.l.b16 %v1386
    %v1650 = vunpack.c.l.b16 %v1387
    %v1651 = vunpack.c.l.b16 %v1388
    %v1652 = vunpack.c.l.b16 %v1389
    %v1653 = vunpack.c.l.b16 %v1390
    %v1654 = vunpack.c.l.b16 %v1391
    %v1655 = vunpack.c.l.b16 %v1392
    %v1656 = vunpack.c.l.b16 %v1393
    %v1657 = vunpack.c.l.b16 %v1394
    %v1658 = vunpack.c.l.b16 %v1395
    %v1659 = vunpack.c.l.b16 %v1396
    %v1660 = vunpack.c.l.b16 %v1397
    %v1661 = vunpack.c.l.b16 %v1398
    %v1662 = vunpack.c.l.b16 %v1399
    %v1663 = vunpack.c.l.b16 %v1400
    %v1664 = vunpack.c.l.b16 %v1401
    %v1665 = vunpack.c.l.b16 %v1402
    %v1666 = vunpack.c.l.b16 %v1403
    %v1667 = vpack.c.b16 %v1540, %v1539
    %v1668 = vpack.c.b16 %v1542, %v1541
    %v1669 = vpack.c.b16 %v1544, %v1543
    %v1670 = vpack.c.b16 %v1546, %v1545
    %v1671 = vpack.c.b16 %v1548, %v1547
    %v1672 = vpack.c.b16 %v1550, %v1549
    %v1673 = vpack.c.b16 %v1552, %v1551
    %v1674 = vpack.c.b16 %v1554, %v1553
    %v1675 = vpack.c.b16 %v1556, %v1555
    %v1676 = vpack.c.b16 %v1558, %v1557
    %v1677 = vpack.c.b16 %v1560, %v1559
    %v1678 = vpack.c.b16 %v1562, %v1561
    %v1679 = vpack.c.b16 %v1564, %v1563
    %v1680 = vpack.c.b16 %v1566, %v1565
    %v1681 = vpack.c.b16 %v1568, %v1567
    %v1682 = vpack.c.b16 %v1570, %v1569
    %v1683 = vpack.c.b16 %v1572, %v1571
    %v1684 = vpack.c.b16 %v1574, %v1573
    %v1685 = vpack.c.b16 %v1576, %v1575
    %v1686 = vpack.c.b16 %v1578, %v1577
    %v1687 = vpack.c.b16 %v1580, %v1579
    %v1688 = vpack.c.b16 %v1582, %v1581
    %v1689 = vpack.c.b16 %v1584, %v1583
    %v1690 = vpack.c.b16 %v1586, %v1585
    %v1691 = vpack.c.b16 %v1588, %v1587
    %v1692 = vpack.c.b16 %v1590, %v1589
    %v1693 = vpack.c.b16 %v1592, %v1591
    %v1694 = vpack.c.b16 %v1594, %v1593
    %v1695 = vpack.c.b16 %v1596, %v1595
    %v1696 = vpack.c.b16 %v1598, %v1597
    %v1697 = vpack.c.b16 %v1600, %v1599
    %v1698 = vpack.c.b16 %v1602, %v1601
    %v1699 = vpack.c.b16 %v1604, %v1603
    %v1700 = vpack.c.b16 %v1606, %v1605
    %v1701 = vpack.c.b16 %v1608, %v1607
    %v1702 = vpack.c.b16 %v1610, %v1609
    %v1703 = vpack.c.b16 %v1612, %v1611
    %v1704 = vpack.c.b16 %v1614, %v1613
    %v1705 = vpack.c.b16 %v1616, %v1615
    %v1706 = vpack.c.b16 %v1618, %v1617
    %v1707 = vpack.c.b16 %v1620, %v1619
    %v1708 = vpack.c.b16 %v1622, %v1621
    %v1709 = vpack.c.b16 %v1624, %v1623
    %v1710 = vpack.c.b16 %v1626, %v1625
    %v1711 = vpack.c.b16 %v1628, %v1627
    %v1712 = vpack.c.b16 %v1630, %v1629
    %v1713 = vpack.c.b16 %v1632, %v1631
    %v1714 = vpack.c.b16 %v1634, %v1633
    %v1715 = vpack.c.b16 %v1636, %v1635
    %v1716 = vpack.c.b16 %v1638, %v1637
    %v1717 = vpack.c.b16 %v1640, %v1639
    %v1718 = vpack.c.b16 %v1642, %v1641
    %v1719 = vpack.c.b16 %v1644, %v1643
    %v1720 = vpack.c.b16 %v1646, %v1645
    %v1721 = vpack.c.b16 %v1648, %v1647
    %v1722 = vpack.c.b16 %v1650, %v1649
    %v1723 = vpack.c.b16 %v1652, %v1651
    %v1724 = vpack.c.b16 %v1654, %v1653
    %v1725 = vpack.c.b16 %v1656, %v1655
    %v1726 = vpack.c.b16 %v1658, %v1657
    %v1727 = vpack.c.b16 %v1660, %v1659
    %v1728 = vpack.c.b16 %v1662, %v1661
    %v1729 = vpack.c.b16 %v1664, %v1663
    %v1730 = vpack.c.b16 %v1666, %v1665
    %1795 = vmatprep.subr.bf16.mxu0 0
    %1796 = vmatpush1.bf16.msra.mxu0 %v1674
    %1797 = vmatprep.subr.bf16.mxu0 0
    %1798 = vmatpush1.bf16.msra.mxu0 %v1673
    %1799 = vmatprep.subr.bf16.mxu0 0
    %1800 = vmatpush1.bf16.msra.mxu0 %v1672
    %1801 = vmatprep.subr.bf16.mxu0 0
    %1802 = vmatpush1.bf16.msra.mxu0 %v1671
    %1803 = vmatprep.subr.bf16.mxu0 0
    %1804 = vmatpush1.bf16.msra.mxu0 %v1670
    %1805 = vmatprep.subr.bf16.mxu0 0
    %1806 = vmatpush1.bf16.msra.mxu0 %v1669
    %1807 = vmatprep.subr.bf16.mxu0 0
    %1808 = vmatpush1.bf16.msra.mxu0 %v1668
    %1809 = vmatprep.subr.bf16.mxu0 0
    %1810 = vmatpush1.bf16.msra.mxu0 %v1667
    %1811 = vmatprep.subr.bf16.mxu0 0
    %1812 = vmatpush2.bf16.msra.mxu0 %v1682
    %1813 = vmatprep.subr.bf16.mxu0 0
    %1814 = vmatpush2.bf16.msra.mxu0 %v1681
    %1815 = vmatprep.subr.bf16.mxu0 0
    %1816 = vmatpush2.bf16.msra.mxu0 %v1680
    %1817 = vmatprep.subr.bf16.mxu0 0
    %1818 = vmatpush2.bf16.msra.mxu0 %v1679
    %1819 = vmatprep.subr.bf16.mxu0 0
    %1820 = vmatpush2.bf16.msra.mxu0 %v1678
    %1821 = vmatprep.subr.bf16.mxu0 0
    %1822 = vmatpush2.bf16.msra.mxu0 %v1677
    %1823 = vmatprep.subr.bf16.mxu0 0
    %1824 = vmatpush2.bf16.msra.mxu0 %v1676
    %1825 = vmatprep.subr.bf16.mxu0 0
    %1826 = vmatpush2.bf16.msra.mxu0 %v1675
    %1827 = vmatprep.mubr.bf16.mxu0 %v1269
    %1828 = vmatmul.mubr.bf16.gmra.mxu0 %v1268
    %v1829 = vpop.f32.mrf.mxu0
    %v1830 = vadd.f32 %v1409, %v1829
    %v1831 = vpop.f32.mrf.mxu0
    %v1832 = vpop.f32.mrf.mxu0
    %v1833 = vadd.f32 %v1409, %v1832
    %v1834 = vpop.f32.mrf.mxu0
    %1835 = vdwg.mxu0
    %1836 = vmatprep.subr.bf16.mxu0 0
    %1837 = vmatpush1.bf16.msra.mxu0 %v1690
    %1838 = vmatprep.subr.bf16.mxu0 0
    %1839 = vmatpush1.bf16.msra.mxu0 %v1689
    %1840 = vmatprep.subr.bf16.mxu0 0
    %1841 = vmatpush1.bf16.msra.mxu0 %v1688
    %1842 = vmatprep.subr.bf16.mxu0 0
    %1843 = vmatpush1.bf16.msra.mxu0 %v1687
    %1844 = vmatprep.subr.bf16.mxu0 0
    %1845 = vmatpush1.bf16.msra.mxu0 %v1686
    %1846 = vmatprep.subr.bf16.mxu0 0
    %1847 = vmatpush1.bf16.msra.mxu0 %v1685
    %1848 = vmatprep.subr.bf16.mxu0 0
    %1849 = vmatpush1.bf16.msra.mxu0 %v1684
    %1850 = vmatprep.subr.bf16.mxu0 0
    %1851 = vmatpush1.bf16.msra.mxu0 %v1683
    %1852 = vmatprep.subr.bf16.mxu0 0
    %1853 = vmatpush2.bf16.msra.mxu0 %v1698
    %1854 = vmatprep.subr.bf16.mxu0 0
    %1855 = vmatpush2.bf16.msra.mxu0 %v1697
    %1856 = vmatprep.subr.bf16.mxu0 0
    %1857 = vmatpush2.bf16.msra.mxu0 %v1696
    %1858 = vmatprep.subr.bf16.mxu0 0
    %1859 = vmatpush2.bf16.msra.mxu0 %v1695
    %1860 = vmatprep.subr.bf16.mxu0 0
    %1861 = vmatpush2.bf16.msra.mxu0 %v1694
    %1862 = vmatprep.subr.bf16.mxu0 0
    %1863 = vmatpush2.bf16.msra.mxu0 %v1693
    %1864 = vmatprep.subr.bf16.mxu0 0
    %1865 = vmatpush2.bf16.msra.mxu0 %v1692
    %1866 = vmatprep.subr.bf16.mxu0 0
    %1867 = vmatpush2.bf16.msra.mxu0 %v1691
    %1868 = vmatprep.mubr.bf16.mxu0 %v1271
    %1869 = vmatmul.mubr.bf16.gmra.mxu0 %v1270
    %v1870 = vpop.f32.mrf.mxu0
    %v1871 = vadd.f32 %v1830, %v1870
    %v1872 = vpop.f32.mrf.mxu0
    %v1873 = vpop.f32.mrf.mxu0
    %v1874 = vadd.f32 %v1833, %v1873
    %v1875 = vpop.f32.mrf.mxu0
    %1876 = vdwg.mxu0
    %1877 = vmatprep.subr.bf16.mxu0 0
    %1878 = vmatpush1.bf16.msra.mxu0 %v1706
    %1879 = vmatprep.subr.bf16.mxu0 0
    %1880 = vmatpush1.bf16.msra.mxu0 %v1705
    %1881 = vmatprep.subr.bf16.mxu0 0
    %1882 = vmatpush1.bf16.msra.mxu0 %v1704
    %1883 = vmatprep.subr.bf16.mxu0 0
    %1884 = vmatpush1.bf16.msra.mxu0 %v1703
    %1885 = vmatprep.subr.bf16.mxu0 0
    %1886 = vmatpush1.bf16.msra.mxu0 %v1702
    %1887 = vmatprep.subr.bf16.mxu0 0
    %1888 = vmatpush1.bf16.msra.mxu0 %v1701
    %1889 = vmatprep.subr.bf16.mxu0 0
    %1890 = vmatpush1.bf16.msra.mxu0 %v1700
    %1891 = vmatprep.subr.bf16.mxu0 0
    %1892 = vmatpush1.bf16.msra.mxu0 %v1699
    %1893 = vmatprep.subr.bf16.mxu0 0
    %1894 = vmatpush2.bf16.msra.mxu0 %v1714
    %1895 = vmatprep.subr.bf16.mxu0 0
    %1896 = vmatpush2.bf16.msra.mxu0 %v1713
    %1897 = vmatprep.subr.bf16.mxu0 0
    %1898 = vmatpush2.bf16.msra.mxu0 %v1712
    %1899 = vmatprep.subr.bf16.mxu0 0
    %1900 = vmatpush2.bf16.msra.mxu0 %v1711
    %1901 = vmatprep.subr.bf16.mxu0 0
    %1902 = vmatpush2.bf16.msra.mxu0 %v1710
    %1903 = vmatprep.subr.bf16.mxu0 0
    %1904 = vmatpush2.bf16.msra.mxu0 %v1709
    %1905 = vmatprep.subr.bf16.mxu0 0
    %1906 = vmatpush2.bf16.msra.mxu0 %v1708
    %1907 = vmatprep.subr.bf16.mxu0 0
    %1908 = vmatpush2.bf16.msra.mxu0 %v1707
    %1909 = vmatprep.mubr.bf16.mxu0 %v1273
    %1910 = vmatmul.mubr.bf16.gmra.mxu0 %v1272
    %v1911 = vpop.f32.mrf.mxu0
    %v1912 = vadd.f32 %v1871, %v1911
    %v1913 = vpop.f32.mrf.mxu0
    %v1914 = vpop.f32.mrf.mxu0
    %v1915 = vadd.f32 %v1874, %v1914
    %v1916 = vpop.f32.mrf.mxu0
    %1917 = vdwg.mxu0
    %1918 = vmatprep.subr.bf16.mxu0 0
    %1919 = vmatpush1.bf16.msra.mxu0 %v1722
    %1920 = vmatprep.subr.bf16.mxu0 0
    %1921 = vmatpush1.bf16.msra.mxu0 %v1721
    %1922 = vmatprep.subr.bf16.mxu0 0
    %1923 = vmatpush1.bf16.msra.mxu0 %v1720
    %1924 = vmatprep.subr.bf16.mxu0 0
    %1925 = vmatpush1.bf16.msra.mxu0 %v1719
    %1926 = vmatprep.subr.bf16.mxu0 0
    %1927 = vmatpush1.bf16.msra.mxu0 %v1718
    %1928 = vmatprep.subr.bf16.mxu0 0
    %1929 = vmatpush1.bf16.msra.mxu0 %v1717
    %1930 = vmatprep.subr.bf16.mxu0 0
    %1931 = vmatpush1.bf16.msra.mxu0 %v1716
    %1932 = vmatprep.subr.bf16.mxu0 0
    %1933 = vmatpush1.bf16.msra.mxu0 %v1715
    %1934 = vmatprep.subr.bf16.mxu0 0
    %1935 = vmatpush2.bf16.msra.mxu0 %v1730
    %1936 = vmatprep.subr.bf16.mxu0 0
    %1937 = vmatpush2.bf16.msra.mxu0 %v1729
    %1938 = vmatprep.subr.bf16.mxu0 0
    %1939 = vmatpush2.bf16.msra.mxu0 %v1728
    %1940 = vmatprep.subr.bf16.mxu0 0
    %1941 = vmatpush2.bf16.msra.mxu0 %v1727
    %1942 = vmatprep.subr.bf16.mxu0 0
    %1943 = vmatpush2.bf16.msra.mxu0 %v1726
    %1944 = vmatprep.subr.bf16.mxu0 0
    %1945 = vmatpush2.bf16.msra.mxu0 %v1725
    %1946 = vmatprep.subr.bf16.mxu0 0
    %1947 = vmatpush2.bf16.msra.mxu0 %v1724
    %1948 = vmatprep.subr.bf16.mxu0 0
    %1949 = vmatpush2.bf16.msra.mxu0 %v1723
    %1950 = vmatprep.mubr.bf16.mxu0 %v1275
    %1951 = vmatmul.mubr.bf16.gmra.mxu0 %v1274
    %v1952 = vpop.f32.mrf.mxu0
    %v1953 = vadd.f32 %v1912, %v1952
    %v1954 = vpop.f32.mrf.mxu0
    %v1955 = vpop.f32.mrf.mxu0
    %v1956 = vadd.f32 %v1915, %v1955
    %v1957 = vpop.f32.mrf.mxu0
    %1958 = vdwg.mxu0
    %1959 = vst [vmem:[#allocation11] sm:$0xff] %v1953
    %1960 = vst [vmem:[#allocation11 + $0x8] sm:$0xff] %v1956
    // Predicated region
    $region50: #{tpu_custom_call.1} parent=1 // pred_check
      _
    $region51: #{tpu_custom_call.1} parent=1 // pred_check_branch
      %1962 = sbr.rel (0) target = $region53
    $region52: #{tpu_custom_call.1} parent=1 // pred_region
      %s1964 = ssub.s32 256, 256
      %1965 = vsyncadd [#allocation4], %s1964
      %s1966 = sshll.u32 [#allocation11], 4
      %s1967 = int_to_ptr.vmem [resolvable:$true] %s1966
      %1972 = dma.vmem_to_hbm [thread:$0]  %s1967, 256, %s7, [#allocation4], 128, 128, 8
    $region53: #{tpu_custom_call.1} parent=1 // pred_fallthru
      _
    // Predicated region
    $region54: #{tpu_custom_call.1} parent=1 // pred_check
      _
    $region55: #{tpu_custom_call.1} parent=1 // pred_check_branch
      %1974 = sbr.rel (0) target = $region57
    $region56: #{tpu_custom_call.1} parent=1 // pred_region
      %s1976 = ssub.s32 256, 256
      %1977 = vsyncadd [#allocation13], %s1976
      %s1978 = sshll.u32 [#allocation12], 4
      %s1979 = int_to_ptr.vmem [resolvable:$true] %s1978
      %1984 = dma.vmem_to_hbm [thread:$0]  %s1979, 256, %s8, [#allocation13], 128, 128, 8
    $region57: #{tpu_custom_call.1} parent=1 // pred_fallthru
      _
    // Predicated region
    $region58: #{tpu_custom_call.1} parent=1 // pred_check
      _
    $region59: #{tpu_custom_call.1} parent=1 // pred_check_branch
      %1986 = sbr.rel (0) target = $region61
    $region60: #{tpu_custom_call.1} parent=1 // pred_region
      %1987 = dma.done [#allocation4], 256
    $region61: #{tpu_custom_call.1} parent=1 // pred_fallthru
      _
    // Predicated region
    $region62: #{tpu_custom_call.1} parent=1 // pred_check
      _
    $region63: #{tpu_custom_call.1} parent=1 // pred_check_branch
      %1989 = sbr.rel (0) target = $region65
    $region64: #{tpu_custom_call.1} parent=1 // pred_region
      %1990 = dma.done [#allocation13], 256
    $region65: #{tpu_custom_call.1} parent=1 // pred_fallthru
      _
    %1991 = vsyncpa [#allocation3], 1
    %1992 = vsyncpa [#allocation6], 1
    %1993 = vsyncpa [#allocation9], 1
    %1994 = vsyncpa [#allocation4], 1
    %1995 = vsyncpa [#allocation13], 1

// kernel: tpu_custom_call.1
$region0: #{tpu_custom_call.1}
  #allocation0 [shape = 'u32[]', space=smem, size = 0x4, offset = 0x4, fixed_abs, tag = 'smem constant byte address 0x4 - core index']
  #allocation1 [shape = 'u32[144,128]{1,0:T(1,128)}', space=vmem, size = 0x12000, scoped, tag = 'internal scratch']
  %s0 = inlined_call_operand.hbm [shape: bf16[16,128], index: 0, kind: input, shape index: {}]
  %s1 = inlined_call_operand.hbm [shape: bf16[128,256], index: 1, kind: input, shape index: {}]
  %s2 = inlined_call_operand.vmem [shape: f32[1,256], index: 2, kind: input, shape index: {}]
  %s3 = inlined_call_operand.hbm [shape: bf16[256,1024], index: 3, kind: input, shape index: {}]
  %s4 = inlined_call_operand.hbm [shape: f32[1,1024], index: 4, kind: input, shape index: {}]
  %s5 = inlined_call_operand.hbm [shape: bf16[1024,128], index: 5, kind: input, shape index: {}]
  %s6 = inlined_call_operand.vmem [shape: f32[1,128], index: 6, kind: input, shape index: {}]
  %s7 = inlined_call_operand.hbm [shape: f32[16,128], index: 7, kind: output, shape index: {0}]
  %s8 = inlined_call_operand.hbm [shape: bf16[16,256], index: 8, kind: output, shape index: {1}]
  %9 = xla_tuple %s7, %s8
  %s10 = sld [smem:[#allocation0]]
  $region66: #{tpu_custom_call.1} parent=0
    _
  %s12 = ssub.s32 1, %s10
  %s13 = scalar_select 0, %s12, %s10
  $region1: #{tpu_custom_call.1} parent=0
    #allocation2 [shape = 'u8[4096]{0}', space=vmem, size = 0x1000, scoped, tag = 'input window, operand 0, single buffered']
    #allocation3 [shape = 's32[1]{0}', space=sflag, size = 0x4, scoped, tag = 'scoped memory for tpu_custom_call.1']
    #allocation4 [shape = 's32[1]{0}', space=sflag, size = 0x4, scoped, tag = 'scoped memory for tpu_custom_call.1']
    #allocation5 [shape = 'u8[65536]{0}', space=vmem, size = 0x10000, scoped, tag = 'input window, operand 1, single buffered']
    #allocation6 [shape = 's32[1]{0}', space=sflag, size = 0x4, scoped, tag = 'scoped memory for tpu_custom_call.1']
    #allocation7 [shape = 'u8[524288]{0}', space=vmem, size = 0x80000, scoped, tag = 'input window, operand 3, single buffered']
    #allocation8 [shape = 'u8[4096]{0}', space=vmem, size = 0x1000, scoped, tag = 'input window, operand 4, single buffered']
    #allocation9 [shape = 's32[1]{0}', space=sflag, size = 0x4, scoped, tag = 'scoped memory for tpu_custom_call.1']
    #allocation10 [shape = 'u8[262144]{0}', space=vmem, size = 0x40000, scoped, tag = 'input window, operand 5, single buffered']
    #allocation11 [shape = 'u8[8192]{0}', space=vmem, size = 0x2000, scoped, tag = 'output window, operand 0, single buffered']
    #allocation12 [shape = 'u8[8192]{0}', space=vmem, size = 0x2000, scoped, tag = 'output window, operand 1, single buffered']
    #allocation13 [shape = 's32[1]{0}', space=sflag, size = 0x4, scoped, tag = 'scoped memory for tpu_custom_call.1']
    %14 = vsyncpa [#allocation3], 0
    %15 = vsyncpa [#allocation6], 0
    %16 = vsyncpa [#allocation9], 0
    %17 = vsyncpa [#allocation4], 0
    %18 = vsyncpa [#allocation13], 0
    // Predicated region
    $region2: #{tpu_custom_call.1} parent=1 // pred_check
      _
    $region3: #{tpu_custom_call.1} parent=1 // pred_check_branch
      %20 = sbr.rel (0) target = $region5
    $region4: #{tpu_custom_call.1} parent=1 // pred_region
      %s22 = ssub.s32 128, 128
      %23 = vsyncadd [#allocation3], %s22
      %s24 = sshll.u32 [#allocation2], 4
      %s25 = int_to_ptr.vmem [resolvable:$true] %s24
      %30 = dma.hbm_to_vmem [thread:$0]  %s0, 128, %s25, [#allocation3], 64, 64, 4
    $region5: #{tpu_custom_call.1} parent=1 // pred_fallthru
      _
    // Predicated region
    $region6: #{tpu_custom_call.1} parent=1 // pred_check
      _
    $region7: #{tpu_custom_call.1} parent=1 // pred_check_branch
      %32 = sbr.rel (0) target = $region9
    $region8: #{tpu_custom_call.1} parent=1 // pred_region
      %s34 = ssub.s32 2048, 2048
      %35 = vsyncadd [#allocation6], %s34
      %s36 = sshll.u32 [#allocation5], 4
      %s37 = int_to_ptr.vmem [resolvable:$true] %s36
      %42 = dma.hbm_to_vmem [thread:$0]  %s1, 2048, %s37, [#allocation6], 128, 128, 8
    $region9: #{tpu_custom_call.1} parent=1 // pred_fallthru
      _
    // Predicated region
    $region10: #{tpu_custom_call.1} parent=1 // pred_check
      _
    $region11: #{tpu_custom_call.1} parent=1 // pred_check_branch
      %44 = sbr.rel (0) target = $region13
    $region12: #{tpu_custom_call.1} parent=1 // pred_region
      _
    $region13: #{tpu_custom_call.1} parent=1 // pred_fallthru
      _
    // Predicated region
    $region14: #{tpu_custom_call.1} parent=1 // pred_check
      _
    $region15: #{tpu_custom_call.1} parent=1 // pred_check_branch
      %46 = sbr.rel (0) target = $region17
    $region16: #{tpu_custom_call.1} parent=1 // pred_region
      %s48 = ssub.s32 16384, 16384
      %49 = vsyncadd [#allocation6], %s48
      %s50 = sshll.u32 [#allocation7], 4
      %s51 = int_to_ptr.vmem [resolvable:$true] %s50
      %56 = dma.hbm_to_vmem [thread:$0]  %s3, 16384, %s51, [#allocation6], 512, 512, 32
    $region17: #{tpu_custom_call.1} parent=1 // pred_fallthru
      _
    // Predicated region
    $region18: #{tpu_custom_call.1} parent=1 // pred_check
      _
    $region19: #{tpu_custom_call.1} parent=1 // pred_check_branch
      %58 = sbr.rel (0) target = $region21
    $region20: #{tpu_custom_call.1} parent=1 // pred_region
      %s60 = ssub.s32 128, 128
      %61 = vsyncadd [#allocation9], %s60
      %s63 = sshll.u32 [#allocation8], 4
      %s64 = int_to_ptr.vmem [resolvable:$true] %s63
      %66 = dma.hbm_to_vmem [thread:$0]  %s4, 128, %s64, [#allocation9]
    $region21: #{tpu_custom_call.1} parent=1 // pred_fallthru
      _
    // Predicated region
    $region22: #{tpu_custom_call.1} parent=1 // pred_check
      _
    $region23: #{tpu_custom_call.1} parent=1 // pred_check_branch
      %68 = sbr.rel (0) target = $region25
    $region24: #{tpu_custom_call.1} parent=1 // pred_region
      %s70 = ssub.s32 8192, 8192
      %71 = vsyncadd [#allocation9], %s70
      %s72 = sshll.u32 [#allocation10], 4
      %s73 = int_to_ptr.vmem [resolvable:$true] %s72
      %78 = dma.hbm_to_vmem [thread:$0]  %s5, 8192, %s73, [#allocation9], 64, 64, 4
    $region25: #{tpu_custom_call.1} parent=1 // pred_fallthru
      _
    // Predicated region
    $region26: #{tpu_custom_call.1} parent=1 // pred_check
      _
    $region27: #{tpu_custom_call.1} parent=1 // pred_check_branch
      %80 = sbr.rel (0) target = $region29
    $region28: #{tpu_custom_call.1} parent=1 // pred_region
      _
    $region29: #{tpu_custom_call.1} parent=1 // pred_fallthru
      _
    // Predicated region
    $region30: #{tpu_custom_call.1} parent=1 // pred_check
      _
    $region31: #{tpu_custom_call.1} parent=1 // pred_check_branch
      %82 = sbr.rel (0) target = $region33
    $region32: #{tpu_custom_call.1} parent=1 // pred_region
      %83 = dma.done [#allocation3], 128
    $region33: #{tpu_custom_call.1} parent=1 // pred_fallthru
      _
    // Predicated region
    $region34: #{tpu_custom_call.1} parent=1 // pred_check
      _
    $region35: #{tpu_custom_call.1} parent=1 // pred_check_branch
      %85 = sbr.rel (0) target = $region37
    $region36: #{tpu_custom_call.1} parent=1 // pred_region
      %86 = dma.done [#allocation6], 2048
    $region37: #{tpu_custom_call.1} parent=1 // pred_fallthru
      _
    // Predicated region
    $region38: #{tpu_custom_call.1} parent=1 // pred_check
      _
    $region39: #{tpu_custom_call.1} parent=1 // pred_check_branch
      %88 = sbr.rel (0) target = $region41
    $region40: #{tpu_custom_call.1} parent=1 // pred_region
      %89 = dma.done [#allocation6], 16384
    $region41: #{tpu_custom_call.1} parent=1 // pred_fallthru
      _
    // Predicated region
    $region42: #{tpu_custom_call.1} parent=1 // pred_check
      _
    $region43: #{tpu_custom_call.1} parent=1 // pred_check_branch
      %91 = sbr.rel (0) target = $region45
    $region44: #{tpu_custom_call.1} parent=1 // pred_region
      %92 = dma.done [#allocation9], 128
    $region45: #{tpu_custom_call.1} parent=1 // pred_fallthru
      _
    // Predicated region
    $region46: #{tpu_custom_call.1} parent=1 // pred_check
      _
    $region47: #{tpu_custom_call.1} parent=1 // pred_check_branch
      %94 = sbr.rel (0) target = $region49
    $region48: #{tpu_custom_call.1} parent=1 // pred_region
      %95 = dma.done [#allocation9], 8192
    $region49: #{tpu_custom_call.1} parent=1 // pred_fallthru
      _
    %v97 = vld [vmem:[#allocation2] sm:$0xf]
    %v98 = vld [vmem:[#allocation2 + $0x4] sm:$0xf]
    %v99 = vld [vmem:[#allocation5] sm:$0xff]
    %v100 = vld [vmem:[#allocation5 + $0x8] sm:$0xff]
    %v101 = vld [vmem:[#allocation5 + $0x10] sm:$0xff]
    %v102 = vld [vmem:[#allocation5 + $0x18] sm:$0xff]
    %v103 = vld [vmem:[#allocation5 + $0x20] sm:$0xff]
    %v104 = vld [vmem:[#allocation5 + $0x28] sm:$0xff]
    %v105 = vld [vmem:[#allocation5 + $0x30] sm:$0xff]
    %v106 = vld [vmem:[#allocation5 + $0x38] sm:$0xff]
    %v107 = vld [vmem:[#allocation5 + $0x40] sm:$0xff]
    %v108 = vld [vmem:[#allocation5 + $0x48] sm:$0xff]
    %v109 = vld [vmem:[#allocation5 + $0x50] sm:$0xff]
    %v110 = vld [vmem:[#allocation5 + $0x58] sm:$0xff]
    %v111 = vld [vmem:[#allocation5 + $0x60] sm:$0xff]
    %v112 = vld [vmem:[#allocation5 + $0x68] sm:$0xff]
    %v113 = vld [vmem:[#allocation5 + $0x70] sm:$0xff]
    %v114 = vld [vmem:[#allocation5 + $0x78] sm:$0xff]
    %v115 = vld [vmem:[%s2] sm:$0x3]
    %v117 = vlaneseq
    %v118 = vshrl.u32 %v117, 7
    %v119 = vsub.s32 0, %v118
    %v120 = vrot.slane %v115, %v119
    %v121 = vlaneseq
    %v122 = vshrl.u32 %v121, 7
    %v123 = vsub.s32 1, %v122
    %v124 = vrot.slane %v115, %v123
    %v129 = vunpack.c.l.b16 %v97
    %v130 = vunpack.c.l.b16 %v98
    %v131 = vpack.c.b16 %v130, %v129
    %v149 = vunpack.c.l.b16 %v99
    %v150 = vunpack.c.h.b16 %v99
    %v151 = vunpack.c.l.b16 %v100
    %v152 = vunpack.c.h.b16 %v100
    %v153 = vunpack.c.l.b16 %v101
    %v154 = vunpack.c.h.b16 %v101
    %v155 = vunpack.c.l.b16 %v102
    %v156 = vunpack.c.h.b16 %v102
    %v157 = vunpack.c.l.b16 %v103
    %v158 = vunpack.c.h.b16 %v103
    %v159 = vunpack.c.l.b16 %v104
    %v160 = vunpack.c.h.b16 %v104
    %v161 = vunpack.c.l.b16 %v105
    %v162 = vunpack.c.h.b16 %v105
    %v163 = vunpack.c.l.b16 %v106
    %v164 = vunpack.c.h.b16 %v106
    %v165 = vunpack.c.l.b16 %v107
    %v166 = vunpack.c.h.b16 %v107
    %v167 = vunpack.c.l.b16 %v108
    %v168 = vunpack.c.h.b16 %v108
    %v169 = vunpack.c.l.b16 %v109
    %v170 = vunpack.c.h.b16 %v109
    %v171 = vunpack.c.l.b16 %v110
    %v172 = vunpack.c.h.b16 %v110
    %v173 = vunpack.c.l.b16 %v111
    %v174 = vunpack.c.h.b16 %v111
    %v175 = vunpack.c.l.b16 %v112
    %v176 = vunpack.c.h.b16 %v112
    %v177 = vunpack.c.l.b16 %v113
    %v178 = vunpack.c.h.b16 %v113
    %v179 = vunpack.c.l.b16 %v114
    %v180 = vunpack.c.h.b16 %v114
    %v181 = vpack.c.b16 %v151, %v149
    %v182 = vpack.c.b16 %v152, %v150
    %v183 = vpack.c.b16 %v155, %v153
    %v184 = vpack.c.b16 %v156, %v154
    %v185 = vpack.c.b16 %v159, %v157
    %v186 = vpack.c.b16 %v160, %v158
    %v187 = vpack.c.b16 %v163, %v161
    %v188 = vpack.c.b16 %v164, %v162
    %v189 = vpack.c.b16 %v167, %v165
    %v190 = vpack.c.b16 %v168, %v166
    %v191 = vpack.c.b16 %v171, %v169
    %v192 = vpack.c.b16 %v172, %v170
    %v193 = vpack.c.b16 %v175, %v173
    %v194 = vpack.c.b16 %v176, %v174
    %v195 = vpack.c.b16 %v179, %v177
    %v196 = vpack.c.b16 %v180, %v178
    %213 = vmatprep.subr.bf16.mxu0 %v196
    %214 = vmatpush1.bf16.msra.mxu0 %v195
    %215 = vmatprep.subr.bf16.mxu0 %v194
    %216 = vmatpush1.bf16.msra.mxu0 %v193
    %217 = vmatprep.subr.bf16.mxu0 %v192
    %218 = vmatpush1.bf16.msra.mxu0 %v191
    %219 = vmatprep.subr.bf16.mxu0 %v190
    %220 = vmatpush1.bf16.msra.mxu0 %v189
    %221 = vmatprep.subr.bf16.mxu0 %v188
    %222 = vmatpush1.bf16.msra.mxu0 %v187
    %223 = vmatprep.subr.bf16.mxu0 %v186
    %224 = vmatpush1.bf16.msra.mxu0 %v185
    %225 = vmatprep.subr.bf16.mxu0 %v184
    %226 = vmatpush1.bf16.msra.mxu0 %v183
    %227 = vmatprep.subr.bf16.mxu0 %v182
    %228 = vmatpush1.bf16.msra.mxu0 %v181
    %229 = vmatprep.subr.bf16.mxu0 0
    %230 = vmatpush2.bf16.msra.mxu0 0
    %231 = vmatprep.subr.bf16.mxu0 0
    %232 = vmatpush2.bf16.msra.mxu0 0
    %233 = vmatprep.subr.bf16.mxu0 0
    %234 = vmatpush2.bf16.msra.mxu0 0
    %235 = vmatprep.subr.bf16.mxu0 0
    %236 = vmatpush2.bf16.msra.mxu0 0
    %237 = vmatprep.subr.bf16.mxu0 0
    %238 = vmatpush2.bf16.msra.mxu0 0
    %239 = vmatprep.subr.bf16.mxu0 0
    %240 = vmatpush2.bf16.msra.mxu0 0
    %241 = vmatprep.subr.bf16.mxu0 0
    %242 = vmatpush2.bf16.msra.mxu0 0
    %243 = vmatprep.subr.bf16.mxu0 0
    %244 = vmatpush2.bf16.msra.mxu0 0
    %245 = vmatprep.mubr.bf16.mxu0 0
    %246 = vmatmul.mubr.bf16.gmra.mxu0 %v131
    %v247 = vpop.f32.mrf.mxu0
    %v248 = vadd.f32 %v120, %v247
    %v249 = vpop.f32.mrf.mxu0
    %v250 = vadd.f32 %v124, %v249
    %v251 = vpop.f32.mrf.mxu0
    %v252 = vadd.f32 %v120, %v251
    %v253 = vpop.f32.mrf.mxu0
    %v254 = vadd.f32 %v124, %v253
    %255 = vdwg.mxu0
    %v256 = vpack.c.bf16 %v252, %v248
    %v257 = vpack.c.bf16 %v254, %v250
    %v260 = vunpack.c.l.b16 %v256
    %v261 = vunpack.c.l.b16 %v257
    %v262 = vunpack.c.h.b16 %v256
    %v263 = vunpack.c.h.b16 %v257
    %v264 = vpack.c.b16 %v261, %v260
    %v265 = vpack.c.b16 %v263, %v262
    %268 = vst [vmem:[#allocation12] sm:$0xff] %v264
    %269 = vst [vmem:[#allocation12 + $0x8] sm:$0xff] %v265
    %v270 = vld [vmem:[#allocation7] sm:$0xff]
    %v271 = vld [vmem:[#allocation7 + $0x8] sm:$0xff]
    %v272 = vld [vmem:[#allocation7 + $0x10] sm:$0xff]
    %v273 = vld [vmem:[#allocation7 + $0x18] sm:$0xff]
    %v274 = vld [vmem:[#allocation7 + $0x20] sm:$0xff]
    %v275 = vld [vmem:[#allocation7 + $0x28] sm:$0xff]
    %v276 = vld [vmem:[#allocation7 + $0x30] sm:$0xff]
    %v277 = vld [vmem:[#allocation7 + $0x38] sm:$0xff]
    %v278 = vld [vmem:[#allocation7 + $0x40] sm:$0xff]
    %v279 = vld [vmem:[#allocation7 + $0x48] sm:$0xff]
    %v280 = vld [vmem:[#allocation7 + $0x50] sm:$0xff]
    %v281 = vld [vmem:[#allocation7 + $0x58] sm:$0xff]
    %v282 = vld [vmem:[#allocation7 + $0x60] sm:$0xff]
    %v283 = vld [vmem:[#allocation7 + $0x68] sm:$0xff]
    %v284 = vld [vmem:[#allocation7 + $0x70] sm:$0xff]
    %v285 = vld [vmem:[#allocation7 + $0x78] sm:$0xff]
    %v286 = vld [vmem:[#allocation7 + $0x80] sm:$0xff]
    %v287 = vld [vmem:[#allocation7 + $0x88] sm:$0xff]
    %v288 = vld [vmem:[#allocation7 + $0x90] sm:$0xff]
    %v289 = vld [vmem:[#allocation7 + $0x98] sm:$0xff]
    %v290 = vld [vmem:[#allocation7 + $0xa0] sm:$0xff]
    %v291 = vld [vmem:[#allocation7 + $0xa8] sm:$0xff]
    %v292 = vld [vmem:[#allocation7 + $0xb0] sm:$0xff]
    %v293 = vld [vmem:[#allocation7 + $0xb8] sm:$0xff]
    %v294 = vld [vmem:[#allocation7 + $0xc0] sm:$0xff]
    %v295 = vld [vmem:[#allocation7 + $0xc8] sm:$0xff]
    %v296 = vld [vmem:[#allocation7 + $0xd0] sm:$0xff]
    %v297 = vld [vmem:[#allocation7 + $0xd8] sm:$0xff]
    %v298 = vld [vmem:[#allocation7 + $0xe0] sm:$0xff]
    %v299 = vld [vmem:[#allocation7 + $0xe8] sm:$0xff]
    %v300 = vld [vmem:[#allocation7 + $0xf0] sm:$0xff]
    %v301 = vld [vmem:[#allocation7 + $0xf8] sm:$0xff]
    %v302 = vld [vmem:[#allocation7 + $0x100] sm:$0xff]
    %v303 = vld [vmem:[#allocation7 + $0x108] sm:$0xff]
    %v304 = vld [vmem:[#allocation7 + $0x110] sm:$0xff]
    %v305 = vld [vmem:[#allocation7 + $0x118] sm:$0xff]
    %v306 = vld [vmem:[#allocation7 + $0x120] sm:$0xff]
    %v307 = vld [vmem:[#allocation7 + $0x128] sm:$0xff]
    %v308 = vld [vmem:[#allocation7 + $0x130] sm:$0xff]
    %v309 = vld [vmem:[#allocation7 + $0x138] sm:$0xff]
    %v310 = vld [vmem:[#allocation7 + $0x140] sm:$0xff]
    %v311 = vld [vmem:[#allocation7 + $0x148] sm:$0xff]
    %v312 = vld [vmem:[#allocation7 + $0x150] sm:$0xff]
    %v313 = vld [vmem:[#allocation7 + $0x158] sm:$0xff]
    %v314 = vld [vmem:[#allocation7 + $0x160] sm:$0xff]
    %v315 = vld [vmem:[#allocation7 + $0x168] sm:$0xff]
    %v316 = vld [vmem:[#allocation7 + $0x170] sm:$0xff]
    %v317 = vld [vmem:[#allocation7 + $0x178] sm:$0xff]
    %v318 = vld [vmem:[#allocation7 + $0x180] sm:$0xff]
    %v319 = vld [vmem:[#allocation7 + $0x188] sm:$0xff]
    %v320 = vld [vmem:[#allocation7 + $0x190] sm:$0xff]
    %v321 = vld [vmem:[#allocation7 + $0x198] sm:$0xff]
    %v322 = vld [vmem:[#allocation7 + $0x1a0] sm:$0xff]
    %v323 = vld [vmem:[#allocation7 + $0x1a8] sm:$0xff]
    %v324 = vld [vmem:[#allocation7 + $0x1b0] sm:$0xff]
    %v325 = vld [vmem:[#allocation7 + $0x1b8] sm:$0xff]
    %v326 = vld [vmem:[#allocation7 + $0x1c0] sm:$0xff]
    %v327 = vld [vmem:[#allocation7 + $0x1c8] sm:$0xff]
    %v328 = vld [vmem:[#allocation7 + $0x1d0] sm:$0xff]
    %v329 = vld [vmem:[#allocation7 + $0x1d8] sm:$0xff]
    %v330 = vld [vmem:[#allocation7 + $0x1e0] sm:$0xff]
    %v331 = vld [vmem:[#allocation7 + $0x1e8] sm:$0xff]
    %v332 = vld [vmem:[#allocation7 + $0x1f0] sm:$0xff]
    %v333 = vld [vmem:[#allocation7 + $0x1f8] sm:$0xff]
    %v334 = vld [vmem:[#allocation7 + $0x200] sm:$0xff]
    %v335 = vld [vmem:[#allocation7 + $0x208] sm:$0xff]
    %v336 = vld [vmem:[#allocation7 + $0x210] sm:$0xff]
    %v337 = vld [vmem:[#allocation7 + $0x218] sm:$0xff]
    %v338 = vld [vmem:[#allocation7 + $0x220] sm:$0xff]
    %v339 = vld [vmem:[#allocation7 + $0x228] sm:$0xff]
    %v340 = vld [vmem:[#allocation7 + $0x230] sm:$0xff]
    %v341 = vld [vmem:[#allocation7 + $0x238] sm:$0xff]
    %v342 = vld [vmem:[#allocation7 + $0x240] sm:$0xff]
    %v343 = vld [vmem:[#allocation7 + $0x248] sm:$0xff]
    %v344 = vld [vmem:[#allocation7 + $0x250] sm:$0xff]
    %v345 = vld [vmem:[#allocation7 + $0x258] sm:$0xff]
    %v346 = vld [vmem:[#allocation7 + $0x260] sm:$0xff]
    %v347 = vld [vmem:[#allocation7 + $0x268] sm:$0xff]
    %v348 = vld [vmem:[#allocation7 + $0x270] sm:$0xff]
    %v349 = vld [vmem:[#allocation7 + $0x278] sm:$0xff]
    %v350 = vld [vmem:[#allocation7 + $0x280] sm:$0xff]
    %v351 = vld [vmem:[#allocation7 + $0x288] sm:$0xff]
    %v352 = vld [vmem:[#allocation7 + $0x290] sm:$0xff]
    %v353 = vld [vmem:[#allocation7 + $0x298] sm:$0xff]
    %v354 = vld [vmem:[#allocation7 + $0x2a0] sm:$0xff]
    %v355 = vld [vmem:[#allocation7 + $0x2a8] sm:$0xff]
    %v356 = vld [vmem:[#allocation7 + $0x2b0] sm:$0xff]
    %v357 = vld [vmem:[#allocation7 + $0x2b8] sm:$0xff]
    %v358 = vld [vmem:[#allocation7 + $0x2c0] sm:$0xff]
    %v359 = vld [vmem:[#allocation7 + $0x2c8] sm:$0xff]
    %v360 = vld [vmem:[#allocation7 + $0x2d0] sm:$0xff]
    %v361 = vld [vmem:[#allocation7 + $0x2d8] sm:$0xff]
    %v362 = vld [vmem:[#allocation7 + $0x2e0] sm:$0xff]
    %v363 = vld [vmem:[#allocation7 + $0x2e8] sm:$0xff]
    %v364 = vld [vmem:[#allocation7 + $0x2f0] sm:$0xff]
    %v365 = vld [vmem:[#allocation7 + $0x2f8] sm:$0xff]
    %v366 = vld [vmem:[#allocation7 + $0x300] sm:$0xff]
    %v367 = vld [vmem:[#allocation7 + $0x308] sm:$0xff]
    %v368 = vld [vmem:[#allocation7 + $0x310] sm:$0xff]
    %v369 = vld [vmem:[#allocation7 + $0x318] sm:$0xff]
    %v370 = vld [vmem:[#allocation7 + $0x320] sm:$0xff]
    %v371 = vld [vmem:[#allocation7 + $0x328] sm:$0xff]
    %v372 = vld [vmem:[#allocation7 + $0x330] sm:$0xff]
    %v373 = vld [vmem:[#allocation7 + $0x338] sm:$0xff]
    %v374 = vld [vmem:[#allocation7 + $0x340] sm:$0xff]
    %v375 = vld [vmem:[#allocation7 + $0x348] sm:$0xff]
    %v376 = vld [vmem:[#allocation7 + $0x350] sm:$0xff]
    %v377 = vld [vmem:[#allocation7 + $0x358] sm:$0xff]
    %v378 = vld [vmem:[#allocation7 + $0x360] sm:$0xff]
    %v379 = vld [vmem:[#allocation7 + $0x368] sm:$0xff]
    %v380 = vld [vmem:[#allocation7 + $0x370] sm:$0xff]
    %v381 = vld [vmem:[#allocation7 + $0x378] sm:$0xff]
    %v382 = vld [vmem:[#allocation7 + $0x380] sm:$0xff]
    %v383 = vld [vmem:[#allocation7 + $0x388] sm:$0xff]
    %v384 = vld [vmem:[#allocation7 + $0x390] sm:$0xff]
    %v385 = vld [vmem:[#allocation7 + $0x398] sm:$0xff]
    %v386 = vld [vmem:[#allocation7 + $0x3a0] sm:$0xff]
    %v387 = vld [vmem:[#allocation7 + $0x3a8] sm:$0xff]
    %v388 = vld [vmem:[#allocation7 + $0x3b0] sm:$0xff]
    %v389 = vld [vmem:[#allocation7 + $0x3b8] sm:$0xff]
    %v390 = vld [vmem:[#allocation7 + $0x3c0] sm:$0xff]
    %v391 = vld [vmem:[#allocation7 + $0x3c8] sm:$0xff]
    %v392 = vld [vmem:[#allocation7 + $0x3d0] sm:$0xff]
    %v393 = vld [vmem:[#allocation7 + $0x3d8] sm:$0xff]
    %v394 = vld [vmem:[#allocation7 + $0x3e0] sm:$0xff]
    %v395 = vld [vmem:[#allocation7 + $0x3e8] sm:$0xff]
    %v396 = vld [vmem:[#allocation7 + $0x3f0] sm:$0xff]
    %v397 = vld [vmem:[#allocation7 + $0x3f8] sm:$0xff]
    %v398 = vld [vmem:[#allocation8] sm:$0xff]
    %v400 = vlaneseq
    %v401 = vshrl.u32 %v400, 7
    %v402 = vsub.s32 0, %v401
    %v403 = vrot.slane %v398, %v402
    %v404 = vlaneseq
    %v405 = vshrl.u32 %v404, 7
    %v406 = vsub.s32 1, %v405
    %v407 = vrot.slane %v398, %v406
    %v408 = vlaneseq
    %v409 = vshrl.u32 %v408, 7
    %v410 = vsub.s32 2, %v409
    %v411 = vrot.slane %v398, %v410
    %v412 = vlaneseq
    %v413 = vshrl.u32 %v412, 7
    %v414 = vsub.s32 3, %v413
    %v415 = vrot.slane %v398, %v414
    %v416 = vlaneseq
    %v417 = vshrl.u32 %v416, 7
    %v418 = vsub.s32 4, %v417
    %v419 = vrot.slane %v398, %v418
    %v420 = vlaneseq
    %v421 = vshrl.u32 %v420, 7
    %v422 = vsub.s32 5, %v421
    %v423 = vrot.slane %v398, %v422
    %v424 = vlaneseq
    %v425 = vshrl.u32 %v424, 7
    %v426 = vsub.s32 6, %v425
    %v427 = vrot.slane %v398, %v426
    %v428 = vlaneseq
    %v429 = vshrl.u32 %v428, 7
    %v430 = vsub.s32 7, %v429
    %v431 = vrot.slane %v398, %v430
    %v568 = vunpack.c.l.b16 %v270
    %v569 = vunpack.c.h.b16 %v270
    %v570 = vunpack.c.l.b16 %v271
    %v571 = vunpack.c.h.b16 %v271
    %v572 = vunpack.c.l.b16 %v272
    %v573 = vunpack.c.h.b16 %v272
    %v574 = vunpack.c.l.b16 %v273
    %v575 = vunpack.c.h.b16 %v273
    %v576 = vunpack.c.l.b16 %v274
    %v577 = vunpack.c.h.b16 %v274
    %v578 = vunpack.c.l.b16 %v275
    %v579 = vunpack.c.h.b16 %v275
    %v580 = vunpack.c.l.b16 %v276
    %v581 = vunpack.c.h.b16 %v276
    %v582 = vunpack.c.l.b16 %v277
    %v583 = vunpack.c.h.b16 %v277
    %v584 = vunpack.c.l.b16 %v278
    %v585 = vunpack.c.h.b16 %v278
    %v586 = vunpack.c.l.b16 %v279
    %v587 = vunpack.c.h.b16 %v279
    %v588 = vunpack.c.l.b16 %v280
    %v589 = vunpack.c.h.b16 %v280
    %v590 = vunpack.c.l.b16 %v281
    %v591 = vunpack.c.h.b16 %v281
    %v592 = vunpack.c.l.b16 %v282
    %v593 = vunpack.c.h.b16 %v282
    %v594 = vunpack.c.l.b16 %v283
    %v595 = vunpack.c.h.b16 %v283
    %v596 = vunpack.c.l.b16 %v284
    %v597 = vunpack.c.h.b16 %v284
    %v598 = vunpack.c.l.b16 %v285
    %v599 = vunpack.c.h.b16 %v285
    %v600 = vunpack.c.l.b16 %v286
    %v601 = vunpack.c.h.b16 %v286
    %v602 = vunpack.c.l.b16 %v287
    %v603 = vunpack.c.h.b16 %v287
    %v604 = vunpack.c.l.b16 %v288
    %v605 = vunpack.c.h.b16 %v288
    %v606 = vunpack.c.l.b16 %v289
    %v607 = vunpack.c.h.b16 %v289
    %v608 = vunpack.c.l.b16 %v290
    %v609 = vunpack.c.h.b16 %v290
    %v610 = vunpack.c.l.b16 %v291
    %v611 = vunpack.c.h.b16 %v291
    %v612 = vunpack.c.l.b16 %v292
    %v613 = vunpack.c.h.b16 %v292
    %v614 = vunpack.c.l.b16 %v293
    %v615 = vunpack.c.h.b16 %v293
    %v616 = vunpack.c.l.b16 %v294
    %v617 = vunpack.c.h.b16 %v294
    %v618 = vunpack.c.l.b16 %v295
    %v619 = vunpack.c.h.b16 %v295
    %v620 = vunpack.c.l.b16 %v296
    %v621 = vunpack.c.h.b16 %v296
    %v622 = vunpack.c.l.b16 %v297
    %v623 = vunpack.c.h.b16 %v297
    %v624 = vunpack.c.l.b16 %v298
    %v625 = vunpack.c.h.b16 %v298
    %v626 = vunpack.c.l.b16 %v299
    %v627 = vunpack.c.h.b16 %v299
    %v628 = vunpack.c.l.b16 %v300
    %v629 = vunpack.c.h.b16 %v300
    %v630 = vunpack.c.l.b16 %v301
    %v631 = vunpack.c.h.b16 %v301
    %v632 = vunpack.c.l.b16 %v302
    %v633 = vunpack.c.h.b16 %v302
    %v634 = vunpack.c.l.b16 %v303
    %v635 = vunpack.c.h.b16 %v303
    %v636 = vunpack.c.l.b16 %v304
    %v637 = vunpack.c.h.b16 %v304
    %v638 = vunpack.c.l.b16 %v305
    %v639 = vunpack.c.h.b16 %v305
    %v640 = vunpack.c.l.b16 %v306
    %v641 = vunpack.c.h.b16 %v306
    %v642 = vunpack.c.l.b16 %v307
    %v643 = vunpack.c.h.b16 %v307
    %v644 = vunpack.c.l.b16 %v308
    %v645 = vunpack.c.h.b16 %v308
    %v646 = vunpack.c.l.b16 %v309
    %v647 = vunpack.c.h.b16 %v309
    %v648 = vunpack.c.l.b16 %v310
    %v649 = vunpack.c.h.b16 %v310
    %v650 = vunpack.c.l.b16 %v311
    %v651 = vunpack.c.h.b16 %v311
    %v652 = vunpack.c.l.b16 %v312
    %v653 = vunpack.c.h.b16 %v312
    %v654 = vunpack.c.l.b16 %v313
    %v655 = vunpack.c.h.b16 %v313
    %v656 = vunpack.c.l.b16 %v314
    %v657 = vunpack.c.h.b16 %v314
    %v658 = vunpack.c.l.b16 %v315
    %v659 = vunpack.c.h.b16 %v315
    %v660 = vunpack.c.l.b16 %v316
    %v661 = vunpack.c.h.b16 %v316
    %v662 = vunpack.c.l.b16 %v317
    %v663 = vunpack.c.h.b16 %v317
    %v664 = vunpack.c.l.b16 %v318
    %v665 = vunpack.c.h.b16 %v318
    %v666 = vunpack.c.l.b16 %v319
    %v667 = vunpack.c.h.b16 %v319
    %v668 = vunpack.c.l.b16 %v320
    %v669 = vunpack.c.h.b16 %v320
    %v670 = vunpack.c.l.b16 %v321
    %v671 = vunpack.c.h.b16 %v321
    %v672 = vunpack.c.l.b16 %v322
    %v673 = vunpack.c.h.b16 %v322
    %v674 = vunpack.c.l.b16 %v323
    %v675 = vunpack.c.h.b16 %v323
    %v676 = vunpack.c.l.b16 %v324
    %v677 = vunpack.c.h.b16 %v324
    %v678 = vunpack.c.l.b16 %v325
    %v679 = vunpack.c.h.b16 %v325
    %v680 = vunpack.c.l.b16 %v326
    %v681 = vunpack.c.h.b16 %v326
    %v682 = vunpack.c.l.b16 %v327
    %v683 = vunpack.c.h.b16 %v327
    %v684 = vunpack.c.l.b16 %v328
    %v685 = vunpack.c.h.b16 %v328
    %v686 = vunpack.c.l.b16 %v329
    %v687 = vunpack.c.h.b16 %v329
    %v688 = vunpack.c.l.b16 %v330
    %v689 = vunpack.c.h.b16 %v330
    %v690 = vunpack.c.l.b16 %v331
    %v691 = vunpack.c.h.b16 %v331
    %v692 = vunpack.c.l.b16 %v332
    %v693 = vunpack.c.h.b16 %v332
    %v694 = vunpack.c.l.b16 %v333
    %v695 = vunpack.c.h.b16 %v333
    %v696 = vunpack.c.l.b16 %v334
    %v697 = vunpack.c.h.b16 %v334
    %v698 = vunpack.c.l.b16 %v335
    %v699 = vunpack.c.h.b16 %v335
    %v700 = vunpack.c.l.b16 %v336
    %v701 = vunpack.c.h.b16 %v336
    %v702 = vunpack.c.l.b16 %v337
    %v703 = vunpack.c.h.b16 %v337
    %v704 = vunpack.c.l.b16 %v338
    %v705 = vunpack.c.h.b16 %v338
    %v706 = vunpack.c.l.b16 %v339
    %v707 = vunpack.c.h.b16 %v339
    %v708 = vunpack.c.l.b16 %v340
    %v709 = vunpack.c.h.b16 %v340
    %v710 = vunpack.c.l.b16 %v341
    %v711 = vunpack.c.h.b16 %v341
    %v712 = vunpack.c.l.b16 %v342
    %v713 = vunpack.c.h.b16 %v342
    %v714 = vunpack.c.l.b16 %v343
    %v715 = vunpack.c.h.b16 %v343
    %v716 = vunpack.c.l.b16 %v344
    %v717 = vunpack.c.h.b16 %v344
    %v718 = vunpack.c.l.b16 %v345
    %v719 = vunpack.c.h.b16 %v345
    %v720 = vunpack.c.l.b16 %v346
    %v721 = vunpack.c.h.b16 %v346
    %v722 = vunpack.c.l.b16 %v347
    %v723 = vunpack.c.h.b16 %v347
    %v724 = vunpack.c.l.b16 %v348
    %v725 = vunpack.c.h.b16 %v348
    %v726 = vunpack.c.l.b16 %v349
    %v727 = vunpack.c.h.b16 %v349
    %v728 = vunpack.c.l.b16 %v350
    %v729 = vunpack.c.h.b16 %v350
    %v730 = vunpack.c.l.b16 %v351
    %v731 = vunpack.c.h.b16 %v351
    %v732 = vunpack.c.l.b16 %v352
    %v733 = vunpack.c.h.b16 %v352
    %v734 = vunpack.c.l.b16 %v353
    %v735 = vunpack.c.h.b16 %v353
    %v736 = vunpack.c.l.b16 %v354
    %v737 = vunpack.c.h.b16 %v354
    %v738 = vunpack.c.l.b16 %v355
    %v739 = vunpack.c.h.b16 %v355
    %v740 = vunpack.c.l.b16 %v356
    %v741 = vunpack.c.h.b16 %v356
    %v742 = vunpack.c.l.b16 %v357
    %v743 = vunpack.c.h.b16 %v357
    %v744 = vunpack.c.l.b16 %v358
    %v745 = vunpack.c.h.b16 %v358
    %v746 = vunpack.c.l.b16 %v359
    %v747 = vunpack.c.h.b16 %v359
    %v748 = vunpack.c.l.b16 %v360
    %v749 = vunpack.c.h.b16 %v360
    %v750 = vunpack.c.l.b16 %v361
    %v751 = vunpack.c.h.b16 %v361
    %v752 = vunpack.c.l.b16 %v362
    %v753 = vunpack.c.h.b16 %v362
    %v754 = vunpack.c.l.b16 %v363
    %v755 = vunpack.c.h.b16 %v363
    %v756 = vunpack.c.l.b16 %v364
    %v757 = vunpack.c.h.b16 %v364
    %v758 = vunpack.c.l.b16 %v365
    %v759 = vunpack.c.h.b16 %v365
    %v760 = vunpack.c.l.b16 %v366
    %v761 = vunpack.c.h.b16 %v366
    %v762 = vunpack.c.l.b16 %v367
    %v763 = vunpack.c.h.b16 %v367
    %v764 = vunpack.c.l.b16 %v368
    %v765 = vunpack.c.h.b16 %v368
    %v766 = vunpack.c.l.b16 %v369
    %v767 = vunpack.c.h.b16 %v369
    %v768 = vunpack.c.l.b16 %v370
    %v769 = vunpack.c.h.b16 %v370
    %v770 = vunpack.c.l.b16 %v371
    %v771 = vunpack.c.h.b16 %v371
    %v772 = vunpack.c.l.b16 %v372
    %v773 = vunpack.c.h.b16 %v372
    %v774 = vunpack.c.l.b16 %v373
    %v775 = vunpack.c.h.b16 %v373
    %v776 = vunpack.c.l.b16 %v374
    %v777 = vunpack.c.h.b16 %v374
    %v778 = vunpack.c.l.b16 %v375
    %v779 = vunpack.c.h.b16 %v375
    %v780 = vunpack.c.l.b16 %v376
    %v781 = vunpack.c.h.b16 %v376
    %v782 = vunpack.c.l.b16 %v377
    %v783 = vunpack.c.h.b16 %v377
    %v784 = vunpack.c.l.b16 %v378
    %v785 = vunpack.c.h.b16 %v378
    %v786 = vunpack.c.l.b16 %v379
    %v787 = vunpack.c.h.b16 %v379
    %v788 = vunpack.c.l.b16 %v380
    %v789 = vunpack.c.h.b16 %v380
    %v790 = vunpack.c.l.b16 %v381
    %v791 = vunpack.c.h.b16 %v381
    %v792 = vunpack.c.l.b16 %v382
    %v793 = vunpack.c.h.b16 %v382
    %v794 = vunpack.c.l.b16 %v383
    %v795 = vunpack.c.h.b16 %v383
    %v796 = vunpack.c.l.b16 %v384
    %v797 = vunpack.c.h.b16 %v384
    %v798 = vunpack.c.l.b16 %v385
    %v799 = vunpack.c.h.b16 %v385
    %v800 = vunpack.c.l.b16 %v386
    %v801 = vunpack.c.h.b16 %v386
    %v802 = vunpack.c.l.b16 %v387
    %v803 = vunpack.c.h.b16 %v387
    %v804 = vunpack.c.l.b16 %v388
    %v805 = vunpack.c.h.b16 %v388
    %v806 = vunpack.c.l.b16 %v389
    %v807 = vunpack.c.h.b16 %v389
    %v808 = vunpack.c.l.b16 %v390
    %v809 = vunpack.c.h.b16 %v390
    %v810 = vunpack.c.l.b16 %v391
    %v811 = vunpack.c.h.b16 %v391
    %v812 = vunpack.c.l.b16 %v392
    %v813 = vunpack.c.h.b16 %v392
    %v814 = vunpack.c.l.b16 %v393
    %v815 = vunpack.c.h.b16 %v393
    %v816 = vunpack.c.l.b16 %v394
    %v817 = vunpack.c.h.b16 %v394
    %v818 = vunpack.c.l.b16 %v395
    %v819 = vunpack.c.h.b16 %v395
    %v820 = vunpack.c.l.b16 %v396
    %v821 = vunpack.c.h.b16 %v396
    %v822 = vunpack.c.l.b16 %v397
    %v823 = vunpack.c.h.b16 %v397
    %v824 = vpack.c.b16 %v576, %v568
    %v825 = vpack.c.b16 %v577, %v569
    %v826 = vpack.c.b16 %v578, %v570
    %v827 = vpack.c.b16 %v579, %v571
    %v828 = vpack.c.b16 %v580, %v572
    %v829 = vpack.c.b16 %v581, %v573
    %v830 = vpack.c.b16 %v582, %v574
    %v831 = vpack.c.b16 %v583, %v575
    %v832 = vpack.c.b16 %v592, %v584
    %v833 = vpack.c.b16 %v593, %v585
    %v834 = vpack.c.b16 %v594, %v586
    %v835 = vpack.c.b16 %v595, %v587
    %v836 = vpack.c.b16 %v596, %v588
    %v837 = vpack.c.b16 %v597, %v589
    %v838 = vpack.c.b16 %v598, %v590
    %v839 = vpack.c.b16 %v599, %v591
    %v840 = vpack.c.b16 %v608, %v600
    %v841 = vpack.c.b16 %v609, %v601
    %v842 = vpack.c.b16 %v610, %v602
    %v843 = vpack.c.b16 %v611, %v603
    %v844 = vpack.c.b16 %v612, %v604
    %v845 = vpack.c.b16 %v613, %v605
    %v846 = vpack.c.b16 %v614, %v606
    %v847 = vpack.c.b16 %v615, %v607
    %v848 = vpack.c.b16 %v624, %v616
    %v849 = vpack.c.b16 %v625, %v617
    %v850 = vpack.c.b16 %v626, %v618
    %v851 = vpack.c.b16 %v627, %v619
    %v852 = vpack.c.b16 %v628, %v620
    %v853 = vpack.c.b16 %v629, %v621
    %v854 = vpack.c.b16 %v630, %v622
    %v855 = vpack.c.b16 %v631, %v623
    %v856 = vpack.c.b16 %v640, %v632
    %v857 = vpack.c.b16 %v641, %v633
    %v858 = vpack.c.b16 %v642, %v634
    %v859 = vpack.c.b16 %v643, %v635
    %v860 = vpack.c.b16 %v644, %v636
    %v861 = vpack.c.b16 %v645, %v637
    %v862 = vpack.c.b16 %v646, %v638
    %v863 = vpack.c.b16 %v647, %v639
    %v864 = vpack.c.b16 %v656, %v648
    %v865 = vpack.c.b16 %v657, %v649
    %v866 = vpack.c.b16 %v658, %v650
    %v867 = vpack.c.b16 %v659, %v651
    %v868 = vpack.c.b16 %v660, %v652
    %v869 = vpack.c.b16 %v661, %v653
    %v870 = vpack.c.b16 %v662, %v654
    %v871 = vpack.c.b16 %v663, %v655
    %v872 = vpack.c.b16 %v672, %v664
    %v873 = vpack.c.b16 %v673, %v665
    %v874 = vpack.c.b16 %v674, %v666
    %v875 = vpack.c.b16 %v675, %v667
    %v876 = vpack.c.b16 %v676, %v668
    %v877 = vpack.c.b16 %v677, %v669
    %v878 = vpack.c.b16 %v678, %v670
    %v879 = vpack.c.b16 %v679, %v671
    %v880 = vpack.c.b16 %v688, %v680
    %v881 = vpack.c.b16 %v689, %v681
    %v882 = vpack.c.b16 %v690, %v682
    %v883 = vpack.c.b16 %v691, %v683
    %v884 = vpack.c.b16 %v692, %v684
    %v885 = vpack.c.b16 %v693, %v685
    %v886 = vpack.c.b16 %v694, %v686
    %v887 = vpack.c.b16 %v695, %v687
    %v888 = vpack.c.b16 %v704, %v696
    %v889 = vpack.c.b16 %v705, %v697
    %v890 = vpack.c.b16 %v706, %v698
    %v891 = vpack.c.b16 %v707, %v699
    %v892 = vpack.c.b16 %v708, %v700
    %v893 = vpack.c.b16 %v709, %v701
    %v894 = vpack.c.b16 %v710, %v702
    %v895 = vpack.c.b16 %v711, %v703
    %v896 = vpack.c.b16 %v720, %v712
    %v897 = vpack.c.b16 %v721, %v713
    %v898 = vpack.c.b16 %v722, %v714
    %v899 = vpack.c.b16 %v723, %v715
    %v900 = vpack.c.b16 %v724, %v716
    %v901 = vpack.c.b16 %v725, %v717
    %v902 = vpack.c.b16 %v726, %v718
    %v903 = vpack.c.b16 %v727, %v719
    %v904 = vpack.c.b16 %v736, %v728
    %v905 = vpack.c.b16 %v737, %v729
    %v906 = vpack.c.b16 %v738, %v730
    %v907 = vpack.c.b16 %v739, %v731
    %v908 = vpack.c.b16 %v740, %v732
    %v909 = vpack.c.b16 %v741, %v733
    %v910 = vpack.c.b16 %v742, %v734
    %v911 = vpack.c.b16 %v743, %v735
    %v912 = vpack.c.b16 %v752, %v744
    %v913 = vpack.c.b16 %v753, %v745
    %v914 = vpack.c.b16 %v754, %v746
    %v915 = vpack.c.b16 %v755, %v747
    %v916 = vpack.c.b16 %v756, %v748
    %v917 = vpack.c.b16 %v757, %v749
    %v918 = vpack.c.b16 %v758, %v750
    %v919 = vpack.c.b16 %v759, %v751
    %v920 = vpack.c.b16 %v768, %v760
    %v921 = vpack.c.b16 %v769, %v761
    %v922 = vpack.c.b16 %v770, %v762
    %v923 = vpack.c.b16 %v771, %v763
    %v924 = vpack.c.b16 %v772, %v764
    %v925 = vpack.c.b16 %v773, %v765
    %v926 = vpack.c.b16 %v774, %v766
    %v927 = vpack.c.b16 %v775, %v767
    %v928 = vpack.c.b16 %v784, %v776
    %v929 = vpack.c.b16 %v785, %v777
    %v930 = vpack.c.b16 %v786, %v778
    %v931 = vpack.c.b16 %v787, %v779
    %v932 = vpack.c.b16 %v788, %v780
    %v933 = vpack.c.b16 %v789, %v781
    %v934 = vpack.c.b16 %v790, %v782
    %v935 = vpack.c.b16 %v791, %v783
    %v936 = vpack.c.b16 %v800, %v792
    %v937 = vpack.c.b16 %v801, %v793
    %v938 = vpack.c.b16 %v802, %v794
    %v939 = vpack.c.b16 %v803, %v795
    %v940 = vpack.c.b16 %v804, %v796
    %v941 = vpack.c.b16 %v805, %v797
    %v942 = vpack.c.b16 %v806, %v798
    %v943 = vpack.c.b16 %v807, %v799
    %v944 = vpack.c.b16 %v816, %v808
    %v945 = vpack.c.b16 %v817, %v809
    %v946 = vpack.c.b16 %v818, %v810
    %v947 = vpack.c.b16 %v819, %v811
    %v948 = vpack.c.b16 %v820, %v812
    %v949 = vpack.c.b16 %v821, %v813
    %v950 = vpack.c.b16 %v822, %v814
    %v951 = vpack.c.b16 %v823, %v815
    %1080 = vmatprep.subr.bf16.mxu0 %v881
    %1081 = vmatpush1.bf16.msra.mxu0 %v880
    %1082 = vmatprep.subr.bf16.mxu0 %v873
    %1083 = vmatpush1.bf16.msra.mxu0 %v872
    %1084 = vmatprep.subr.bf16.mxu0 %v865
    %1085 = vmatpush1.bf16.msra.mxu0 %v864
    %1086 = vmatprep.subr.bf16.mxu0 %v857
    %1087 = vmatpush1.bf16.msra.mxu0 %v856
    %1088 = vmatprep.subr.bf16.mxu0 %v849
    %1089 = vmatpush1.bf16.msra.mxu0 %v848
    %1090 = vmatprep.subr.bf16.mxu0 %v841
    %1091 = vmatpush1.bf16.msra.mxu0 %v840
    %1092 = vmatprep.subr.bf16.mxu0 %v833
    %1093 = vmatpush1.bf16.msra.mxu0 %v832
    %1094 = vmatprep.subr.bf16.mxu0 %v825
    %1095 = vmatpush1.bf16.msra.mxu0 %v824
    %1096 = vmatprep.subr.bf16.mxu0 %v945
    %1097 = vmatpush2.bf16.msra.mxu0 %v944
    %1098 = vmatprep.subr.bf16.mxu0 %v937
    %1099 = vmatpush2.bf16.msra.mxu0 %v936
    %1100 = vmatprep.subr.bf16.mxu0 %v929
    %1101 = vmatpush2.bf16.msra.mxu0 %v928
    %1102 = vmatprep.subr.bf16.mxu0 %v921
    %1103 = vmatpush2.bf16.msra.mxu0 %v920
    %1104 = vmatprep.subr.bf16.mxu0 %v913
    %1105 = vmatpush2.bf16.msra.mxu0 %v912
    %1106 = vmatprep.subr.bf16.mxu0 %v905
    %1107 = vmatpush2.bf16.msra.mxu0 %v904
    %1108 = vmatprep.subr.bf16.mxu0 %v897
    %1109 = vmatpush2.bf16.msra.mxu0 %v896
    %1110 = vmatprep.subr.bf16.mxu0 %v889
    %1111 = vmatpush2.bf16.msra.mxu0 %v888
    %1112 = vmatprep.mubr.bf16.mxu0 %v257
    %1113 = vmatmul.mubr.bf16.gmra.mxu0 %v256
    %v1114 = vpop.f32.mrf.mxu0
    %v1115 = vadd.f32 %v403, %v1114
    %v1116 = vpop.f32.mrf.mxu0
    %v1117 = vadd.f32 %v407, %v1116
    %v1118 = vpop.f32.mrf.mxu0
    %v1119 = vadd.f32 %v403, %v1118
    %v1120 = vpop.f32.mrf.mxu0
    %v1121 = vadd.f32 %v407, %v1120
    %1122 = vdwg.mxu0
    %1123 = vmatprep.subr.bf16.mxu0 %v883
    %1124 = vmatpush1.bf16.msra.mxu0 %v882
    %1125 = vmatprep.subr.bf16.mxu0 %v875
    %1126 = vmatpush1.bf16.msra.mxu0 %v874
    %1127 = vmatprep.subr.bf16.mxu0 %v867
    %1128 = vmatpush1.bf16.msra.mxu0 %v866
    %1129 = vmatprep.subr.bf16.mxu0 %v859
    %1130 = vmatpush1.bf16.msra.mxu0 %v858
    %1131 = vmatprep.subr.bf16.mxu0 %v851
    %1132 = vmatpush1.bf16.msra.mxu0 %v850
    %1133 = vmatprep.subr.bf16.mxu0 %v843
    %1134 = vmatpush1.bf16.msra.mxu0 %v842
    %1135 = vmatprep.subr.bf16.mxu0 %v835
    %1136 = vmatpush1.bf16.msra.mxu0 %v834
    %1137 = vmatprep.subr.bf16.mxu0 %v827
    %1138 = vmatpush1.bf16.msra.mxu0 %v826
    %1139 = vmatprep.subr.bf16.mxu0 %v947
    %1140 = vmatpush2.bf16.msra.mxu0 %v946
    %1141 = vmatprep.subr.bf16.mxu0 %v939
    %1142 = vmatpush2.bf16.msra.mxu0 %v938
    %1143 = vmatprep.subr.bf16.mxu0 %v931
    %1144 = vmatpush2.bf16.msra.mxu0 %v930
    %1145 = vmatprep.subr.bf16.mxu0 %v923
    %1146 = vmatpush2.bf16.msra.mxu0 %v922
    %1147 = vmatprep.subr.bf16.mxu0 %v915
    %1148 = vmatpush2.bf16.msra.mxu0 %v914
    %1149 = vmatprep.subr.bf16.mxu0 %v907
    %1150 = vmatpush2.bf16.msra.mxu0 %v906
    %1151 = vmatprep.subr.bf16.mxu0 %v899
    %1152 = vmatpush2.bf16.msra.mxu0 %v898
    %1153 = vmatprep.subr.bf16.mxu0 %v891
    %1154 = vmatpush2.bf16.msra.mxu0 %v890
    %1155 = vmatprep.mubr.bf16.mxu0 %v257
    %1156 = vmatmul.mubr.bf16.gmra.mxu0 %v256
    %v1157 = vpop.f32.mrf.mxu0
    %v1158 = vadd.f32 %v411, %v1157
    %v1159 = vpop.f32.mrf.mxu0
    %v1160 = vadd.f32 %v415, %v1159
    %v1161 = vpop.f32.mrf.mxu0
    %v1162 = vadd.f32 %v411, %v1161
    %v1163 = vpop.f32.mrf.mxu0
    %v1164 = vadd.f32 %v415, %v1163
    %1165 = vdwg.mxu0
    %1166 = vmatprep.subr.bf16.mxu0 %v885
    %1167 = vmatpush1.bf16.msra.mxu0 %v884
    %1168 = vmatprep.subr.bf16.mxu0 %v877
    %1169 = vmatpush1.bf16.msra.mxu0 %v876
    %1170 = vmatprep.subr.bf16.mxu0 %v869
    %1171 = vmatpush1.bf16.msra.mxu0 %v868
    %1172 = vmatprep.subr.bf16.mxu0 %v861
    %1173 = vmatpush1.bf16.msra.mxu0 %v860
    %1174 = vmatprep.subr.bf16.mxu0 %v853
    %1175 = vmatpush1.bf16.msra.mxu0 %v852
    %1176 = vmatprep.subr.bf16.mxu0 %v845
    %1177 = vmatpush1.bf16.msra.mxu0 %v844
    %1178 = vmatprep.subr.bf16.mxu0 %v837
    %1179 = vmatpush1.bf16.msra.mxu0 %v836
    %1180 = vmatprep.subr.bf16.mxu0 %v829
    %1181 = vmatpush1.bf16.msra.mxu0 %v828
    %1182 = vmatprep.subr.bf16.mxu0 %v949
    %1183 = vmatpush2.bf16.msra.mxu0 %v948
    %1184 = vmatprep.subr.bf16.mxu0 %v941
    %1185 = vmatpush2.bf16.msra.mxu0 %v940
    %1186 = vmatprep.subr.bf16.mxu0 %v933
    %1187 = vmatpush2.bf16.msra.mxu0 %v932
    %1188 = vmatprep.subr.bf16.mxu0 %v925
    %1189 = vmatpush2.bf16.msra.mxu0 %v924
    %1190 = vmatprep.subr.bf16.mxu0 %v917
    %1191 = vmatpush2.bf16.msra.mxu0 %v916
    %1192 = vmatprep.subr.bf16.mxu0 %v909
    %1193 = vmatpush2.bf16.msra.mxu0 %v908
    %1194 = vmatprep.subr.bf16.mxu0 %v901
    %1195 = vmatpush2.bf16.msra.mxu0 %v900
    %1196 = vmatprep.subr.bf16.mxu0 %v893
    %1197 = vmatpush2.bf16.msra.mxu0 %v892
    %1198 = vmatprep.mubr.bf16.mxu0 %v257
    %1199 = vmatmul.mubr.bf16.gmra.mxu0 %v256
    %v1200 = vpop.f32.mrf.mxu0
    %v1201 = vadd.f32 %v419, %v1200
    %v1202 = vpop.f32.mrf.mxu0
    %v1203 = vadd.f32 %v423, %v1202
    %v1204 = vpop.f32.mrf.mxu0
    %v1205 = vadd.f32 %v419, %v1204
    %v1206 = vpop.f32.mrf.mxu0
    %v1207 = vadd.f32 %v423, %v1206
    %1208 = vdwg.mxu0
    %1209 = vmatprep.subr.bf16.mxu0 %v887
    %1210 = vmatpush1.bf16.msra.mxu0 %v886
    %1211 = vmatprep.subr.bf16.mxu0 %v879
    %1212 = vmatpush1.bf16.msra.mxu0 %v878
    %1213 = vmatprep.subr.bf16.mxu0 %v871
    %1214 = vmatpush1.bf16.msra.mxu0 %v870
    %1215 = vmatprep.subr.bf16.mxu0 %v863
    %1216 = vmatpush1.bf16.msra.mxu0 %v862
    %1217 = vmatprep.subr.bf16.mxu0 %v855
    %1218 = vmatpush1.bf16.msra.mxu0 %v854
    %1219 = vmatprep.subr.bf16.mxu0 %v847
    %1220 = vmatpush1.bf16.msra.mxu0 %v846
    %1221 = vmatprep.subr.bf16.mxu0 %v839
    %1222 = vmatpush1.bf16.msra.mxu0 %v838
    %1223 = vmatprep.subr.bf16.mxu0 %v831
    %1224 = vmatpush1.bf16.msra.mxu0 %v830
    %1225 = vmatprep.subr.bf16.mxu0 %v951
    %1226 = vmatpush2.bf16.msra.mxu0 %v950
    %1227 = vmatprep.subr.bf16.mxu0 %v943
    %1228 = vmatpush2.bf16.msra.mxu0 %v942
    %1229 = vmatprep.subr.bf16.mxu0 %v935
    %1230 = vmatpush2.bf16.msra.mxu0 %v934
    %1231 = vmatprep.subr.bf16.mxu0 %v927
    %1232 = vmatpush2.bf16.msra.mxu0 %v926
    %1233 = vmatprep.subr.bf16.mxu0 %v919
    %1234 = vmatpush2.bf16.msra.mxu0 %v918
    %1235 = vmatprep.subr.bf16.mxu0 %v911
    %1236 = vmatpush2.bf16.msra.mxu0 %v910
    %1237 = vmatprep.subr.bf16.mxu0 %v903
    %1238 = vmatpush2.bf16.msra.mxu0 %v902
    %1239 = vmatprep.subr.bf16.mxu0 %v895
    %1240 = vmatpush2.bf16.msra.mxu0 %v894
    %1241 = vmatprep.mubr.bf16.mxu0 %v257
    %1242 = vmatmul.mubr.bf16.gmra.mxu0 %v256
    %v1243 = vpop.f32.mrf.mxu0
    %v1244 = vadd.f32 %v427, %v1243
    %v1245 = vpop.f32.mrf.mxu0
    %v1246 = vadd.f32 %v431, %v1245
    %v1247 = vpop.f32.mrf.mxu0
    %v1248 = vadd.f32 %v427, %v1247
    %v1249 = vpop.f32.mrf.mxu0
    %v1250 = vadd.f32 %v431, %v1249
    %1251 = vdwg.mxu0
    %v1252 = vmax.f32 %v1115, 0.0
    %v1253 = vmax.f32 %v1117, 0.0
    %v1254 = vmax.f32 %v1158, 0.0
    %v1255 = vmax.f32 %v1160, 0.0
    %v1256 = vmax.f32 %v1201, 0.0
    %v1257 = vmax.f32 %v1203, 0.0
    %v1258 = vmax.f32 %v1244, 0.0
    %v1259 = vmax.f32 %v1246, 0.0
    %v1260 = vmax.f32 %v1119, 0.0
    %v1261 = vmax.f32 %v1121, 0.0
    %v1262 = vmax.f32 %v1162, 0.0
    %v1263 = vmax.f32 %v1164, 0.0
    %v1264 = vmax.f32 %v1205, 0.0
    %v1265 = vmax.f32 %v1207, 0.0
    %v1266 = vmax.f32 %v1248, 0.0
    %v1267 = vmax.f32 %v1250, 0.0
    %v1268 = vpack.c.bf16 %v1260, %v1252
    %v1269 = vpack.c.bf16 %v1261, %v1253
    %v1270 = vpack.c.bf16 %v1262, %v1254
    %v1271 = vpack.c.bf16 %v1263, %v1255
    %v1272 = vpack.c.bf16 %v1264, %v1256
    %v1273 = vpack.c.bf16 %v1265, %v1257
    %v1274 = vpack.c.bf16 %v1266, %v1258
    %v1275 = vpack.c.bf16 %v1267, %v1259
    %v1276 = vld [vmem:[#allocation10] sm:$0xf]
    %v1277 = vld [vmem:[#allocation10 + $0x4] sm:$0xf]
    %v1278 = vld [vmem:[#allocation10 + $0x8] sm:$0xf]
    %v1279 = vld [vmem:[#allocation10 + $0xc] sm:$0xf]
    %v1280 = vld [vmem:[#allocation10 + $0x10] sm:$0xf]
    %v1281 = vld [vmem:[#allocation10 + $0x14] sm:$0xf]
    %v1282 = vld [vmem:[#allocation10 + $0x18] sm:$0xf]
    %v1283 = vld [vmem:[#allocation10 + $0x1c] sm:$0xf]
    %v1284 = vld [vmem:[#allocation10 + $0x20] sm:$0xf]
    %v1285 = vld [vmem:[#allocation10 + $0x24] sm:$0xf]
    %v1286 = vld [vmem:[#allocation10 + $0x28] sm:$0xf]
    %v1287 = vld [vmem:[#allocation10 + $0x2c] sm:$0xf]
    %v1288 = vld [vmem:[#allocation10 + $0x30] sm:$0xf]
    %v1289 = vld [vmem:[#allocation10 + $0x34] sm:$0xf]
    %v1290 = vld [vmem:[#allocation10 + $0x38] sm:$0xf]
    %v1291 = vld [vmem:[#allocation10 + $0x3c] sm:$0xf]
    %v1292 = vld [vmem:[#allocation10 + $0x40] sm:$0xf]
    %v1293 = vld [vmem:[#allocation10 + $0x44] sm:$0xf]
    %v1294 = vld [vmem:[#allocation10 + $0x48] sm:$0xf]
    %v1295 = vld [vmem:[#allocation10 + $0x4c] sm:$0xf]
    %v1296 = vld [vmem:[#allocation10 + $0x50] sm:$0xf]
    %v1297 = vld [vmem:[#allocation10 + $0x54] sm:$0xf]
    %v1298 = vld [vmem:[#allocation10 + $0x58] sm:$0xf]
    %v1299 = vld [vmem:[#allocation10 + $0x5c] sm:$0xf]
    %v1300 = vld [vmem:[#allocation10 + $0x60] sm:$0xf]
    %v1301 = vld [vmem:[#allocation10 + $0x64] sm:$0xf]
    %v1302 = vld [vmem:[#allocation10 + $0x68] sm:$0xf]
    %v1303 = vld [vmem:[#allocation10 + $0x6c] sm:$0xf]
    %v1304 = vld [vmem:[#allocation10 + $0x70] sm:$0xf]
    %v1305 = vld [vmem:[#allocation10 + $0x74] sm:$0xf]
    %v1306 = vld [vmem:[#allocation10 + $0x78] sm:$0xf]
    %v1307 = vld [vmem:[#allocation10 + $0x7c] sm:$0xf]
    %v1308 = vld [vmem:[#allocation10 + $0x80] sm:$0xf]
    %v1309 = vld [vmem:[#allocation10 + $0x84] sm:$0xf]
    %v1310 = vld [vmem:[#allocation10 + $0x88] sm:$0xf]
    %v1311 = vld [vmem:[#allocation10 + $0x8c] sm:$0xf]
    %v1312 = vld [vmem:[#allocation10 + $0x90] sm:$0xf]
    %v1313 = vld [vmem:[#allocation10 + $0x94] sm:$0xf]
    %v1314 = vld [vmem:[#allocation10 + $0x98] sm:$0xf]
    %v1315 = vld [vmem:[#allocation10 + $0x9c] sm:$0xf]
    %v1316 = vld [vmem:[#allocation10 + $0xa0] sm:$0xf]
    %v1317 = vld [vmem:[#allocation10 + $0xa4] sm:$0xf]
    %v1318 = vld [vmem:[#allocation10 + $0xa8] sm:$0xf]
    %v1319 = vld [vmem:[#allocation10 + $0xac] sm:$0xf]
    %v1320 = vld [vmem:[#allocation10 + $0xb0] sm:$0xf]
    %v1321 = vld [vmem:[#allocation10 + $0xb4] sm:$0xf]
    %v1322 = vld [vmem:[#allocation10 + $0xb8] sm:$0xf]
    %v1323 = vld [vmem:[#allocation10 + $0xbc] sm:$0xf]
    %v1324 = vld [vmem:[#allocation10 + $0xc0] sm:$0xf]
    %v1325 = vld [vmem:[#allocation10 + $0xc4] sm:$0xf]
    %v1326 = vld [vmem:[#allocation10 + $0xc8] sm:$0xf]
    %v1327 = vld [vmem:[#allocation10 + $0xcc] sm:$0xf]
    %v1328 = vld [vmem:[#allocation10 + $0xd0] sm:$0xf]
    %v1329 = vld [vmem:[#allocation10 + $0xd4] sm:$0xf]
    %v1330 = vld [vmem:[#allocation10 + $0xd8] sm:$0xf]
    %v1331 = vld [vmem:[#allocation10 + $0xdc] sm:$0xf]
    %v1332 = vld [vmem:[#allocation10 + $0xe0] sm:$0xf]
    %v1333 = vld [vmem:[#allocation10 + $0xe4] sm:$0xf]
    %v1334 = vld [vmem:[#allocation10 + $0xe8] sm:$0xf]
    %v1335 = vld [vmem:[#allocation10 + $0xec] sm:$0xf]
    %v1336 = vld [vmem:[#allocation10 + $0xf0] sm:$0xf]
    %v1337 = vld [vmem:[#allocation10 + $0xf4] sm:$0xf]
    %v1338 = vld [vmem:[#allocation10 + $0xf8] sm:$0xf]
    %v1339 = vld [vmem:[#allocation10 + $0xfc] sm:$0xf]
    %v1340 = vld [vmem:[#allocation10 + $0x100] sm:$0xf]
    %v1341 = vld [vmem:[#allocation10 + $0x104] sm:$0xf]
    %v1342 = vld [vmem:[#allocation10 + $0x108] sm:$0xf]
    %v1343 = vld [vmem:[#allocation10 + $0x10c] sm:$0xf]
    %v1344 = vld [vmem:[#allocation10 + $0x110] sm:$0xf]
    %v1345 = vld [vmem:[#allocation10 + $0x114] sm:$0xf]
    %v1346 = vld [vmem:[#allocation10 + $0x118] sm:$0xf]
    %v1347 = vld [vmem:[#allocation10 + $0x11c] sm:$0xf]
    %v1348 = vld [vmem:[#allocation10 + $0x120] sm:$0xf]
    %v1349 = vld [vmem:[#allocation10 + $0x124] sm:$0xf]
    %v1350 = vld [vmem:[#allocation10 + $0x128] sm:$0xf]
    %v1351 = vld [vmem:[#allocation10 + $0x12c] sm:$0xf]
    %v1352 = vld [vmem:[#allocation10 + $0x130] sm:$0xf]
    %v1353 = vld [vmem:[#allocation10 + $0x134] sm:$0xf]
    %v1354 = vld [vmem:[#allocation10 + $0x138] sm:$0xf]
    %v1355 = vld [vmem:[#allocation10 + $0x13c] sm:$0xf]
    %v1356 = vld [vmem:[#allocation10 + $0x140] sm:$0xf]
    %v1357 = vld [vmem:[#allocation10 + $0x144] sm:$0xf]
    %v1358 = vld [vmem:[#allocation10 + $0x148] sm:$0xf]
    %v1359 = vld [vmem:[#allocation10 + $0x14c] sm:$0xf]
    %v1360 = vld [vmem:[#allocation10 + $0x150] sm:$0xf]
    %v1361 = vld [vmem:[#allocation10 + $0x154] sm:$0xf]
    %v1362 = vld [vmem:[#allocation10 + $0x158] sm:$0xf]
    %v1363 = vld [vmem:[#allocation10 + $0x15c] sm:$0xf]
    %v1364 = vld [vmem:[#allocation10 + $0x160] sm:$0xf]
    %v1365 = vld [vmem:[#allocation10 + $0x164] sm:$0xf]
    %v1366 = vld [vmem:[#allocation10 + $0x168] sm:$0xf]
    %v1367 = vld [vmem:[#allocation10 + $0x16c] sm:$0xf]
    %v1368 = vld [vmem:[#allocation10 + $0x170] sm:$0xf]
    %v1369 = vld [vmem:[#allocation10 + $0x174] sm:$0xf]
    %v1370 = vld [vmem:[#allocation10 + $0x178] sm:$0xf]
    %v1371 = vld [vmem:[#allocation10 + $0x17c] sm:$0xf]
    %v1372 = vld [vmem:[#allocation10 + $0x180] sm:$0xf]
    %v1373 = vld [vmem:[#allocation10 + $0x184] sm:$0xf]
    %v1374 = vld [vmem:[#allocation10 + $0x188] sm:$0xf]
    %v1375 = vld [vmem:[#allocation10 + $0x18c] sm:$0xf]
    %v1376 = vld [vmem:[#allocation10 + $0x190] sm:$0xf]
    %v1377 = vld [vmem:[#allocation10 + $0x194] sm:$0xf]
    %v1378 = vld [vmem:[#allocation10 + $0x198] sm:$0xf]
    %v1379 = vld [vmem:[#allocation10 + $0x19c] sm:$0xf]
    %v1380 = vld [vmem:[#allocation10 + $0x1a0] sm:$0xf]
    %v1381 = vld [vmem:[#allocation10 + $0x1a4] sm:$0xf]
    %v1382 = vld [vmem:[#allocation10 + $0x1a8] sm:$0xf]
    %v1383 = vld [vmem:[#allocation10 + $0x1ac] sm:$0xf]
    %v1384 = vld [vmem:[#allocation10 + $0x1b0] sm:$0xf]
    %v1385 = vld [vmem:[#allocation10 + $0x1b4] sm:$0xf]
    %v1386 = vld [vmem:[#allocation10 + $0x1b8] sm:$0xf]
    %v1387 = vld [vmem:[#allocation10 + $0x1bc] sm:$0xf]
    %v1388 = vld [vmem:[#allocation10 + $0x1c0] sm:$0xf]
    %v1389 = vld [vmem:[#allocation10 + $0x1c4] sm:$0xf]
    %v1390 = vld [vmem:[#allocation10 + $0x1c8] sm:$0xf]
    %v1391 = vld [vmem:[#allocation10 + $0x1cc] sm:$0xf]
    %v1392 = vld [vmem:[#allocation10 + $0x1d0] sm:$0xf]
    %v1393 = vld [vmem:[#allocation10 + $0x1d4] sm:$0xf]
    %v1394 = vld [vmem:[#allocation10 + $0x1d8] sm:$0xf]
    %v1395 = vld [vmem:[#allocation10 + $0x1dc] sm:$0xf]
    %v1396 = vld [vmem:[#allocation10 + $0x1e0] sm:$0xf]
    %v1397 = vld [vmem:[#allocation10 + $0x1e4] sm:$0xf]
    %v1398 = vld [vmem:[#allocation10 + $0x1e8] sm:$0xf]
    %v1399 = vld [vmem:[#allocation10 + $0x1ec] sm:$0xf]
    %v1400 = vld [vmem:[#allocation10 + $0x1f0] sm:$0xf]
    %v1401 = vld [vmem:[#allocation10 + $0x1f4] sm:$0xf]
    %v1402 = vld [vmem:[#allocation10 + $0x1f8] sm:$0xf]
    %v1403 = vld [vmem:[#allocation10 + $0x1fc] sm:$0xf]
    %v1404 = vld [vmem:[%s6] sm:$0x1]
    %v1406 = vlaneseq
    %v1407 = vshrl.u32 %v1406, 7
    %v1408 = vsub.s32 0, %v1407
    %v1409 = vrot.slane %v1404, %v1408
    %v1539 = vunpack.c.l.b16 %v1276
    %v1540 = vunpack.c.l.b16 %v1277
    %v1541 = vunpack.c.l.b16 %v1278
    %v1542 = vunpack.c.l.b16 %v1279
    %v1543 = vunpack.c.l.b16 %v1280
    %v1544 = vunpack.c.l.b16 %v1281
    %v1545 = vunpack.c.l.b16 %v1282
    %v1546 = vunpack.c.l.b16 %v1283
    %v1547 = vunpack.c.l.b16 %v1284
    %v1548 = vunpack.c.l.b16 %v1285
    %v1549 = vunpack.c.l.b16 %v1286
    %v1550 = vunpack.c.l.b16 %v1287
    %v1551 = vunpack.c.l.b16 %v1288
    %v1552 = vunpack.c.l.b16 %v1289
    %v1553 = vunpack.c.l.b16 %v1290
    %v1554 = vunpack.c.l.b16 %v1291
    %v1555 = vunpack.c.l.b16 %v1292
    %v1556 = vunpack.c.l.b16 %v1293
    %v1557 = vunpack.c.l.b16 %v1294
    %v1558 = vunpack.c.l.b16 %v1295
    %v1559 = vunpack.c.l.b16 %v1296
    %v1560 = vunpack.c.l.b16 %v1297
    %v1561 = vunpack.c.l.b16 %v1298
    %v1562 = vunpack.c.l.b16 %v1299
    %v1563 = vunpack.c.l.b16 %v1300
    %v1564 = vunpack.c.l.b16 %v1301
    %v1565 = vunpack.c.l.b16 %v1302
    %v1566 = vunpack.c.l.b16 %v1303
    %v1567 = vunpack.c.l.b16 %v1304
    %v1568 = vunpack.c.l.b16 %v1305
    %v1569 = vunpack.c.l.b16 %v1306
    %v1570 = vunpack.c.l.b16 %v1307
    %v1571 = vunpack.c.l.b16 %v1308
    %v1572 = vunpack.c.l.b16 %v1309
    %v1573 = vunpack.c.l.b16 %v1310
    %v1574 = vunpack.c.l.b16 %v1311
    %v1575 = vunpack.c.l.b16 %v1312
    %v1576 = vunpack.c.l.b16 %v1313
    %v1577 = vunpack.c.l.b16 %v1314
    %v1578 = vunpack.c.l.b16 %v1315
    %v1579 = vunpack.c.l.b16 %v1316
    %v1580 = vunpack.c.l.b16 %v1317
    %v1581 = vunpack.c.l.b16 %v1318
    %v1582 = vunpack.c.l.b16 %v1319
    %v1583 = vunpack.c.l.b16 %v1320
    %v1584 = vunpack.c.l.b16 %v1321
    %v1585 = vunpack.c.l.b16 %v1322
    %v1586 = vunpack.c.l.b16 %v1323
    %v1587 = vunpack.c.l.b16 %v1324
    %v1588 = vunpack.c.l.b16 %v1325
    %v1589 = vunpack.c.l.b16 %v1326
    %v1590 = vunpack.c.l.b16 %v1327
    %v1591 = vunpack.c.l.b16 %v1328
    %v1592 = vunpack.c.l.b16 %v1329
    %v1593 = vunpack.c.l.b16 %v1330
    %v1594 = vunpack.c.l.b16 %v1331
    %v1595 = vunpack.c.l.b16 %v1332
    %v1596 = vunpack.c.l.b16 %v1333
    %v1597 = vunpack.c.l.b16 %v1334
    %v1598 = vunpack.c.l.b16 %v1335
    %v1599 = vunpack.c.l.b16 %v1336
    %v1600 = vunpack.c.l.b16 %v1337
    %v1601 = vunpack.c.l.b16 %v1338
    %v1602 = vunpack.c.l.b16 %v1339
    %v1603 = vunpack.c.l.b16 %v1340
    %v1604 = vunpack.c.l.b16 %v1341
    %v1605 = vunpack.c.l.b16 %v1342
    %v1606 = vunpack.c.l.b16 %v1343
    %v1607 = vunpack.c.l.b16 %v1344
    %v1608 = vunpack.c.l.b16 %v1345
    %v1609 = vunpack.c.l.b16 %v1346
    %v1610 = vunpack.c.l.b16 %v1347
    %v1611 = vunpack.c.l.b16 %v1348
    %v1612 = vunpack.c.l.b16 %v1349
    %v1613 = vunpack.c.l.b16 %v1350
    %v1614 = vunpack.c.l.b16 %v1351
    %v1615 = vunpack.c.l.b16 %v1352
    %v1616 = vunpack.c.l.b16 %v1353
    %v1617 = vunpack.c.l.b16 %v1354
    %v1618 = vunpack.c.l.b16 %v1355
    %v1619 = vunpack.c.l.b16 %v1356
    %v1620 = vunpack.c.l.b16 %v1357
    %v1621 = vunpack.c.l.b16 %v1358
    %v1622 = vunpack.c.l.b16 %v1359
    %v1623 = vunpack.c.l.b16 %v1360
    %v1624 = vunpack.c.l.b16 %v1361
    %v1625 = vunpack.c.l.b16 %v1362
    %v1626 = vunpack.c.l.b16 %v1363
    %v1627 = vunpack.c.l.b16 %v1364
    %v1628 = vunpack.c.l.b16 %v1365
    %v1629 = vunpack.c.l.b16 %v1366
    %v1630 = vunpack.c.l.b16 %v1367
    %v1631 = vunpack.c.l.b16 %v1368
    %v1632 = vunpack.c.l.b16 %v1369
    %v1633 = vunpack.c.l.b16 %v1370
    %v1634 = vunpack.c.l.b16 %v1371
    %v1635 = vunpack.c.l.b16 %v1372
    %v1636 = vunpack.c.l.b16 %v1373
    %v1637 = vunpack.c.l.b16 %v1374
    %v1638 = vunpack.c.l.b16 %v1375
    %v1639 = vunpack.c.l.b16 %v1376
    %v1640 = vunpack.c.l.b16 %v1377
    %v1641 = vunpack.c.l.b16 %v1378
    %v1642 = vunpack.c.l.b16 %v1379
    %v1643 = vunpack.c.l.b16 %v1380
    %v1644 = vunpack.c.l.b16 %v1381
    %v1645 = vunpack.c.l.b16 %v1382
    %v1646 = vunpack.c.l.b16 %v1383
    %v1647 = vunpack.c.l.b16 %v1384
    %v1648 = vunpack.c.l.b16 %v1385
    %v1649 = vunpack.c.l.b16 %v1386
    %v1650 = vunpack.c.l.b16 %v1387
    %v1651 = vunpack.c.l.b16 %v1388
    %v1652 = vunpack.c.l.b16 %v1389
    %v1653 = vunpack.c.l.b16 %v1390
    %v1654 = vunpack.c.l.b16 %v1391
    %v1655 = vunpack.c.l.b16 %v1392
    %v1656 = vunpack.c.l.b16 %v1393
    %v1657 = vunpack.c.l.b16 %v1394
    %v1658 = vunpack.c.l.b16 %v1395
    %v1659 = vunpack.c.l.b16 %v1396
    %v1660 = vunpack.c.l.b16 %v1397
    %v1661 = vunpack.c.l.b16 %v1398
    %v1662 = vunpack.c.l.b16 %v1399
    %v1663 = vunpack.c.l.b16 %v1400
    %v1664 = vunpack.c.l.b16 %v1401
    %v1665 = vunpack.c.l.b16 %v1402
    %v1666 = vunpack.c.l.b16 %v1403
    %v1667 = vpack.c.b16 %v1540, %v1539
    %v1668 = vpack.c.b16 %v1542, %v1541
    %v1669 = vpack.c.b16 %v1544, %v1543
    %v1670 = vpack.c.b16 %v1546, %v1545
    %v1671 = vpack.c.b16 %v1548, %v1547
    %v1672 = vpack.c.b16 %v1550, %v1549
    %v1673 = vpack.c.b16 %v1552, %v1551
    %v1674 = vpack.c.b16 %v1554, %v1553
    %v1675 = vpack.c.b16 %v1556, %v1555
    %v1676 = vpack.c.b16 %v1558, %v1557
    %v1677 = vpack.c.b16 %v1560, %v1559
    %v1678 = vpack.c.b16 %v1562, %v1561
    %v1679 = vpack.c.b16 %v1564, %v1563
    %v1680 = vpack.c.b16 %v1566, %v1565
    %v1681 = vpack.c.b16 %v1568, %v1567
    %v1682 = vpack.c.b16 %v1570, %v1569
    %v1683 = vpack.c.b16 %v1572, %v1571
    %v1684 = vpack.c.b16 %v1574, %v1573
    %v1685 = vpack.c.b16 %v1576, %v1575
    %v1686 = vpack.c.b16 %v1578, %v1577
    %v1687 = vpack.c.b16 %v1580, %v1579
    %v1688 = vpack.c.b16 %v1582, %v1581
    %v1689 = vpack.c.b16 %v1584, %v1583
    %v1690 = vpack.c.b16 %v1586, %v1585
    %v1691 = vpack.c.b16 %v1588, %v1587
    %v1692 = vpack.c.b16 %v1590, %v1589
    %v1693 = vpack.c.b16 %v1592, %v1591
    %v1694 = vpack.c.b16 %v1594, %v1593
    %v1695 = vpack.c.b16 %v1596, %v1595
    %v1696 = vpack.c.b16 %v1598, %v1597
    %v1697 = vpack.c.b16 %v1600, %v1599
    %v1698 = vpack.c.b16 %v1602, %v1601
    %v1699 = vpack.c.b16 %v1604, %v1603
    %v1700 = vpack.c.b16 %v1606, %v1605
    %v1701 = vpack.c.b16 %v1608, %v1607
    %v1702 = vpack.c.b16 %v1610, %v1609
    %v1703 = vpack.c.b16 %v1612, %v1611
    %v1704 = vpack.c.b16 %v1614, %v1613
    %v1705 = vpack.c.b16 %v1616, %v1615
    %v1706 = vpack.c.b16 %v1618, %v1617
    %v1707 = vpack.c.b16 %v1620, %v1619
    %v1708 = vpack.c.b16 %v1622, %v1621
    %v1709 = vpack.c.b16 %v1624, %v1623
    %v1710 = vpack.c.b16 %v1626, %v1625
    %v1711 = vpack.c.b16 %v1628, %v1627
    %v1712 = vpack.c.b16 %v1630, %v1629
    %v1713 = vpack.c.b16 %v1632, %v1631
    %v1714 = vpack.c.b16 %v1634, %v1633
    %v1715 = vpack.c.b16 %v1636, %v1635
    %v1716 = vpack.c.b16 %v1638, %v1637
    %v1717 = vpack.c.b16 %v1640, %v1639
    %v1718 = vpack.c.b16 %v1642, %v1641
    %v1719 = vpack.c.b16 %v1644, %v1643
    %v1720 = vpack.c.b16 %v1646, %v1645
    %v1721 = vpack.c.b16 %v1648, %v1647
    %v1722 = vpack.c.b16 %v1650, %v1649
    %v1723 = vpack.c.b16 %v1652, %v1651
    %v1724 = vpack.c.b16 %v1654, %v1653
    %v1725 = vpack.c.b16 %v1656, %v1655
    %v1726 = vpack.c.b16 %v1658, %v1657
    %v1727 = vpack.c.b16 %v1660, %v1659
    %v1728 = vpack.c.b16 %v1662, %v1661
    %v1729 = vpack.c.b16 %v1664, %v1663
    %v1730 = vpack.c.b16 %v1666, %v1665
    %1795 = vmatprep.subr.bf16.mxu0 0
    %1796 = vmatpush1.bf16.msra.mxu0 %v1674
    %1797 = vmatprep.subr.bf16.mxu0 0
    %1798 = vmatpush1.bf16.msra.mxu0 %v1673
    %1799 = vmatprep.subr.bf16.mxu0 0
    %1800 = vmatpush1.bf16.msra.mxu0 %v1672
    %1801 = vmatprep.subr.bf16.mxu0 0
    %1802 = vmatpush1.bf16.msra.mxu0 %v1671
    %1803 = vmatprep.subr.bf16.mxu0 0
    %1804 = vmatpush1.bf16.msra.mxu0 %v1670
    %1805 = vmatprep.subr.bf16.mxu0 0
    %1806 = vmatpush1.bf16.msra.mxu0 %v1669
    %1807 = vmatprep.subr.bf16.mxu0 0
    %1808 = vmatpush1.bf16.msra.mxu0 %v1668
    %1809 = vmatprep.subr.bf16.mxu0 0
    %1810 = vmatpush1.bf16.msra.mxu0 %v1667
    %1811 = vmatprep.subr.bf16.mxu0 0
    %1812 = vmatpush2.bf16.msra.mxu0 %v1682
    %1813 = vmatprep.subr.bf16.mxu0 0
    %1814 = vmatpush2.bf16.msra.mxu0 %v1681
    %1815 = vmatprep.subr.bf16.mxu0 0
    %1816 = vmatpush2.bf16.msra.mxu0 %v1680
    %1817 = vmatprep.subr.bf16.mxu0 0
    %1818 = vmatpush2.bf16.msra.mxu0 %v1679
    %1819 = vmatprep.subr.bf16.mxu0 0
    %1820 = vmatpush2.bf16.msra.mxu0 %v1678
    %1821 = vmatprep.subr.bf16.mxu0 0
    %1822 = vmatpush2.bf16.msra.mxu0 %v1677
    %1823 = vmatprep.subr.bf16.mxu0 0
    %1824 = vmatpush2.bf16.msra.mxu0 %v1676
    %1825 = vmatprep.subr.bf16.mxu0 0
    %1826 = vmatpush2.bf16.msra.mxu0 %v1675
    %1827 = vmatprep.mubr.bf16.mxu0 %v1269
    %1828 = vmatmul.mubr.bf16.gmra.mxu0 %v1268
    %v1829 = vpop.f32.mrf.mxu0
    %v1830 = vadd.f32 %v1409, %v1829
    %v1831 = vpop.f32.mrf.mxu0
    %v1832 = vpop.f32.mrf.mxu0
    %v1833 = vadd.f32 %v1409, %v1832
    %v1834 = vpop.f32.mrf.mxu0
    %1835 = vdwg.mxu0
    %1836 = vmatprep.subr.bf16.mxu0 0
    %1837 = vmatpush1.bf16.msra.mxu0 %v1690
    %1838 = vmatprep.subr.bf16.mxu0 0
    %1839 = vmatpush1.bf16.msra.mxu0 %v1689
    %1840 = vmatprep.subr.bf16.mxu0 0
    %1841 = vmatpush1.bf16.msra.mxu0 %v1688
    %1842 = vmatprep.subr.bf16.mxu0 0
    %1843 = vmatpush1.bf16.msra.mxu0 %v1687
    %1844 = vmatprep.subr.bf16.mxu0 0
    %1845 = vmatpush1.bf16.msra.mxu0 %v1686
    %1846 = vmatprep.subr.bf16.mxu0 0
    %1847 = vmatpush1.bf16.msra.mxu0 %v1685
    %1848 = vmatprep.subr.bf16.mxu0 0
    %1849 = vmatpush1.bf16.msra.mxu0 %v1684
    %1850 = vmatprep.subr.bf16.mxu0 0
    %1851 = vmatpush1.bf16.msra.mxu0 %v1683
    %1852 = vmatprep.subr.bf16.mxu0 0
    %1853 = vmatpush2.bf16.msra.mxu0 %v1698
    %1854 = vmatprep.subr.bf16.mxu0 0
    %1855 = vmatpush2.bf16.msra.mxu0 %v1697
    %1856 = vmatprep.subr.bf16.mxu0 0
    %1857 = vmatpush2.bf16.msra.mxu0 %v1696
    %1858 = vmatprep.subr.bf16.mxu0 0
    %1859 = vmatpush2.bf16.msra.mxu0 %v1695
    %1860 = vmatprep.subr.bf16.mxu0 0
    %1861 = vmatpush2.bf16.msra.mxu0 %v1694
    %1862 = vmatprep.subr.bf16.mxu0 0
    %1863 = vmatpush2.bf16.msra.mxu0 %v1693
    %1864 = vmatprep.subr.bf16.mxu0 0
    %1865 = vmatpush2.bf16.msra.mxu0 %v1692
    %1866 = vmatprep.subr.bf16.mxu0 0
    %1867 = vmatpush2.bf16.msra.mxu0 %v1691
    %1868 = vmatprep.mubr.bf16.mxu0 %v1271
    %1869 = vmatmul.mubr.bf16.gmra.mxu0 %v1270
    %v1870 = vpop.f32.mrf.mxu0
    %v1871 = vadd.f32 %v1830, %v1870
    %v1872 = vpop.f32.mrf.mxu0
    %v1873 = vpop.f32.mrf.mxu0
    %v1874 = vadd.f32 %v1833, %v1873
    %v1875 = vpop.f32.mrf.mxu0
    %1876 = vdwg.mxu0
    %1877 = vmatprep.subr.bf16.mxu0 0
    %1878 = vmatpush1.bf16.msra.mxu0 %v1706
    %1879 = vmatprep.subr.bf16.mxu0 0
    %1880 = vmatpush1.bf16.msra.mxu0 %v1705
    %1881 = vmatprep.subr.bf16.mxu0 0
    %1882 = vmatpush1.bf16.msra.mxu0 %v1704
    %1883 = vmatprep.subr.bf16.mxu0 0
    %1884 = vmatpush1.bf16.msra.mxu0 %v1703
    %1885 = vmatprep.subr.bf16.mxu0 0
    %1886 = vmatpush1.bf16.msra.mxu0 %v1702
    %1887 = vmatprep.subr.bf16.mxu0 0
    %1888 = vmatpush1.bf16.msra.mxu0 %v1701
    %1889 = vmatprep.subr.bf16.mxu0 0
    %1890 = vmatpush1.bf16.msra.mxu0 %v1700
    %1891 = vmatprep.subr.bf16.mxu0 0
    %1892 = vmatpush1.bf16.msra.mxu0 %v1699
    %1893 = vmatprep.subr.bf16.mxu0 0
    %1894 = vmatpush2.bf16.msra.mxu0 %v1714
    %1895 = vmatprep.subr.bf16.mxu0 0
    %1896 = vmatpush2.bf16.msra.mxu0 %v1713
    %1897 = vmatprep.subr.bf16.mxu0 0
    %1898 = vmatpush2.bf16.msra.mxu0 %v1712
    %1899 = vmatprep.subr.bf16.mxu0 0
    %1900 = vmatpush2.bf16.msra.mxu0 %v1711
    %1901 = vmatprep.subr.bf16.mxu0 0
    %1902 = vmatpush2.bf16.msra.mxu0 %v1710
    %1903 = vmatprep.subr.bf16.mxu0 0
    %1904 = vmatpush2.bf16.msra.mxu0 %v1709
    %1905 = vmatprep.subr.bf16.mxu0 0
    %1906 = vmatpush2.bf16.msra.mxu0 %v1708
    %1907 = vmatprep.subr.bf16.mxu0 0
    %1908 = vmatpush2.bf16.msra.mxu0 %v1707
    %1909 = vmatprep.mubr.bf16.mxu0 %v1273
    %1910 = vmatmul.mubr.bf16.gmra.mxu0 %v1272
    %v1911 = vpop.f32.mrf.mxu0
    %v1912 = vadd.f32 %v1871, %v1911
    %v1913 = vpop.f32.mrf.mxu0
    %v1914 = vpop.f32.mrf.mxu0
    %v1915 = vadd.f32 %v1874, %v1914
    %v1916 = vpop.f32.mrf.mxu0
    %1917 = vdwg.mxu0
    %1918 = vmatprep.subr.bf16.mxu0 0
    %1919 = vmatpush1.bf16.msra.mxu0 %v1722
    %1920 = vmatprep.subr.bf16.mxu0 0
    %1921 = vmatpush1.bf16.msra.mxu0 %v1721
    %1922 = vmatprep.subr.bf16.mxu0 0
    %1923 = vmatpush1.bf16.msra.mxu0 %v1720
    %1924 = vmatprep.subr.bf16.mxu0 0
    %1925 = vmatpush1.bf16.msra.mxu0 %v1719
    %1926 = vmatprep.subr.bf16.mxu0 0
    %1927 = vmatpush1.bf16.msra.mxu0 %v1718
    %1928 = vmatprep.subr.bf16.mxu0 0
    %1929 = vmatpush1.bf16.msra.mxu0 %v1717
    %1930 = vmatprep.subr.bf16.mxu0 0
    %1931 = vmatpush1.bf16.msra.mxu0 %v1716
    %1932 = vmatprep.subr.bf16.mxu0 0
    %1933 = vmatpush1.bf16.msra.mxu0 %v1715
    %1934 = vmatprep.subr.bf16.mxu0 0
    %1935 = vmatpush2.bf16.msra.mxu0 %v1730
    %1936 = vmatprep.subr.bf16.mxu0 0
    %1937 = vmatpush2.bf16.msra.mxu0 %v1729
    %1938 = vmatprep.subr.bf16.mxu0 0
    %1939 = vmatpush2.bf16.msra.mxu0 %v1728
    %1940 = vmatprep.subr.bf16.mxu0 0
    %1941 = vmatpush2.bf16.msra.mxu0 %v1727
    %1942 = vmatprep.subr.bf16.mxu0 0
    %1943 = vmatpush2.bf16.msra.mxu0 %v1726
    %1944 = vmatprep.subr.bf16.mxu0 0
    %1945 = vmatpush2.bf16.msra.mxu0 %v1725
    %1946 = vmatprep.subr.bf16.mxu0 0
    %1947 = vmatpush2.bf16.msra.mxu0 %v1724
    %1948 = vmatprep.subr.bf16.mxu0 0
    %1949 = vmatpush2.bf16.msra.mxu0 %v1723
    %1950 = vmatprep.mubr.bf16.mxu0 %v1275
    %1951 = vmatmul.mubr.bf16.gmra.mxu0 %v1274
    %v1952 = vpop.f32.mrf.mxu0
    %v1953 = vadd.f32 %v1912, %v1952
    %v1954 = vpop.f32.mrf.mxu0
    %v1955 = vpop.f32.mrf.mxu0
    %v1956 = vadd.f32 %v1915, %v1955
    %v1957 = vpop.f32.mrf.mxu0
    %1958 = vdwg.mxu0
    %1959 = vst [vmem:[#allocation11] sm:$0xff] %v1953
    %1960 = vst [vmem:[#allocation11 + $0x8] sm:$0xff] %v1956
    // Predicated region
    $region50: #{tpu_custom_call.1} parent=1 // pred_check
      _
    $region51: #{tpu_custom_call.1} parent=1 // pred_check_branch
      %1962 = sbr.rel (0) target = $region53
    $region52: #{tpu_custom_call.1} parent=1 // pred_region
      %s1964 = ssub.s32 256, 256
      %1965 = vsyncadd [#allocation4], %s1964
      %s1966 = sshll.u32 [#allocation11], 4
      %s1967 = int_to_ptr.vmem [resolvable:$true] %s1966
      %1972 = dma.vmem_to_hbm [thread:$0]  %s1967, 256, %s7, [#allocation4], 128, 128, 8
    $region53: #{tpu_custom_call.1} parent=1 // pred_fallthru
      _
    // Predicated region
    $region54: #{tpu_custom_call.1} parent=1 // pred_check
      _
    $region55: #{tpu_custom_call.1} parent=1 // pred_check_branch
      %1974 = sbr.rel (0) target = $region57
    $region56: #{tpu_custom_call.1} parent=1 // pred_region
      %s1976 = ssub.s32 256, 256
      %1977 = vsyncadd [#allocation13], %s1976
      %s1978 = sshll.u32 [#allocation12], 4
      %s1979 = int_to_ptr.vmem [resolvable:$true] %s1978
      %1984 = dma.vmem_to_hbm [thread:$0]  %s1979, 256, %s8, [#allocation13], 128, 128, 8
    $region57: #{tpu_custom_call.1} parent=1 // pred_fallthru
      _
    // Predicated region
    $region58: #{tpu_custom_call.1} parent=1 // pred_check
      _
    $region59: #{tpu_custom_call.1} parent=1 // pred_check_branch
      %1986 = sbr.rel (0) target = $region61
    $region60: #{tpu_custom_call.1} parent=1 // pred_region
      %1987 = dma.done [#allocation4], 256
    $region61: #{tpu_custom_call.1} parent=1 // pred_fallthru
      _
    // Predicated region
    $region62: #{tpu_custom_call.1} parent=1 // pred_check
      _
    $region63: #{tpu_custom_call.1} parent=1 // pred_check_branch
      %1989 = sbr.rel (0) target = $region65
    $region64: #{tpu_custom_call.1} parent=1 // pred_region
      %1990 = dma.done [#allocation13], 256
    $region65: #{tpu_custom_call.1} parent=1 // pred_fallthru
      _
    %1991 = vsyncpa [#allocation3], 1
    %1992 = vsyncpa [#allocation6], 1
    %1993 = vsyncpa [#allocation9], 1
    %1994 = vsyncpa [#allocation4], 1
    %1995 = vsyncpa [#allocation13], 1

</llo_original>
